<compile_context>
chip_gen: v5e
topology: v5e:2x2
jax: 0.10.0
libtpu: 0.0.40
codegen_flags: <defaults>
</compile_context>

<pallas_src>
import jax
import jax.numpy as jnp
from jax import lax
from jax.experimental import pallas as pl
from jax.experimental.pallas import tpu as pltpu


def _sigmoid(x):
    # One EUP op instead of exp + divide: sigmoid(x) == 0.5 * tanh(0.5 x) + 0.5
    return 0.5 * jnp.tanh(0.5 * x) + 0.5


def _round_up(x, m):
    return ((x + m - 1) // m) * m


def _encoder_lstm_kernel(tmax_ref,        # (G,)          int32  SMEM (scalar prefetch)
                         x_ref,           # (1, Tc*Bt, E) bf16   time-chunk of inputs
                         wih_ref,         # (E, 4H)       bf16   resident
                         whh_ref,         # (H, 4H)       bf16   resident
                         b_ref,           # (1, 4H)       f32    resident (b_ih + b_hh)
                         lens_ref,        # (Bt, 1)       int32  per-row lengths
                         out_ref,         # (Tc, Bt, H)   bf16
                         hn_ref,          # (Bt, H)       f32
                         cn_ref,          # (Bt, H)       f32
                         xg_ref,          # (Tc*Bt, 4H)   bf16   VMEM scratch (input gates)
                         h_sc,            # (Bt, H)       f32    VMEM scratch (carried h)
                         c_sc):           # (Bt, H)       f32    VMEM scratch (carried c)
    Tc, Bt, H = out_ref.shape
    g = pl.program_id(0)
    c = pl.program_id(1)
    n_chunks = pl.num_programs(1)
    t0 = c * Tc
    tile_max = tmax_ref[g]

    @pl.when(c == 0)
    def _init():
        h_sc[...] = jnp.zeros_like(h_sc)
        c_sc[...] = jnp.zeros_like(c_sc)

    @pl.when(t0 < tile_max)
    def _run():
        # Hoisted, time-parallel input projection for this chunk: one big MXU matmul.
        xg_ref[...] = (
            jnp.dot(x_ref[0], wih_ref[...], preferred_element_type=jnp.float32)
            + b_ref[...]                                   # broadcast (1, 4H)
        ).astype(xg_ref.dtype)

        lens = lens_ref[...]                               # (Bt, 1) int32

        def step(s, carry):
            h, cc = carry                                  # f32 (Bt, H)
            base = pl.multiple_of(s * Bt, Bt)
            gates = xg_ref[pl.ds(base, Bt), :].astype(jnp.float32) + jnp.dot(
                h.astype(jnp.bfloat16), whh_ref[...],
                preferred_element_type=jnp.float32)        # (Bt, 4H) f32
            i_g = _sigmoid(gates[:, 0 * H:1 * H])
            f_g = _sigmoid(gates[:, 1 * H:2 * H])
            g_g = jnp.tanh(gates[:, 2 * H:3 * H])
            o_g = _sigmoid(gates[:, 3 * H:4 * H])
            c_new = f_g * cc + i_g * g_g
            h_new = o_g * jnp.tanh(c_new)
            valid = (t0 + s) < lens                        # (Bt, 1) bool
            # pad_packed_sequence: padded output positions are exactly zero
            out_ref[s] = jnp.where(valid, h_new, 0.0).astype(out_ref.dtype)
            # freeze state past each row's length (h_n/c_n = last-valid-step state)
            return jnp.where(valid, h_new, h), jnp.where(valid, c_new, cc)

        h_fin, c_fin = lax.fori_loop(0, Tc, step, (h_sc[...], c_sc[...]),
                                     unroll=max(1, min(4, Tc)))
        h_sc[...] = h_fin
        c_sc[...] = c_fin

    @pl.when(t0 >= tile_max)
    def _skip():
        # Whole chunk lies past every sequence in this tile: zero output, keep h/c.
        out_ref[...] = jnp.zeros_like(out_ref)

    @pl.when(c == n_chunks - 1)
    def _finalize():
        hn_ref[...] = h_sc[...]
        cn_ref[...] = c_sc[...]


def encoder_lstm_forward(input_seq, input_lengths, embedding_weights,
                         w_ih, w_hh, b_ih, b_hh, hidden=None, *,
                         batch_tile=None, time_chunk=32,
                         out_dtype=jnp.bfloat16, t_out=None, interpret=False):
    """Forward of EncoderLSTM (unidirectional, num_layers=1, batch_first=False).

    input_seq:         (T, B) int32 token ids (time-major, trailing padding)
    input_lengths:     (B,)   int32 valid lengths
    embedding_weights: (V, E) frozen embedding matrix
    w_ih: (4H, E), w_hh: (4H, H), b_ih/b_hh: (4H,)  -- PyTorch layout, gates [i, f, g, o]

    Returns (enc_out (T', B, H), (h_n (1, B, H), c_n (1, B, H))).
    T' = t_out if given (static int), else T.  Positions past each sequence's length are
    exact zeros (pad_packed_sequence padding semantics); the dynamic max-length
    truncation is left to the caller so this wrapper stays jittable (no host sync).
    """
    if hidden is not None:
        # TODO(synk): non-zero initial (h0, c0) is not wired into the kernel.
        raise NotImplementedError("only hidden=None (zero initial state) supported")

    T, B = input_seq.shape
    _, E = embedding_weights.shape
    H = w_hh.shape[1]
    assert E % 128 == 0 and H % 128 == 0, "pad E and H to multiples of 128 in the caller"

    # ---- tile sizes ----
    if batch_tile is None:
        if B <= 128:
            Bt = _round_up(B, 8)
        elif B <= 256:
            Bt = _round_up(_round_up(B, 8) // 2, 8)  # two tiles -> both v7x cores busy
        else:
            Bt = 128  # fills the MXU row dim; pass batch_tile=256 on v6e/v7x if desired
    else:
        Bt = int(batch_tile)
        assert Bt % 8 == 0, "batch_tile must be a multiple of 8"
    Bp = _round_up(B, Bt)
    G = Bp // Bt

    Tc = max(1, min(int(time_chunk), T))
    Tp = _round_up(T, Tc)
    C = Tp // Tc

    # ---- glue: frozen-embedding gather directly in bf16 (no full f32 (T,B,E) copy) ----
    x = jnp.take(embedding_weights.astype(jnp.bfloat16), input_seq, axis=0)  # (T, B, E)
    lens = input_lengths.astype(jnp.int32)
    if Tp != T or Bp != B:
        x = jnp.pad(x, ((0, Tp - T), (0, Bp - B), (0, 0)))
    if Bp != B:
        lens = jnp.pad(lens, (0, Bp - B))        # padded rows: length 0 -> zero output

    # regroup to (G, Tp*Bt, E): row (t*Bt + b_local) of tile g is x[t, g*Bt + b_local]
    x_tiles = x.reshape(Tp, G, Bt, E).transpose(1, 0, 2, 3).reshape(G, Tp * Bt, E)

    wih_t = w_ih.T.astype(jnp.bfloat16)                    # (E, 4H)
    whh_t = w_hh.T.astype(jnp.bfloat16)                    # (H, 4H)
    bias = (b_ih + b_hh).astype(jnp.float32)[None, :]      # (1, 4H)
    lens_col = lens[:, None]                               # (Bp, 1) int32
    tile_max = lens.reshape(G, Bt).max(axis=1)             # (G,) int32  (scalar prefetch)

    # ---- explicit scoped-VMEM budget sized to the real footprint ----
    out_itemsize = jnp.dtype(out_dtype).itemsize
    est = (2 * Tc * Bt * E * 2                 # x block, bf16, double-buffered
           + 2 * Tc * Bt * H * out_itemsize    # out block, double-buffered
           + 4 * Bt * H * 4                    # h_n / c_n blocks
           + 2 * (E + H) * 4 * H * 2           # W_ih + W_hh, bf16 (worst case 2 bufs)
           + 2 * 4 * H * 4                     # bias
           + 2 * Bt * 128 * 4                  # lengths column (lane padded)
           + Tc * Bt * 4 * H * 2               # xg scratch, bf16
           + 2 * Bt * H * 4)                   # h/c carry scratch
    vmem_limit = int(min(max(3 * est // 2 + (4 << 20), 32 << 20), 96 << 20))

    out_shapes = (jax.ShapeDtypeStruct((Tp, Bp, H), out_dtype),
                  jax.ShapeDtypeStruct((Bp, H), jnp.float32),
                  jax.ShapeDtypeStruct((Bp, H), jnp.float32))

    def _call(weight_buffers):
        wkw = ({} if weight_buffers is None
               else dict(pipeline_mode=pl.Buffered(weight_buffers)))
        grid_spec = pltpu.PrefetchScalarGridSpec(
            num_scalar_prefetch=1,             # per-tile max length -> SMEM
            grid=(G, C),
            in_specs=[
                pl.BlockSpec((1, Tc * Bt, E), lambda g, c, tm: (g, c, 0)),  # x chunk
                pl.BlockSpec((E, 4 * H), lambda g, c, tm: (0, 0), **wkw),   # W_ih
                pl.BlockSpec((H, 4 * H), lambda g, c, tm: (0, 0), **wkw),   # W_hh
                pl.BlockSpec((1, 4 * H), lambda g, c, tm: (0, 0), **wkw),   # bias
                pl.BlockSpec((Bt, 1), lambda g, c, tm: (g, 0)),             # lengths
            ],
            out_specs=[
                pl.BlockSpec((Tc, Bt, H), lambda g, c, tm: (c, g, 0)),
                pl.BlockSpec((Bt, H), lambda g, c, tm: (g, 0)),
                pl.BlockSpec((Bt, H), lambda g, c, tm: (g, 0)),
            ],
            scratch_shapes=[
                pltpu.VMEM((Tc * Bt, 4 * H), jnp.bfloat16),   # cached input gates
                pltpu.VMEM((Bt, H), jnp.float32),             # h carried across chunks
                pltpu.VMEM((Bt, H), jnp.float32),             # c carried across chunks
            ],
        )
        return pl.pallas_call(
            _encoder_lstm_kernel,
            out_shape=out_shapes,
            grid_spec=grid_spec,
            compiler_params=pltpu.CompilerParams(
                dimension_semantics=("parallel", "arbitrary"),
                vmem_limit_bytes=vmem_limit),
            interpret=interpret,
        )(tile_max, x_tiles, wih_t, whh_t, bias, lens_col)

    try:
        # Constant-index weight blocks are DMA'd once; single-buffer them to halve
        # their VMEM footprint.  Falls back if this Pallas build rejects Buffered(1).
        out, h_n, c_n = _call(1)
    except Exception:
        out, h_n, c_n = _call(None)

    t_keep = T if t_out is None else int(t_out)
    enc_out = out[:t_keep, :B]
    return enc_out, (h_n[:B][None], c_n[:B][None])


def _reference_forward(input_seq, input_lengths, embedding_weights, w_ih, w_hh, b_ih, b_hh):
    """Pure-JAX reference mirroring the kernel's bf16-operand / f32-accumulate math."""
    T, B = input_seq.shape
    H = w_hh.shape[1]
    x = jnp.take(embedding_weights.astype(jnp.bfloat16), input_seq, axis=0)
    wih_t = w_ih.T.astype(jnp.bfloat16)
    whh_t = w_hh.T.astype(jnp.bfloat16)
    bias = (b_ih + b_hh).astype(jnp.float32)
    h = jnp.zeros((B, H), jnp.float32)
    c = jnp.zeros((B, H), jnp.float32)
    outs = []
    for t in range(T):
        gates = (jnp.dot(x[t], wih_t, preferred_element_type=jnp.float32) + bias
                 + jnp.dot(h.astype(jnp.bfloat16), whh_t, preferred_element_type=jnp.float32))
        i = _sigmoid(gates[:, :H])
        f = _sigmoid(gates[:, H:2 * H])
        g = jnp.tanh(gates[:, 2 * H:3 * H])
        o = _sigmoid(gates[:, 3 * H:])
        c_new = f * c + i * g
        h_new = o * jnp.tanh(c_new)
        valid = (t < input_lengths)[:, None]
        outs.append(jnp.where(valid, h_new, 0.0))
        h = jnp.where(valid, h_new, h)
        c = jnp.where(valid, c_new, c)
    return jnp.stack(outs, axis=0), h, c


if __name__ == "__main__":
    key = jax.random.PRNGKey(0)
    V, E, H = 50, 128, 128              # vocab, embedding dim, hidden dim (128-aligned)
    ks = jax.random.split(key, 8)
    bound = 1.0 / (H ** 0.5)
    emb_w = 0.1 * jax.random.normal(ks[0], (V, E), jnp.float32)
    w_ih = jax.random.uniform(ks[1], (4 * H, E), jnp.float32, -bound, bound)
    w_hh = jax.random.uniform(ks[2], (4 * H, H), jnp.float32, -bound, bound)
    b_ih = jax.random.uniform(ks[3], (4 * H,), jnp.float32, -bound, bound)
    b_hh = jax.random.uniform(ks[4], (4 * H,), jnp.float32, -bound, bound)

    def check(ids, lengths, **kw):
        enc_out, (h_n, c_n) = encoder_lstm_forward(
            ids, lengths, emb_w, w_ih, w_hh, b_ih, b_hh, **kw)
        jax.block_until_ready((enc_out, h_n, c_n))
        T, B = ids.shape
        ref_out, ref_h, ref_c = _reference_forward(ids, lengths, emb_w, w_ih, w_hh, b_ih, b_hh)
        assert enc_out.shape == (T, B, H), enc_out.shape
        assert h_n.shape == c_n.shape == (1, B, H)
        err_o = float(jnp.max(jnp.abs(enc_out.astype(jnp.float32) - ref_out)))
        err_h = float(jnp.max(jnp.abs(h_n[0] - ref_h)))
        err_c = float(jnp.max(jnp.abs(c_n[0] - ref_c)))
        assert err_o < 3e-2, ("enc_out", err_o)
        assert err_h < 3e-2, ("h_n", err_h)
        assert err_c < 3e-2, ("c_n", err_c)

    # case 1: multi-chunk recurrence with trailing padding (max length == T)
    T, B = 10, 3
    ids = jax.random.randint(ks[5], (T, B), 0, V, jnp.int32)
    check(ids, jnp.array([10, 7, 4], jnp.int32), time_chunk=4)

    # case 2: whole tail chunks skipped via the per-tile max-length scalar prefetch
    check(ids, jnp.array([5, 3, 2], jnp.int32), time_chunk=4)

    # case 3: several batch tiles on the parallel grid axis + h/c carry across chunks
    T2, B2 = 12, 20
    ids2 = jax.random.randint(ks[6], (T2, B2), 0, V, jnp.int32)
    lens2 = jax.random.randint(ks[7], (B2,), 1, T2 + 1, jnp.int32)
    check(ids2, lens2, batch_tile=8, time_chunk=8)

    print("KERNEL_OK")
</pallas_src>

<mosaic_0001>
module attributes {stable_mosaic.version = 11 : i64} {
  func.func @_encoder_lstm_kernel(%arg0: i32, %arg1: i32, %arg2: memref<1xi32, #tpu.memory_space<smem>>, %arg3: memref<1x32x128xbf16, #tpu.memory_space<vmem>>, %arg4: memref<128x512xbf16, #tpu.memory_space<vmem>>, %arg5: memref<128x512xbf16, #tpu.memory_space<vmem>>, %arg6: memref<1x512xf32, #tpu.memory_space<vmem>>, %arg7: memref<8x1xi32, #tpu.memory_space<vmem>>, %arg8: memref<4x8x128xbf16, #tpu.memory_space<vmem>>, %arg9: memref<8x128xf32, #tpu.memory_space<vmem>>, %arg10: memref<8x128xf32, #tpu.memory_space<vmem>>, %arg11: memref<32x512xbf16, #tpu.memory_space<vmem>>, %arg12: memref<8x128xf32, #tpu.memory_space<vmem>>, %arg13: memref<8x128xf32, #tpu.memory_space<vmem>>) attributes {dimension_semantics = [#tpu.dimension_semantics<parallel>, #tpu.dimension_semantics<arbitrary>], iteration_bounds = array<i64: 1, 3>, scalar_prefetch = 1 : i64, scratch_operands = 3 : i64, tpu.core_type = #tpu.core_type<tc>, window_params = [{transform_indices = @transform_0, window_bounds = array<i64: 1, 32, 128>}, {pipeline_mode = #tpu.pipeline_mode<synchronous>, transform_indices = @transform_1, window_bounds = array<i64: 128, 512>}, {pipeline_mode = #tpu.pipeline_mode<synchronous>, transform_indices = @transform_2, window_bounds = array<i64: 128, 512>}, {pipeline_mode = #tpu.pipeline_mode<synchronous>, transform_indices = @transform_3, window_bounds = array<i64: 1, 512>}, {transform_indices = @transform_4, window_bounds = array<i64: 8, 1>}, {transform_indices = @transform_5, window_bounds = array<i64: 4, 8, 128>}, {transform_indices = @transform_6, window_bounds = array<i64: 8, 128>}, {transform_indices = @transform_7, window_bounds = array<i64: 8, 128>}]} {
    %c4_i32 = arith.constant 4 : i32
    %0 = arith.muli %arg1, %c4_i32 : i32
    %1 = arith.index_cast %arg0 : i32 to index
    %2 = memref.load %arg2[%1] : memref<1xi32, #tpu.memory_space<smem>>
    %c0_i32 = arith.constant 0 : i32
    %3 = arith.cmpi eq, %arg1, %c0_i32 : i32
    %4 = arith.extui %3 : i1 to i32
    %c0_i32_0 = arith.constant 0 : i32
    %5 = arith.cmpi ne, %4, %c0_i32_0 : i32
    scf.if %5 {
      %cst = arith.constant 0.000000e+00 : f32
      %15 = vector.broadcast %cst : f32 to vector<8x128xf32>
      %c0 = arith.constant 0 : index
      %c0_4 = arith.constant 0 : index
      %16 = vector.load %arg12[%c0, %c0_4] : memref<8x128xf32, #tpu.memory_space<vmem>>, vector<8x128xf32>
      tpu.vector_store %arg12[%c0, %c0_4], %15 {strides = array<i32>} : memref<8x128xf32, #tpu.memory_space<vmem>>, vector<8x128xf32>,
      %cst_5 = arith.constant 0.000000e+00 : f32
      %17 = vector.broadcast %cst_5 : f32 to vector<8x128xf32>
      %c0_6 = arith.constant 0 : index
      %c0_7 = arith.constant 0 : index
      %18 = vector.load %arg13[%c0_6, %c0_7] : memref<8x128xf32, #tpu.memory_space<vmem>>, vector<8x128xf32>
      tpu.vector_store %arg13[%c0_6, %c0_7], %17 {strides = array<i32>} : memref<8x128xf32, #tpu.memory_space<vmem>>, vector<8x128xf32>,
    } else {
    }
    %6 = arith.cmpi slt, %0, %2 : i32
    %7 = arith.extui %6 : i1 to i32
    %c0_i32_1 = arith.constant 0 : i32
    %8 = arith.cmpi ne, %7, %c0_i32_1 : i32
    scf.if %8 {
      %c0 = arith.constant 0 : index
      %c0_4 = arith.constant 0 : index
      %c0_5 = arith.constant 0 : index
      %15 = vector.load %arg3[%c0, %c0_4, %c0_5] : memref<1x32x128xbf16, #tpu.memory_space<vmem>>, vector<1x32x128xbf16>
      %16 = vector.shape_cast %15 : vector<1x32x128xbf16> to vector<32x128xbf16>
      %c0_6 = arith.constant 0 : index
      %c0_7 = arith.constant 0 : index
      %17 = vector.load %arg4[%c0_6, %c0_7] : memref<128x512xbf16, #tpu.memory_space<vmem>>, vector<128x512xbf16>
      %cst = arith.constant dense<0.000000e+00> : vector<32x512xf32>
      %18 = tpu.matmul %16, %17, %cst {dimension_numbers = #tpu.dot_dimension_numbers<[1], [0], [0], [1], [0, 0, 1, 1], [], []>} : vector<32x128xbf16>, vector<128x512xbf16>, vector<32x512xf32> -> vector<32x512xf32>
      %c0_8 = arith.constant 0 : index
      %c0_9 = arith.constant 0 : index
      %19 = vector.load %arg6[%c0_8, %c0_9] : memref<1x512xf32, #tpu.memory_space<vmem>>, vector<1x512xf32>
      %20 = vector.broadcast %19 : vector<1x512xf32> to vector<32x512xf32>
      %21 = arith.addf %18, %20 : vector<32x512xf32>
      %22 = arith.truncf %21 : vector<32x512xf32> to vector<32x512xbf16>
      %c0_10 = arith.constant 0 : index
      %c0_11 = arith.constant 0 : index
      %23 = vector.load %arg11[%c0_10, %c0_11] : memref<32x512xbf16, #tpu.memory_space<vmem>>, vector<32x512xbf16>
      tpu.vector_store %arg11[%c0_10, %c0_11], %22 {strides = array<i32>} : memref<32x512xbf16, #tpu.memory_space<vmem>>, vector<32x512xbf16>,
      %c0_12 = arith.constant 0 : index
      %c0_13 = arith.constant 0 : index
      %24 = vector.load %arg7[%c0_12, %c0_13] : memref<8x1xi32, #tpu.memory_space<vmem>>, vector<8x1xi32>
      %c0_14 = arith.constant 0 : index
      %c0_15 = arith.constant 0 : index
      %25 = vector.load %arg12[%c0_14, %c0_15] : memref<8x128xf32, #tpu.memory_space<vmem>>, vector<8x128xf32>
      %c0_16 = arith.constant 0 : index
      %c0_17 = arith.constant 0 : index
      %26 = vector.load %arg13[%c0_16, %c0_17] : memref<8x128xf32, #tpu.memory_space<vmem>>, vector<8x128xf32>
      %c0_i32_18 = arith.constant 0 : i32
      %c8_i32 = arith.constant 8 : i32
      %27 = arith.muli %c0_i32_18, %c8_i32 : i32
      %28 = tpu.assume_multiple %27, 8 : i32
      %29 = arith.index_cast %28 : i32 to index
      %c0_19 = arith.constant 0 : index
      %30 = vector.load %arg11[%29, %c0_19] : memref<32x512xbf16, #tpu.memory_space<vmem>>, vector<8x512xbf16>
      %31 = arith.extf %30 : vector<8x512xbf16> to vector<8x512xf32>
      %32 = arith.truncf %25 : vector<8x128xf32> to vector<8x128xbf16>
      %c0_20 = arith.constant 0 : index
      %c0_21 = arith.constant 0 : index
      %33 = vector.load %arg5[%c0_20, %c0_21] : memref<128x512xbf16, #tpu.memory_space<vmem>>, vector<128x512xbf16>
      %cst_22 = arith.constant dense<0.000000e+00> : vector<8x512xf32>
      %34 = tpu.matmul %32, %33, %cst_22 {dimension_numbers = #tpu.dot_dimension_numbers<[1], [0], [0], [1], [0, 0, 1, 1], [], []>} : vector<8x128xbf16>, vector<128x512xbf16>, vector<8x512xf32> -> vector<8x512xf32>
      %35 = arith.addf %31, %34 : vector<8x512xf32>
      %36 = vector.extract_strided_slice %35 {offsets = [0, 0], sizes = [8, 128], strides = [1, 1]} : vector<8x512xf32> to vector<8x128xf32>
      %cst_23 = arith.constant 5.000000e-01 : f32
      %37 = vector.broadcast %cst_23 : f32 to vector<8x128xf32>
      %38 = arith.mulf %37, %36 : vector<8x128xf32>
      %39 = math.tanh %38 : vector<8x128xf32>
      %cst_24 = arith.constant 5.000000e-01 : f32
      %40 = vector.broadcast %cst_24 : f32 to vector<8x128xf32>
      %41 = arith.mulf %40, %39 : vector<8x128xf32>
      %cst_25 = arith.constant 5.000000e-01 : f32
      %42 = vector.broadcast %cst_25 : f32 to vector<8x128xf32>
      %43 = arith.addf %41, %42 : vector<8x128xf32>
      %44 = vector.extract_strided_slice %35 {offsets = [0, 128], sizes = [8, 128], strides = [1, 1]} : vector<8x512xf32> to vector<8x128xf32>
      %cst_26 = arith.constant 5.000000e-01 : f32
      %45 = vector.broadcast %cst_26 : f32 to vector<8x128xf32>
      %46 = arith.mulf %45, %44 : vector<8x128xf32>
      %47 = math.tanh %46 : vector<8x128xf32>
      %cst_27 = arith.constant 5.000000e-01 : f32
      %48 = vector.broadcast %cst_27 : f32 to vector<8x128xf32>
      %49 = arith.mulf %48, %47 : vector<8x128xf32>
      %cst_28 = arith.constant 5.000000e-01 : f32
      %50 = vector.broadcast %cst_28 : f32 to vector<8x128xf32>
      %51 = arith.addf %49, %50 : vector<8x128xf32>
      %52 = vector.extract_strided_slice %35 {offsets = [0, 256], sizes = [8, 128], strides = [1, 1]} : vector<8x512xf32> to vector<8x128xf32>
      %53 = math.tanh %52 : vector<8x128xf32>
      %54 = vector.extract_strided_slice %35 {offsets = [0, 384], sizes = [8, 128], strides = [1, 1]} : vector<8x512xf32> to vector<8x128xf32>
      %cst_29 = arith.constant 5.000000e-01 : f32
      %55 = vector.broadcast %cst_29 : f32 to vector<8x128xf32>
      %56 = arith.mulf %55, %54 : vector<8x128xf32>
      %57 = math.tanh %56 : vector<8x128xf32>
      %cst_30 = arith.constant 5.000000e-01 : f32
      %58 = vector.broadcast %cst_30 : f32 to vector<8x128xf32>
      %59 = arith.mulf %58, %57 : vector<8x128xf32>
      %cst_31 = arith.constant 5.000000e-01 : f32
      %60 = vector.broadcast %cst_31 : f32 to vector<8x128xf32>
      %61 = arith.addf %59, %60 : vector<8x128xf32>
      %62 = arith.mulf %51, %26 : vector<8x128xf32>
      %63 = arith.mulf %43, %53 : vector<8x128xf32>
      %64 = arith.addf %62, %63 : vector<8x128xf32>
      %65 = math.tanh %64 : vector<8x128xf32>
      %66 = arith.mulf %61, %65 : vector<8x128xf32>
      %67 = arith.addi %0, %c0_i32_18 : i32
      %68 = vector.broadcast %67 : i32 to vector<8x1xi32>
      %69 = arith.cmpi slt, %68, %24 : vector<8x1xi32>
      %cst_32 = arith.constant 0.000000e+00 : f32
      %70 = vector.shape_cast %69 : vector<8x1xi1> to vector<8x1xi1>
      %71 = vector.broadcast %70 : vector<8x1xi1> to vector<8x128xi1>
      %72 = vector.broadcast %cst_32 : f32 to vector<8x128xf32>
      %73 = arith.select %71, %66, %72 : vector<8x128xi1>, vector<8x128xf32>
      %74 = arith.truncf %73 : vector<8x128xf32> to vector<8x128xbf16>
      %75 = arith.index_cast %c0_i32_18 : i32 to index
      %c0_33 = arith.constant 0 : index
      %c0_34 = arith.constant 0 : index
      %76 = vector.load %arg8[%75, %c0_33, %c0_34] : memref<4x8x128xbf16, #tpu.memory_space<vmem>>, vector<1x8x128xbf16>
      %77 = vector.shape_cast %76 : vector<1x8x128xbf16> to vector<8x128xbf16>
      %78 = vector.shape_cast %74 : vector<8x128xbf16> to vector<1x8x128xbf16>
      tpu.vector_store %arg8[%75, %c0_33, %c0_34], %78 {strides = array<i32>} : memref<4x8x128xbf16, #tpu.memory_space<vmem>>, vector<1x8x128xbf16>,
      %79 = vector.shape_cast %69 : vector<8x1xi1> to vector<8x1xi1>
      %80 = vector.broadcast %79 : vector<8x1xi1> to vector<8x128xi1>
      %81 = arith.select %80, %66, %25 : vector<8x128xi1>, vector<8x128xf32>
      %82 = vector.shape_cast %69 : vector<8x1xi1> to vector<8x1xi1>
      %83 = vector.broadcast %82 : vector<8x1xi1> to vector<8x128xi1>
      %84 = arith.select %83, %64, %26 : vector<8x128xi1>, vector<8x128xf32>
      %c1_i32 = arith.constant 1 : i32
      %c8_i32_35 = arith.constant 8 : i32
      %85 = arith.muli %c1_i32, %c8_i32_35 : i32
      %86 = tpu.assume_multiple %85, 8 : i32
      %87 = arith.index_cast %86 : i32 to index
      %c0_36 = arith.constant 0 : index
      %88 = vector.load %arg11[%87, %c0_36] : memref<32x512xbf16, #tpu.memory_space<vmem>>, vector<8x512xbf16>
      %89 = arith.extf %88 : vector<8x512xbf16> to vector<8x512xf32>
      %90 = arith.truncf %81 : vector<8x128xf32> to vector<8x128xbf16>
      %c0_37 = arith.constant 0 : index
      %c0_38 = arith.constant 0 : index
      %91 = vector.load %arg5[%c0_37, %c0_38] : memref<128x512xbf16, #tpu.memory_space<vmem>>, vector<128x512xbf16>
      %cst_39 = arith.constant dense<0.000000e+00> : vector<8x512xf32>
      %92 = tpu.matmul %90, %91, %cst_39 {dimension_numbers = #tpu.dot_dimension_numbers<[1], [0], [0], [1], [0, 0, 1, 1], [], []>} : vector<8x128xbf16>, vector<128x512xbf16>, vector<8x512xf32> -> vector<8x512xf32>
      %93 = arith.addf %89, %92 : vector<8x512xf32>
      %94 = vector.extract_strided_slice %93 {offsets = [0, 0], sizes = [8, 128], strides = [1, 1]} : vector<8x512xf32> to vector<8x128xf32>
      %cst_40 = arith.constant 5.000000e-01 : f32
      %95 = vector.broadcast %cst_40 : f32 to vector<8x128xf32>
      %96 = arith.mulf %95, %94 : vector<8x128xf32>
      %97 = math.tanh %96 : vector<8x128xf32>
      %cst_41 = arith.constant 5.000000e-01 : f32
      %98 = vector.broadcast %cst_41 : f32 to vector<8x128xf32>
      %99 = arith.mulf %98, %97 : vector<8x128xf32>
      %cst_42 = arith.constant 5.000000e-01 : f32
      %100 = vector.broadcast %cst_42 : f32 to vector<8x128xf32>
      %101 = arith.addf %99, %100 : vector<8x128xf32>
      %102 = vector.extract_strided_slice %93 {offsets = [0, 128], sizes = [8, 128], strides = [1, 1]} : vector<8x512xf32> to vector<8x128xf32>
      %cst_43 = arith.constant 5.000000e-01 : f32
      %103 = vector.broadcast %cst_43 : f32 to vector<8x128xf32>
      %104 = arith.mulf %103, %102 : vector<8x128xf32>
      %105 = math.tanh %104 : vector<8x128xf32>
      %cst_44 = arith.constant 5.000000e-01 : f32
      %106 = vector.broadcast %cst_44 : f32 to vector<8x128xf32>
      %107 = arith.mulf %106, %105 : vector<8x128xf32>
      %cst_45 = arith.constant 5.000000e-01 : f32
      %108 = vector.broadcast %cst_45 : f32 to vector<8x128xf32>
      %109 = arith.addf %107, %108 : vector<8x128xf32>
      %110 = vector.extract_strided_slice %93 {offsets = [0, 256], sizes = [8, 128], strides = [1, 1]} : vector<8x512xf32> to vector<8x128xf32>
      %111 = math.tanh %110 : vector<8x128xf32>
      %112 = vector.extract_strided_slice %93 {offsets = [0, 384], sizes = [8, 128], strides = [1, 1]} : vector<8x512xf32> to vector<8x128xf32>
      %cst_46 = arith.constant 5.000000e-01 : f32
      %113 = vector.broadcast %cst_46 : f32 to vector<8x128xf32>
      %114 = arith.mulf %113, %112 : vector<8x128xf32>
      %115 = math.tanh %114 : vector<8x128xf32>
      %cst_47 = arith.constant 5.000000e-01 : f32
      %116 = vector.broadcast %cst_47 : f32 to vector<8x128xf32>
      %117 = arith.mulf %116, %115 : vector<8x128xf32>
      %cst_48 = arith.constant 5.000000e-01 : f32
      %118 = vector.broadcast %cst_48 : f32 to vector<8x128xf32>
      %119 = arith.addf %117, %118 : vector<8x128xf32>
      %120 = arith.mulf %109, %84 : vector<8x128xf32>
      %121 = arith.mulf %101, %111 : vector<8x128xf32>
      %122 = arith.addf %120, %121 : vector<8x128xf32>
      %123 = math.tanh %122 : vector<8x128xf32>
      %124 = arith.mulf %119, %123 : vector<8x128xf32>
      %125 = arith.addi %0, %c1_i32 : i32
      %126 = vector.broadcast %125 : i32 to vector<8x1xi32>
      %127 = arith.cmpi slt, %126, %24 : vector<8x1xi32>
      %cst_49 = arith.constant 0.000000e+00 : f32
      %128 = vector.shape_cast %127 : vector<8x1xi1> to vector<8x1xi1>
      %129 = vector.broadcast %128 : vector<8x1xi1> to vector<8x128xi1>
      %130 = vector.broadcast %cst_49 : f32 to vector<8x128xf32>
      %131 = arith.select %129, %124, %130 : vector<8x128xi1>, vector<8x128xf32>
      %132 = arith.truncf %131 : vector<8x128xf32> to vector<8x128xbf16>
      %133 = arith.index_cast %c1_i32 : i32 to index
      %c0_50 = arith.constant 0 : index
      %c0_51 = arith.constant 0 : index
      %134 = vector.load %arg8[%133, %c0_50, %c0_51] : memref<4x8x128xbf16, #tpu.memory_space<vmem>>, vector<1x8x128xbf16>
      %135 = vector.shape_cast %134 : vector<1x8x128xbf16> to vector<8x128xbf16>
      %136 = vector.shape_cast %132 : vector<8x128xbf16> to vector<1x8x128xbf16>
      tpu.vector_store %arg8[%133, %c0_50, %c0_51], %136 {strides = array<i32>} : memref<4x8x128xbf16, #tpu.memory_space<vmem>>, vector<1x8x128xbf16>,
      %137 = vector.shape_cast %127 : vector<8x1xi1> to vector<8x1xi1>
      %138 = vector.broadcast %137 : vector<8x1xi1> to vector<8x128xi1>
      %139 = arith.select %138, %124, %81 : vector<8x128xi1>, vector<8x128xf32>
      %140 = vector.shape_cast %127 : vector<8x1xi1> to vector<8x1xi1>
      %141 = vector.broadcast %140 : vector<8x1xi1> to vector<8x128xi1>
      %142 = arith.select %141, %122, %84 : vector<8x128xi1>, vector<8x128xf32>
      %c2_i32_52 = arith.constant 2 : i32
      %c8_i32_53 = arith.constant 8 : i32
      %143 = arith.muli %c2_i32_52, %c8_i32_53 : i32
      %144 = tpu.assume_multiple %143, 8 : i32
      %145 = arith.index_cast %144 : i32 to index
      %c0_54 = arith.constant 0 : index
      %146 = vector.load %arg11[%145, %c0_54] : memref<32x512xbf16, #tpu.memory_space<vmem>>, vector<8x512xbf16>
      %147 = arith.extf %146 : vector<8x512xbf16> to vector<8x512xf32>
      %148 = arith.truncf %139 : vector<8x128xf32> to vector<8x128xbf16>
      %c0_55 = arith.constant 0 : index
      %c0_56 = arith.constant 0 : index
      %149 = vector.load %arg5[%c0_55, %c0_56] : memref<128x512xbf16, #tpu.memory_space<vmem>>, vector<128x512xbf16>
      %cst_57 = arith.constant dense<0.000000e+00> : vector<8x512xf32>
      %150 = tpu.matmul %148, %149, %cst_57 {dimension_numbers = #tpu.dot_dimension_numbers<[1], [0], [0], [1], [0, 0, 1, 1], [], []>} : vector<8x128xbf16>, vector<128x512xbf16>, vector<8x512xf32> -> vector<8x512xf32>
      %151 = arith.addf %147, %150 : vector<8x512xf32>
      %152 = vector.extract_strided_slice %151 {offsets = [0, 0], sizes = [8, 128], strides = [1, 1]} : vector<8x512xf32> to vector<8x128xf32>
      %cst_58 = arith.constant 5.000000e-01 : f32
      %153 = vector.broadcast %cst_58 : f32 to vector<8x128xf32>
      %154 = arith.mulf %153, %152 : vector<8x128xf32>
      %155 = math.tanh %154 : vector<8x128xf32>
      %cst_59 = arith.constant 5.000000e-01 : f32
      %156 = vector.broadcast %cst_59 : f32 to vector<8x128xf32>
      %157 = arith.mulf %156, %155 : vector<8x128xf32>
      %cst_60 = arith.constant 5.000000e-01 : f32
      %158 = vector.broadcast %cst_60 : f32 to vector<8x128xf32>
      %159 = arith.addf %157, %158 : vector<8x128xf32>
      %160 = vector.extract_strided_slice %151 {offsets = [0, 128], sizes = [8, 128], strides = [1, 1]} : vector<8x512xf32> to vector<8x128xf32>
      %cst_61 = arith.constant 5.000000e-01 : f32
      %161 = vector.broadcast %cst_61 : f32 to vector<8x128xf32>
      %162 = arith.mulf %161, %160 : vector<8x128xf32>
      %163 = math.tanh %162 : vector<8x128xf32>
      %cst_62 = arith.constant 5.000000e-01 : f32
      %164 = vector.broadcast %cst_62 : f32 to vector<8x128xf32>
      %165 = arith.mulf %164, %163 : vector<8x128xf32>
      %cst_63 = arith.constant 5.000000e-01 : f32
      %166 = vector.broadcast %cst_63 : f32 to vector<8x128xf32>
      %167 = arith.addf %165, %166 : vector<8x128xf32>
      %168 = vector.extract_strided_slice %151 {offsets = [0, 256], sizes = [8, 128], strides = [1, 1]} : vector<8x512xf32> to vector<8x128xf32>
      %169 = math.tanh %168 : vector<8x128xf32>
      %170 = vector.extract_strided_slice %151 {offsets = [0, 384], sizes = [8, 128], strides = [1, 1]} : vector<8x512xf32> to vector<8x128xf32>
      %cst_64 = arith.constant 5.000000e-01 : f32
      %171 = vector.broadcast %cst_64 : f32 to vector<8x128xf32>
      %172 = arith.mulf %171, %170 : vector<8x128xf32>
      %173 = math.tanh %172 : vector<8x128xf32>
      %cst_65 = arith.constant 5.000000e-01 : f32
      %174 = vector.broadcast %cst_65 : f32 to vector<8x128xf32>
      %175 = arith.mulf %174, %173 : vector<8x128xf32>
      %cst_66 = arith.constant 5.000000e-01 : f32
      %176 = vector.broadcast %cst_66 : f32 to vector<8x128xf32>
      %177 = arith.addf %175, %176 : vector<8x128xf32>
      %178 = arith.mulf %167, %142 : vector<8x128xf32>
      %179 = arith.mulf %159, %169 : vector<8x128xf32>
      %180 = arith.addf %178, %179 : vector<8x128xf32>
      %181 = math.tanh %180 : vector<8x128xf32>
      %182 = arith.mulf %177, %181 : vector<8x128xf32>
      %183 = arith.addi %0, %c2_i32_52 : i32
      %184 = vector.broadcast %183 : i32 to vector<8x1xi32>
      %185 = arith.cmpi slt, %184, %24 : vector<8x1xi32>
      %cst_67 = arith.constant 0.000000e+00 : f32
      %186 = vector.shape_cast %185 : vector<8x1xi1> to vector<8x1xi1>
      %187 = vector.broadcast %186 : vector<8x1xi1> to vector<8x128xi1>
      %188 = vector.broadcast %cst_67 : f32 to vector<8x128xf32>
      %189 = arith.select %187, %182, %188 : vector<8x128xi1>, vector<8x128xf32>
      %190 = arith.truncf %189 : vector<8x128xf32> to vector<8x128xbf16>
      %191 = arith.index_cast %c2_i32_52 : i32 to index
      %c0_68 = arith.constant 0 : index
      %c0_69 = arith.constant 0 : index
      %192 = vector.load %arg8[%191, %c0_68, %c0_69] : memref<4x8x128xbf16, #tpu.memory_space<vmem>>, vector<1x8x128xbf16>
      %193 = vector.shape_cast %192 : vector<1x8x128xbf16> to vector<8x128xbf16>
      %194 = vector.shape_cast %190 : vector<8x128xbf16> to vector<1x8x128xbf16>
      tpu.vector_store %arg8[%191, %c0_68, %c0_69], %194 {strides = array<i32>} : memref<4x8x128xbf16, #tpu.memory_space<vmem>>, vector<1x8x128xbf16>,
      %195 = vector.shape_cast %185 : vector<8x1xi1> to vector<8x1xi1>
      %196 = vector.broadcast %195 : vector<8x1xi1> to vector<8x128xi1>
      %197 = arith.select %196, %182, %139 : vector<8x128xi1>, vector<8x128xf32>
      %198 = vector.shape_cast %185 : vector<8x1xi1> to vector<8x1xi1>
      %199 = vector.broadcast %198 : vector<8x1xi1> to vector<8x128xi1>
      %200 = arith.select %199, %180, %142 : vector<8x128xi1>, vector<8x128xf32>
      %c3_i32 = arith.constant 3 : i32
      %c8_i32_70 = arith.constant 8 : i32
      %201 = arith.muli %c3_i32, %c8_i32_70 : i32
      %202 = tpu.assume_multiple %201, 8 : i32
      %203 = arith.index_cast %202 : i32 to index
      %c0_71 = arith.constant 0 : index
      %204 = vector.load %arg11[%203, %c0_71] : memref<32x512xbf16, #tpu.memory_space<vmem>>, vector<8x512xbf16>
      %205 = arith.extf %204 : vector<8x512xbf16> to vector<8x512xf32>
      %206 = arith.truncf %197 : vector<8x128xf32> to vector<8x128xbf16>
      %c0_72 = arith.constant 0 : index
      %c0_73 = arith.constant 0 : index
      %207 = vector.load %arg5[%c0_72, %c0_73] : memref<128x512xbf16, #tpu.memory_space<vmem>>, vector<128x512xbf16>
      %cst_74 = arith.constant dense<0.000000e+00> : vector<8x512xf32>
      %208 = tpu.matmul %206, %207, %cst_74 {dimension_numbers = #tpu.dot_dimension_numbers<[1], [0], [0], [1], [0, 0, 1, 1], [], []>} : vector<8x128xbf16>, vector<128x512xbf16>, vector<8x512xf32> -> vector<8x512xf32>
      %209 = arith.addf %205, %208 : vector<8x512xf32>
      %210 = vector.extract_strided_slice %209 {offsets = [0, 0], sizes = [8, 128], strides = [1, 1]} : vector<8x512xf32> to vector<8x128xf32>
      %cst_75 = arith.constant 5.000000e-01 : f32
      %211 = vector.broadcast %cst_75 : f32 to vector<8x128xf32>
      %212 = arith.mulf %211, %210 : vector<8x128xf32>
      %213 = math.tanh %212 : vector<8x128xf32>
      %cst_76 = arith.constant 5.000000e-01 : f32
      %214 = vector.broadcast %cst_76 : f32 to vector<8x128xf32>
      %215 = arith.mulf %214, %213 : vector<8x128xf32>
      %cst_77 = arith.constant 5.000000e-01 : f32
      %216 = vector.broadcast %cst_77 : f32 to vector<8x128xf32>
      %217 = arith.addf %215, %216 : vector<8x128xf32>
      %218 = vector.extract_strided_slice %209 {offsets = [0, 128], sizes = [8, 128], strides = [1, 1]} : vector<8x512xf32> to vector<8x128xf32>
      %cst_78 = arith.constant 5.000000e-01 : f32
      %219 = vector.broadcast %cst_78 : f32 to vector<8x128xf32>
      %220 = arith.mulf %219, %218 : vector<8x128xf32>
      %221 = math.tanh %220 : vector<8x128xf32>
      %cst_79 = arith.constant 5.000000e-01 : f32
      %222 = vector.broadcast %cst_79 : f32 to vector<8x128xf32>
      %223 = arith.mulf %222, %221 : vector<8x128xf32>
      %cst_80 = arith.constant 5.000000e-01 : f32
      %224 = vector.broadcast %cst_80 : f32 to vector<8x128xf32>
      %225 = arith.addf %223, %224 : vector<8x128xf32>
      %226 = vector.extract_strided_slice %209 {offsets = [0, 256], sizes = [8, 128], strides = [1, 1]} : vector<8x512xf32> to vector<8x128xf32>
      %227 = math.tanh %226 : vector<8x128xf32>
      %228 = vector.extract_strided_slice %209 {offsets = [0, 384], sizes = [8, 128], strides = [1, 1]} : vector<8x512xf32> to vector<8x128xf32>
      %cst_81 = arith.constant 5.000000e-01 : f32
      %229 = vector.broadcast %cst_81 : f32 to vector<8x128xf32>
      %230 = arith.mulf %229, %228 : vector<8x128xf32>
      %231 = math.tanh %230 : vector<8x128xf32>
      %cst_82 = arith.constant 5.000000e-01 : f32
      %232 = vector.broadcast %cst_82 : f32 to vector<8x128xf32>
      %233 = arith.mulf %232, %231 : vector<8x128xf32>
      %cst_83 = arith.constant 5.000000e-01 : f32
      %234 = vector.broadcast %cst_83 : f32 to vector<8x128xf32>
      %235 = arith.addf %233, %234 : vector<8x128xf32>
      %236 = arith.mulf %225, %200 : vector<8x128xf32>
      %237 = arith.mulf %217, %227 : vector<8x128xf32>
      %238 = arith.addf %236, %237 : vector<8x128xf32>
      %239 = math.tanh %238 : vector<8x128xf32>
      %240 = arith.mulf %235, %239 : vector<8x128xf32>
      %241 = arith.addi %0, %c3_i32 : i32
      %242 = vector.broadcast %241 : i32 to vector<8x1xi32>
      %243 = arith.cmpi slt, %242, %24 : vector<8x1xi32>
      %cst_84 = arith.constant 0.000000e+00 : f32
      %244 = vector.shape_cast %243 : vector<8x1xi1> to vector<8x1xi1>
      %245 = vector.broadcast %244 : vector<8x1xi1> to vector<8x128xi1>
      %246 = vector.broadcast %cst_84 : f32 to vector<8x128xf32>
      %247 = arith.select %245, %240, %246 : vector<8x128xi1>, vector<8x128xf32>
      %248 = arith.truncf %247 : vector<8x128xf32> to vector<8x128xbf16>
      %249 = arith.index_cast %c3_i32 : i32 to index
      %c0_85 = arith.constant 0 : index
      %c0_86 = arith.constant 0 : index
      %250 = vector.load %arg8[%249, %c0_85, %c0_86] : memref<4x8x128xbf16, #tpu.memory_space<vmem>>, vector<1x8x128xbf16>
      %251 = vector.shape_cast %250 : vector<1x8x128xbf16> to vector<8x128xbf16>
      %252 = vector.shape_cast %248 : vector<8x128xbf16> to vector<1x8x128xbf16>
      tpu.vector_store %arg8[%249, %c0_85, %c0_86], %252 {strides = array<i32>} : memref<4x8x128xbf16, #tpu.memory_space<vmem>>, vector<1x8x128xbf16>,
      %253 = vector.shape_cast %243 : vector<8x1xi1> to vector<8x1xi1>
      %254 = vector.broadcast %253 : vector<8x1xi1> to vector<8x128xi1>
      %255 = arith.select %254, %240, %197 : vector<8x128xi1>, vector<8x128xf32>
      %256 = vector.shape_cast %243 : vector<8x1xi1> to vector<8x1xi1>
      %257 = vector.broadcast %256 : vector<8x1xi1> to vector<8x128xi1>
      %258 = arith.select %257, %238, %200 : vector<8x128xi1>, vector<8x128xf32>
      %c4_i32_87 = arith.constant 4 : i32
      %c0_88 = arith.constant 0 : index
      %c0_89 = arith.constant 0 : index
      %259 = vector.load %arg12[%c0_88, %c0_89] : memref<8x128xf32, #tpu.memory_space<vmem>>, vector<8x128xf32>
      tpu.vector_store %arg12[%c0_88, %c0_89], %255 {strides = array<i32>} : memref<8x128xf32, #tpu.memory_space<vmem>>, vector<8x128xf32>,
      %c0_90 = arith.constant 0 : index
      %c0_91 = arith.constant 0 : index
      %260 = vector.load %arg13[%c0_90, %c0_91] : memref<8x128xf32, #tpu.memory_space<vmem>>, vector<8x128xf32>
      tpu.vector_store %arg13[%c0_90, %c0_91], %258 {strides = array<i32>} : memref<8x128xf32, #tpu.memory_space<vmem>>, vector<8x128xf32>,
    } else {
    }
    %9 = arith.cmpi sge, %0, %2 : i32
    %10 = arith.extui %9 : i1 to i32
    %c0_i32_2 = arith.constant 0 : i32
    %11 = arith.cmpi ne, %10, %c0_i32_2 : i32
    scf.if %11 {
      %cst = arith.constant 0.000000e+00 : bf16
      %15 = vector.broadcast %cst : bf16 to vector<4x8x128xbf16>
      %c0 = arith.constant 0 : index
      %c0_4 = arith.constant 0 : index
      %c0_5 = arith.constant 0 : index
      %16 = vector.load %arg8[%c0, %c0_4, %c0_5] : memref<4x8x128xbf16, #tpu.memory_space<vmem>>, vector<4x8x128xbf16>
      tpu.vector_store %arg8[%c0, %c0_4, %c0_5], %15 {strides = array<i32>} : memref<4x8x128xbf16, #tpu.memory_space<vmem>>, vector<4x8x128xbf16>,
    } else {
    }
    %c2_i32 = arith.constant 2 : i32
    %12 = arith.cmpi eq, %arg1, %c2_i32 : i32
    %13 = arith.extui %12 : i1 to i32
    %c0_i32_3 = arith.constant 0 : i32
    %14 = arith.cmpi ne, %13, %c0_i32_3 : i32
    scf.if %14 {
      %c0 = arith.constant 0 : index
      %c0_4 = arith.constant 0 : index
      %15 = vector.load %arg12[%c0, %c0_4] : memref<8x128xf32, #tpu.memory_space<vmem>>, vector<8x128xf32>
      %c0_5 = arith.constant 0 : index
      %c0_6 = arith.constant 0 : index
      %16 = vector.load %arg9[%c0_5, %c0_6] : memref<8x128xf32, #tpu.memory_space<vmem>>, vector<8x128xf32>
      tpu.vector_store %arg9[%c0_5, %c0_6], %15 {strides = array<i32>} : memref<8x128xf32, #tpu.memory_space<vmem>>, vector<8x128xf32>,
      %c0_7 = arith.constant 0 : index
      %c0_8 = arith.constant 0 : index
      %17 = vector.load %arg13[%c0_7, %c0_8] : memref<8x128xf32, #tpu.memory_space<vmem>>, vector<8x128xf32>
      %c0_9 = arith.constant 0 : index
      %c0_10 = arith.constant 0 : index
      %18 = vector.load %arg10[%c0_9, %c0_10] : memref<8x128xf32, #tpu.memory_space<vmem>>, vector<8x128xf32>
      tpu.vector_store %arg10[%c0_9, %c0_10], %17 {strides = array<i32>} : memref<8x128xf32, #tpu.memory_space<vmem>>, vector<8x128xf32>,
    } else {
    }
    return
  }
  func.func @transform_0(%arg0: i32, %arg1: i32, %arg2: memref<1xi32, #tpu.memory_space<smem>>) -> (i32, i32, i32) {
    %c0_i32 = arith.constant 0 : i32
    %c0_i32_0 = arith.constant 0 : i32
    return %arg0, %arg1, %c0_i32 : i32, i32, i32
  }
  func.func @transform_1(%arg0: i32, %arg1: i32, %arg2: memref<1xi32, #tpu.memory_space<smem>>) -> (i32, i32) {
    %c0_i32 = arith.constant 0 : i32
    %c0_i32_0 = arith.constant 0 : i32
    %c0_i32_1 = arith.constant 0 : i32
    return %c0_i32, %c0_i32_0 : i32, i32
  }
  func.func @transform_2(%arg0: i32, %arg1: i32, %arg2: memref<1xi32, #tpu.memory_space<smem>>) -> (i32, i32) {
    %c0_i32 = arith.constant 0 : i32
    %c0_i32_0 = arith.constant 0 : i32
    %c0_i32_1 = arith.constant 0 : i32
    return %c0_i32, %c0_i32_0 : i32, i32
  }
  func.func @transform_3(%arg0: i32, %arg1: i32, %arg2: memref<1xi32, #tpu.memory_space<smem>>) -> (i32, i32) {
    %c0_i32 = arith.constant 0 : i32
    %c0_i32_0 = arith.constant 0 : i32
    %c0_i32_1 = arith.constant 0 : i32
    return %c0_i32, %c0_i32_0 : i32, i32
  }
  func.func @transform_4(%arg0: i32, %arg1: i32, %arg2: memref<1xi32, #tpu.memory_space<smem>>) -> (i32, i32) {
    %c0_i32 = arith.constant 0 : i32
    %c0_i32_0 = arith.constant 0 : i32
    return %arg0, %c0_i32 : i32, i32
  }
  func.func @transform_5(%arg0: i32, %arg1: i32, %arg2: memref<1xi32, #tpu.memory_space<smem>>) -> (i32, i32, i32) {
    %c0_i32 = arith.constant 0 : i32
    %c0_i32_0 = arith.constant 0 : i32
    return %arg1, %arg0, %c0_i32 : i32, i32, i32
  }
  func.func @transform_6(%arg0: i32, %arg1: i32, %arg2: memref<1xi32, #tpu.memory_space<smem>>) -> (i32, i32) {
    %c0_i32 = arith.constant 0 : i32
    %c0_i32_0 = arith.constant 0 : i32
    return %arg0, %c0_i32 : i32, i32
  }
  func.func @transform_7(%arg0: i32, %arg1: i32, %arg2: memref<1xi32, #tpu.memory_space<smem>>) -> (i32, i32) {
    %c0_i32 = arith.constant 0 : i32
    %c0_i32_0 = arith.constant 0 : i32
    return %arg0, %c0_i32 : i32, i32
  }
}

module attributes {stable_mosaic.version = 11 : i64} {
  func.func @_encoder_lstm_kernel(%arg0: i32, %arg1: i32, %arg2: memref<1xi32, #tpu.memory_space<smem>>, %arg3: memref<1x32x128xbf16, #tpu.memory_space<vmem>>, %arg4: memref<128x512xbf16, #tpu.memory_space<vmem>>, %arg5: memref<128x512xbf16, #tpu.memory_space<vmem>>, %arg6: memref<1x512xf32, #tpu.memory_space<vmem>>, %arg7: memref<8x1xi32, #tpu.memory_space<vmem>>, %arg8: memref<4x8x128xbf16, #tpu.memory_space<vmem>>, %arg9: memref<8x128xf32, #tpu.memory_space<vmem>>, %arg10: memref<8x128xf32, #tpu.memory_space<vmem>>, %arg11: memref<32x512xbf16, #tpu.memory_space<vmem>>, %arg12: memref<8x128xf32, #tpu.memory_space<vmem>>, %arg13: memref<8x128xf32, #tpu.memory_space<vmem>>) attributes {dimension_semantics = [#tpu.dimension_semantics<parallel>, #tpu.dimension_semantics<arbitrary>], iteration_bounds = array<i64: 1, 3>, scalar_prefetch = 1 : i64, scratch_operands = 3 : i64, tpu.core_type = #tpu.core_type<tc>, window_params = [{transform_indices = @transform_0, window_bounds = array<i64: 1, 32, 128>}, {pipeline_mode = #tpu.pipeline_mode<synchronous>, transform_indices = @transform_1, window_bounds = array<i64: 128, 512>}, {pipeline_mode = #tpu.pipeline_mode<synchronous>, transform_indices = @transform_2, window_bounds = array<i64: 128, 512>}, {pipeline_mode = #tpu.pipeline_mode<synchronous>, transform_indices = @transform_3, window_bounds = array<i64: 1, 512>}, {transform_indices = @transform_4, window_bounds = array<i64: 8, 1>}, {transform_indices = @transform_5, window_bounds = array<i64: 4, 8, 128>}, {transform_indices = @transform_6, window_bounds = array<i64: 8, 128>}, {transform_indices = @transform_7, window_bounds = array<i64: 8, 128>}]} {
    %c4_i32 = arith.constant 4 : i32
    %0 = arith.muli %arg1, %c4_i32 : i32
    %1 = arith.index_cast %arg0 : i32 to index
    %2 = memref.load %arg2[%1] : memref<1xi32, #tpu.memory_space<smem>>
    %c0_i32 = arith.constant 0 : i32
    %3 = arith.cmpi eq, %arg1, %c0_i32 : i32
    %4 = arith.extui %3 : i1 to i32
    %c0_i32_0 = arith.constant 0 : i32
    %5 = arith.cmpi ne, %4, %c0_i32_0 : i32
    scf.if %5 {
      %cst = arith.constant 0.000000e+00 : f32
      %15 = vector.broadcast %cst : f32 to vector<8x128xf32>
      %c0 = arith.constant 0 : index
      %c0_4 = arith.constant 0 : index
      %16 = vector.load %arg12[%c0, %c0_4] : memref<8x128xf32, #tpu.memory_space<vmem>>, vector<8x128xf32>
      tpu.vector_store %arg12[%c0, %c0_4], %15 {strides = array<i32>} : memref<8x128xf32, #tpu.memory_space<vmem>>, vector<8x128xf32>,
      %cst_5 = arith.constant 0.000000e+00 : f32
      %17 = vector.broadcast %cst_5 : f32 to vector<8x128xf32>
      %c0_6 = arith.constant 0 : index
      %c0_7 = arith.constant 0 : index
      %18 = vector.load %arg13[%c0_6, %c0_7] : memref<8x128xf32, #tpu.memory_space<vmem>>, vector<8x128xf32>
      tpu.vector_store %arg13[%c0_6, %c0_7], %17 {strides = array<i32>} : memref<8x128xf32, #tpu.memory_space<vmem>>, vector<8x128xf32>,
    } else {
    }
    %6 = arith.cmpi slt, %0, %2 : i32
    %7 = arith.extui %6 : i1 to i32
    %c0_i32_1 = arith.constant 0 : i32
    %8 = arith.cmpi ne, %7, %c0_i32_1 : i32
    scf.if %8 {
      %c0 = arith.constant 0 : index
      %c0_4 = arith.constant 0 : index
      %c0_5 = arith.constant 0 : index
      %15 = vector.load %arg3[%c0, %c0_4, %c0_5] : memref<1x32x128xbf16, #tpu.memory_space<vmem>>, vector<1x32x128xbf16>
      %16 = vector.shape_cast %15 : vector<1x32x128xbf16> to vector<32x128xbf16>
      %c0_6 = arith.constant 0 : index
      %c0_7 = arith.constant 0 : index
      %17 = vector.load %arg4[%c0_6, %c0_7] : memref<128x512xbf16, #tpu.memory_space<vmem>>, vector<128x512xbf16>
      %cst = arith.constant dense<0.000000e+00> : vector<32x512xf32>
      %18 = tpu.matmul %16, %17, %cst {dimension_numbers = #tpu.dot_dimension_numbers<[1], [0], [0], [1], [0, 0, 1, 1], [], []>} : vector<32x128xbf16>, vector<128x512xbf16>, vector<32x512xf32> -> vector<32x512xf32>
      %c0_8 = arith.constant 0 : index
      %c0_9 = arith.constant 0 : index
      %19 = vector.load %arg6[%c0_8, %c0_9] : memref<1x512xf32, #tpu.memory_space<vmem>>, vector<1x512xf32>
      %20 = vector.broadcast %19 : vector<1x512xf32> to vector<32x512xf32>
      %21 = arith.addf %18, %20 : vector<32x512xf32>
      %22 = arith.truncf %21 : vector<32x512xf32> to vector<32x512xbf16>
      %c0_10 = arith.constant 0 : index
      %c0_11 = arith.constant 0 : index
      %23 = vector.load %arg11[%c0_10, %c0_11] : memref<32x512xbf16, #tpu.memory_space<vmem>>, vector<32x512xbf16>
      tpu.vector_store %arg11[%c0_10, %c0_11], %22 {strides = array<i32>} : memref<32x512xbf16, #tpu.memory_space<vmem>>, vector<32x512xbf16>,
      %c0_12 = arith.constant 0 : index
      %c0_13 = arith.constant 0 : index
      %24 = vector.load %arg7[%c0_12, %c0_13] : memref<8x1xi32, #tpu.memory_space<vmem>>, vector<8x1xi32>
      %c0_14 = arith.constant 0 : index
      %c0_15 = arith.constant 0 : index
      %25 = vector.load %arg12[%c0_14, %c0_15] : memref<8x128xf32, #tpu.memory_space<vmem>>, vector<8x128xf32>
      %c0_16 = arith.constant 0 : index
      %c0_17 = arith.constant 0 : index
      %26 = vector.load %arg13[%c0_16, %c0_17] : memref<8x128xf32, #tpu.memory_space<vmem>>, vector<8x128xf32>
      %c0_i32_18 = arith.constant 0 : i32
      %c8_i32 = arith.constant 8 : i32
      %27 = arith.muli %c0_i32_18, %c8_i32 : i32
      %28 = tpu.assume_multiple %27, 8 : i32
      %29 = arith.index_cast %28 : i32 to index
      %c0_19 = arith.constant 0 : index
      %30 = vector.load %arg11[%29, %c0_19] : memref<32x512xbf16, #tpu.memory_space<vmem>>, vector<8x512xbf16>
      %31 = arith.extf %30 : vector<8x512xbf16> to vector<8x512xf32>
      %32 = arith.truncf %25 : vector<8x128xf32> to vector<8x128xbf16>
      %c0_20 = arith.constant 0 : index
      %c0_21 = arith.constant 0 : index
      %33 = vector.load %arg5[%c0_20, %c0_21] : memref<128x512xbf16, #tpu.memory_space<vmem>>, vector<128x512xbf16>
      %cst_22 = arith.constant dense<0.000000e+00> : vector<8x512xf32>
      %34 = tpu.matmul %32, %33, %cst_22 {dimension_numbers = #tpu.dot_dimension_numbers<[1], [0], [0], [1], [0, 0, 1, 1], [], []>} : vector<8x128xbf16>, vector<128x512xbf16>, vector<8x512xf32> -> vector<8x512xf32>
      %35 = arith.addf %31, %34 : vector<8x512xf32>
      %36 = vector.extract_strided_slice %35 {offsets = [0, 0], sizes = [8, 128], strides = [1, 1]} : vector<8x512xf32> to vector<8x128xf32>
      %cst_23 = arith.constant 5.000000e-01 : f32
      %37 = vector.broadcast %cst_23 : f32 to vector<8x128xf32>
      %38 = arith.mulf %37, %36 : vector<8x128xf32>
      %39 = math.tanh %38 : vector<8x128xf32>
      %cst_24 = arith.constant 5.000000e-01 : f32
      %40 = vector.broadcast %cst_24 : f32 to vector<8x128xf32>
      %41 = arith.mulf %40, %39 : vector<8x128xf32>
      %cst_25 = arith.constant 5.000000e-01 : f32
      %42 = vector.broadcast %cst_25 : f32 to vector<8x128xf32>
      %43 = arith.addf %41, %42 : vector<8x128xf32>
      %44 = vector.extract_strided_slice %35 {offsets = [0, 128], sizes = [8, 128], strides = [1, 1]} : vector<8x512xf32> to vector<8x128xf32>
      %cst_26 = arith.constant 5.000000e-01 : f32
      %45 = vector.broadcast %cst_26 : f32 to vector<8x128xf32>
      %46 = arith.mulf %45, %44 : vector<8x128xf32>
      %47 = math.tanh %46 : vector<8x128xf32>
      %cst_27 = arith.constant 5.000000e-01 : f32
      %48 = vector.broadcast %cst_27 : f32 to vector<8x128xf32>
      %49 = arith.mulf %48, %47 : vector<8x128xf32>
      %cst_28 = arith.constant 5.000000e-01 : f32
      %50 = vector.broadcast %cst_28 : f32 to vector<8x128xf32>
      %51 = arith.addf %49, %50 : vector<8x128xf32>
      %52 = vector.extract_strided_slice %35 {offsets = [0, 256], sizes = [8, 128], strides = [1, 1]} : vector<8x512xf32> to vector<8x128xf32>
      %53 = math.tanh %52 : vector<8x128xf32>
      %54 = vector.extract_strided_slice %35 {offsets = [0, 384], sizes = [8, 128], strides = [1, 1]} : vector<8x512xf32> to vector<8x128xf32>
      %cst_29 = arith.constant 5.000000e-01 : f32
      %55 = vector.broadcast %cst_29 : f32 to vector<8x128xf32>
      %56 = arith.mulf %55, %54 : vector<8x128xf32>
      %57 = math.tanh %56 : vector<8x128xf32>
      %cst_30 = arith.constant 5.000000e-01 : f32
      %58 = vector.broadcast %cst_30 : f32 to vector<8x128xf32>
      %59 = arith.mulf %58, %57 : vector<8x128xf32>
      %cst_31 = arith.constant 5.000000e-01 : f32
      %60 = vector.broadcast %cst_31 : f32 to vector<8x128xf32>
      %61 = arith.addf %59, %60 : vector<8x128xf32>
      %62 = arith.mulf %51, %26 : vector<8x128xf32>
      %63 = arith.mulf %43, %53 : vector<8x128xf32>
      %64 = arith.addf %62, %63 : vector<8x128xf32>
      %65 = math.tanh %64 : vector<8x128xf32>
      %66 = arith.mulf %61, %65 : vector<8x128xf32>
      %67 = arith.addi %0, %c0_i32_18 : i32
      %68 = vector.broadcast %67 : i32 to vector<8x1xi32>
      %69 = arith.cmpi slt, %68, %24 : vector<8x1xi32>
      %cst_32 = arith.constant 0.000000e+00 : f32
      %70 = vector.shape_cast %69 : vector<8x1xi1> to vector<8x1xi1>
      %71 = vector.broadcast %70 : vector<8x1xi1> to vector<8x128xi1>
      %72 = vector.broadcast %cst_32 : f32 to vector<8x128xf32>
      %73 = arith.select %71, %66, %72 : vector<8x128xi1>, vector<8x128xf32>
      %74 = arith.truncf %73 : vector<8x128xf32> to vector<8x128xbf16>
      %75 = arith.index_cast %c0_i32_18 : i32 to index
      %c0_33 = arith.constant 0 : index
      %c0_34 = arith.constant 0 : index
      %76 = vector.load %arg8[%75, %c0_33, %c0_34] : memref<4x8x128xbf16, #tpu.memory_space<vmem>>, vector<1x8x128xbf16>
      %77 = vector.shape_cast %76 : vector<1x8x128xbf16> to vector<8x128xbf16>
      %78 = vector.shape_cast %74 : vector<8x128xbf16> to vector<1x8x128xbf16>
      tpu.vector_store %arg8[%75, %c0_33, %c0_34], %78 {strides = array<i32>} : memref<4x8x128xbf16, #tpu.memory_space<vmem>>, vector<1x8x128xbf16>,
      %79 = vector.shape_cast %69 : vector<8x1xi1> to vector<8x1xi1>
      %80 = vector.broadcast %79 : vector<8x1xi1> to vector<8x128xi1>
      %81 = arith.select %80, %66, %25 : vector<8x128xi1>, vector<8x128xf32>
      %82 = vector.shape_cast %69 : vector<8x1xi1> to vector<8x1xi1>
      %83 = vector.broadcast %82 : vector<8x1xi1> to vector<8x128xi1>
      %84 = arith.select %83, %64, %26 : vector<8x128xi1>, vector<8x128xf32>
      %c1_i32 = arith.constant 1 : i32
      %c8_i32_35 = arith.constant 8 : i32
      %85 = arith.muli %c1_i32, %c8_i32_35 : i32
      %86 = tpu.assume_multiple %85, 8 : i32
      %87 = arith.index_cast %86 : i32 to index
      %c0_36 = arith.constant 0 : index
      %88 = vector.load %arg11[%87, %c0_36] : memref<32x512xbf16, #tpu.memory_space<vmem>>, vector<8x512xbf16>
      %89 = arith.extf %88 : vector<8x512xbf16> to vector<8x512xf32>
      %90 = arith.truncf %81 : vector<8x128xf32> to vector<8x128xbf16>
      %c0_37 = arith.constant 0 : index
      %c0_38 = arith.constant 0 : index
      %91 = vector.load %arg5[%c0_37, %c0_38] : memref<128x512xbf16, #tpu.memory_space<vmem>>, vector<128x512xbf16>
      %cst_39 = arith.constant dense<0.000000e+00> : vector<8x512xf32>
      %92 = tpu.matmul %90, %91, %cst_39 {dimension_numbers = #tpu.dot_dimension_numbers<[1], [0], [0], [1], [0, 0, 1, 1], [], []>} : vector<8x128xbf16>, vector<128x512xbf16>, vector<8x512xf32> -> vector<8x512xf32>
      %93 = arith.addf %89, %92 : vector<8x512xf32>
      %94 = vector.extract_strided_slice %93 {offsets = [0, 0], sizes = [8, 128], strides = [1, 1]} : vector<8x512xf32> to vector<8x128xf32>
      %cst_40 = arith.constant 5.000000e-01 : f32
      %95 = vector.broadcast %cst_40 : f32 to vector<8x128xf32>
      %96 = arith.mulf %95, %94 : vector<8x128xf32>
      %97 = math.tanh %96 : vector<8x128xf32>
      %cst_41 = arith.constant 5.000000e-01 : f32
      %98 = vector.broadcast %cst_41 : f32 to vector<8x128xf32>
      %99 = arith.mulf %98, %97 : vector<8x128xf32>
      %cst_42 = arith.constant 5.000000e-01 : f32
      %100 = vector.broadcast %cst_42 : f32 to vector<8x128xf32>
      %101 = arith.addf %99, %100 : vector<8x128xf32>
      %102 = vector.extract_strided_slice %93 {offsets = [0, 128], sizes = [8, 128], strides = [1, 1]} : vector<8x512xf32> to vector<8x128xf32>
      %cst_43 = arith.constant 5.000000e-01 : f32
      %103 = vector.broadcast %cst_43 : f32 to vector<8x128xf32>
      %104 = arith.mulf %103, %102 : vector<8x128xf32>
      %105 = math.tanh %104 : vector<8x128xf32>
      %cst_44 = arith.constant 5.000000e-01 : f32
      %106 = vector.broadcast %cst_44 : f32 to vector<8x128xf32>
      %107 = arith.mulf %106, %105 : vector<8x128xf32>
      %cst_45 = arith.constant 5.000000e-01 : f32
      %108 = vector.broadcast %cst_45 : f32 to vector<8x128xf32>
      %109 = arith.addf %107, %108 : vector<8x128xf32>
      %110 = vector.extract_strided_slice %93 {offsets = [0, 256], sizes = [8, 128], strides = [1, 1]} : vector<8x512xf32> to vector<8x128xf32>
      %111 = math.tanh %110 : vector<8x128xf32>
      %112 = vector.extract_strided_slice %93 {offsets = [0, 384], sizes = [8, 128], strides = [1, 1]} : vector<8x512xf32> to vector<8x128xf32>
      %cst_46 = arith.constant 5.000000e-01 : f32
      %113 = vector.broadcast %cst_46 : f32 to vector<8x128xf32>
      %114 = arith.mulf %113, %112 : vector<8x128xf32>
      %115 = math.tanh %114 : vector<8x128xf32>
      %cst_47 = arith.constant 5.000000e-01 : f32
      %116 = vector.broadcast %cst_47 : f32 to vector<8x128xf32>
      %117 = arith.mulf %116, %115 : vector<8x128xf32>
      %cst_48 = arith.constant 5.000000e-01 : f32
      %118 = vector.broadcast %cst_48 : f32 to vector<8x128xf32>
      %119 = arith.addf %117, %118 : vector<8x128xf32>
      %120 = arith.mulf %109, %84 : vector<8x128xf32>
      %121 = arith.mulf %101, %111 : vector<8x128xf32>
      %122 = arith.addf %120, %121 : vector<8x128xf32>
      %123 = math.tanh %122 : vector<8x128xf32>
      %124 = arith.mulf %119, %123 : vector<8x128xf32>
      %125 = arith.addi %0, %c1_i32 : i32
      %126 = vector.broadcast %125 : i32 to vector<8x1xi32>
      %127 = arith.cmpi slt, %126, %24 : vector<8x1xi32>
      %cst_49 = arith.constant 0.000000e+00 : f32
      %128 = vector.shape_cast %127 : vector<8x1xi1> to vector<8x1xi1>
      %129 = vector.broadcast %128 : vector<8x1xi1> to vector<8x128xi1>
      %130 = vector.broadcast %cst_49 : f32 to vector<8x128xf32>
      %131 = arith.select %129, %124, %130 : vector<8x128xi1>, vector<8x128xf32>
      %132 = arith.truncf %131 : vector<8x128xf32> to vector<8x128xbf16>
      %133 = arith.index_cast %c1_i32 : i32 to index
      %c0_50 = arith.constant 0 : index
      %c0_51 = arith.constant 0 : index
      %134 = vector.load %arg8[%133, %c0_50, %c0_51] : memref<4x8x128xbf16, #tpu.memory_space<vmem>>, vector<1x8x128xbf16>
      %135 = vector.shape_cast %134 : vector<1x8x128xbf16> to vector<8x128xbf16>
      %136 = vector.shape_cast %132 : vector<8x128xbf16> to vector<1x8x128xbf16>
      tpu.vector_store %arg8[%133, %c0_50, %c0_51], %136 {strides = array<i32>} : memref<4x8x128xbf16, #tpu.memory_space<vmem>>, vector<1x8x128xbf16>,
      %137 = vector.shape_cast %127 : vector<8x1xi1> to vector<8x1xi1>
      %138 = vector.broadcast %137 : vector<8x1xi1> to vector<8x128xi1>
      %139 = arith.select %138, %124, %81 : vector<8x128xi1>, vector<8x128xf32>
      %140 = vector.shape_cast %127 : vector<8x1xi1> to vector<8x1xi1>
      %141 = vector.broadcast %140 : vector<8x1xi1> to vector<8x128xi1>
      %142 = arith.select %141, %122, %84 : vector<8x128xi1>, vector<8x128xf32>
      %c2_i32_52 = arith.constant 2 : i32
      %c8_i32_53 = arith.constant 8 : i32
      %143 = arith.muli %c2_i32_52, %c8_i32_53 : i32
      %144 = tpu.assume_multiple %143, 8 : i32
      %145 = arith.index_cast %144 : i32 to index
      %c0_54 = arith.constant 0 : index
      %146 = vector.load %arg11[%145, %c0_54] : memref<32x512xbf16, #tpu.memory_space<vmem>>, vector<8x512xbf16>
      %147 = arith.extf %146 : vector<8x512xbf16> to vector<8x512xf32>
      %148 = arith.truncf %139 : vector<8x128xf32> to vector<8x128xbf16>
      %c0_55 = arith.constant 0 : index
      %c0_56 = arith.constant 0 : index
      %149 = vector.load %arg5[%c0_55, %c0_56] : memref<128x512xbf16, #tpu.memory_space<vmem>>, vector<128x512xbf16>
      %cst_57 = arith.constant dense<0.000000e+00> : vector<8x512xf32>
      %150 = tpu.matmul %148, %149, %cst_57 {dimension_numbers = #tpu.dot_dimension_numbers<[1], [0], [0], [1], [0, 0, 1, 1], [], []>} : vector<8x128xbf16>, vector<128x512xbf16>, vector<8x512xf32> -> vector<8x512xf32>
      %151 = arith.addf %147, %150 : vector<8x512xf32>
      %152 = vector.extract_strided_slice %151 {offsets = [0, 0], sizes = [8, 128], strides = [1, 1]} : vector<8x512xf32> to vector<8x128xf32>
      %cst_58 = arith.constant 5.000000e-01 : f32
      %153 = vector.broadcast %cst_58 : f32 to vector<8x128xf32>
      %154 = arith.mulf %153, %152 : vector<8x128xf32>
      %155 = math.tanh %154 : vector<8x128xf32>
      %cst_59 = arith.constant 5.000000e-01 : f32
      %156 = vector.broadcast %cst_59 : f32 to vector<8x128xf32>
      %157 = arith.mulf %156, %155 : vector<8x128xf32>
      %cst_60 = arith.constant 5.000000e-01 : f32
      %158 = vector.broadcast %cst_60 : f32 to vector<8x128xf32>
      %159 = arith.addf %157, %158 : vector<8x128xf32>
      %160 = vector.extract_strided_slice %151 {offsets = [0, 128], sizes = [8, 128], strides = [1, 1]} : vector<8x512xf32> to vector<8x128xf32>
      %cst_61 = arith.constant 5.000000e-01 : f32
      %161 = vector.broadcast %cst_61 : f32 to vector<8x128xf32>
      %162 = arith.mulf %161, %160 : vector<8x128xf32>
      %163 = math.tanh %162 : vector<8x128xf32>
      %cst_62 = arith.constant 5.000000e-01 : f32
      %164 = vector.broadcast %cst_62 : f32 to vector<8x128xf32>
      %165 = arith.mulf %164, %163 : vector<8x128xf32>
      %cst_63 = arith.constant 5.000000e-01 : f32
      %166 = vector.broadcast %cst_63 : f32 to vector<8x128xf32>
      %167 = arith.addf %165, %166 : vector<8x128xf32>
      %168 = vector.extract_strided_slice %151 {offsets = [0, 256], sizes = [8, 128], strides = [1, 1]} : vector<8x512xf32> to vector<8x128xf32>
      %169 = math.tanh %168 : vector<8x128xf32>
      %170 = vector.extract_strided_slice %151 {offsets = [0, 384], sizes = [8, 128], strides = [1, 1]} : vector<8x512xf32> to vector<8x128xf32>
      %cst_64 = arith.constant 5.000000e-01 : f32
      %171 = vector.broadcast %cst_64 : f32 to vector<8x128xf32>
      %172 = arith.mulf %171, %170 : vector<8x128xf32>
      %173 = math.tanh %172 : vector<8x128xf32>
      %cst_65 = arith.constant 5.000000e-01 : f32
      %174 = vector.broadcast %cst_65 : f32 to vector<8x128xf32>
      %175 = arith.mulf %174, %173 : vector<8x128xf32>
      %cst_66 = arith.constant 5.000000e-01 : f32
      %176 = vector.broadcast %cst_66 : f32 to vector<8x128xf32>
      %177 = arith.addf %175, %176 : vector<8x128xf32>
      %178 = arith.mulf %167, %142 : vector<8x128xf32>
      %179 = arith.mulf %159, %169 : vector<8x128xf32>
      %180 = arith.addf %178, %179 : vector<8x128xf32>
      %181 = math.tanh %180 : vector<8x128xf32>
      %182 = arith.mulf %177, %181 : vector<8x128xf32>
      %183 = arith.addi %0, %c2_i32_52 : i32
      %184 = vector.broadcast %183 : i32 to vector<8x1xi32>
      %185 = arith.cmpi slt, %184, %24 : vector<8x1xi32>
      %cst_67 = arith.constant 0.000000e+00 : f32
      %186 = vector.shape_cast %185 : vector<8x1xi1> to vector<8x1xi1>
      %187 = vector.broadcast %186 : vector<8x1xi1> to vector<8x128xi1>
      %188 = vector.broadcast %cst_67 : f32 to vector<8x128xf32>
      %189 = arith.select %187, %182, %188 : vector<8x128xi1>, vector<8x128xf32>
      %190 = arith.truncf %189 : vector<8x128xf32> to vector<8x128xbf16>
      %191 = arith.index_cast %c2_i32_52 : i32 to index
      %c0_68 = arith.constant 0 : index
      %c0_69 = arith.constant 0 : index
      %192 = vector.load %arg8[%191, %c0_68, %c0_69] : memref<4x8x128xbf16, #tpu.memory_space<vmem>>, vector<1x8x128xbf16>
      %193 = vector.shape_cast %192 : vector<1x8x128xbf16> to vector<8x128xbf16>
      %194 = vector.shape_cast %190 : vector<8x128xbf16> to vector<1x8x128xbf16>
      tpu.vector_store %arg8[%191, %c0_68, %c0_69], %194 {strides = array<i32>} : memref<4x8x128xbf16, #tpu.memory_space<vmem>>, vector<1x8x128xbf16>,
      %195 = vector.shape_cast %185 : vector<8x1xi1> to vector<8x1xi1>
      %196 = vector.broadcast %195 : vector<8x1xi1> to vector<8x128xi1>
      %197 = arith.select %196, %182, %139 : vector<8x128xi1>, vector<8x128xf32>
      %198 = vector.shape_cast %185 : vector<8x1xi1> to vector<8x1xi1>
      %199 = vector.broadcast %198 : vector<8x1xi1> to vector<8x128xi1>
      %200 = arith.select %199, %180, %142 : vector<8x128xi1>, vector<8x128xf32>
      %c3_i32 = arith.constant 3 : i32
      %c8_i32_70 = arith.constant 8 : i32
      %201 = arith.muli %c3_i32, %c8_i32_70 : i32
      %202 = tpu.assume_multiple %201, 8 : i32
      %203 = arith.index_cast %202 : i32 to index
      %c0_71 = arith.constant 0 : index
      %204 = vector.load %arg11[%203, %c0_71] : memref<32x512xbf16, #tpu.memory_space<vmem>>, vector<8x512xbf16>
      %205 = arith.extf %204 : vector<8x512xbf16> to vector<8x512xf32>
      %206 = arith.truncf %197 : vector<8x128xf32> to vector<8x128xbf16>
      %c0_72 = arith.constant 0 : index
      %c0_73 = arith.constant 0 : index
      %207 = vector.load %arg5[%c0_72, %c0_73] : memref<128x512xbf16, #tpu.memory_space<vmem>>, vector<128x512xbf16>
      %cst_74 = arith.constant dense<0.000000e+00> : vector<8x512xf32>
      %208 = tpu.matmul %206, %207, %cst_74 {dimension_numbers = #tpu.dot_dimension_numbers<[1], [0], [0], [1], [0, 0, 1, 1], [], []>} : vector<8x128xbf16>, vector<128x512xbf16>, vector<8x512xf32> -> vector<8x512xf32>
      %209 = arith.addf %205, %208 : vector<8x512xf32>
      %210 = vector.extract_strided_slice %209 {offsets = [0, 0], sizes = [8, 128], strides = [1, 1]} : vector<8x512xf32> to vector<8x128xf32>
      %cst_75 = arith.constant 5.000000e-01 : f32
      %211 = vector.broadcast %cst_75 : f32 to vector<8x128xf32>
      %212 = arith.mulf %211, %210 : vector<8x128xf32>
      %213 = math.tanh %212 : vector<8x128xf32>
      %cst_76 = arith.constant 5.000000e-01 : f32
      %214 = vector.broadcast %cst_76 : f32 to vector<8x128xf32>
      %215 = arith.mulf %214, %213 : vector<8x128xf32>
      %cst_77 = arith.constant 5.000000e-01 : f32
      %216 = vector.broadcast %cst_77 : f32 to vector<8x128xf32>
      %217 = arith.addf %215, %216 : vector<8x128xf32>
      %218 = vector.extract_strided_slice %209 {offsets = [0, 128], sizes = [8, 128], strides = [1, 1]} : vector<8x512xf32> to vector<8x128xf32>
      %cst_78 = arith.constant 5.000000e-01 : f32
      %219 = vector.broadcast %cst_78 : f32 to vector<8x128xf32>
      %220 = arith.mulf %219, %218 : vector<8x128xf32>
      %221 = math.tanh %220 : vector<8x128xf32>
      %cst_79 = arith.constant 5.000000e-01 : f32
      %222 = vector.broadcast %cst_79 : f32 to vector<8x128xf32>
      %223 = arith.mulf %222, %221 : vector<8x128xf32>
      %cst_80 = arith.constant 5.000000e-01 : f32
      %224 = vector.broadcast %cst_80 : f32 to vector<8x128xf32>
      %225 = arith.addf %223, %224 : vector<8x128xf32>
      %226 = vector.extract_strided_slice %209 {offsets = [0, 256], sizes = [8, 128], strides = [1, 1]} : vector<8x512xf32> to vector<8x128xf32>
      %227 = math.tanh %226 : vector<8x128xf32>
      %228 = vector.extract_strided_slice %209 {offsets = [0, 384], sizes = [8, 128], strides = [1, 1]} : vector<8x512xf32> to vector<8x128xf32>
      %cst_81 = arith.constant 5.000000e-01 : f32
      %229 = vector.broadcast %cst_81 : f32 to vector<8x128xf32>
      %230 = arith.mulf %229, %228 : vector<8x128xf32>
      %231 = math.tanh %230 : vector<8x128xf32>
      %cst_82 = arith.constant 5.000000e-01 : f32
      %232 = vector.broadcast %cst_82 : f32 to vector<8x128xf32>
      %233 = arith.mulf %232, %231 : vector<8x128xf32>
      %cst_83 = arith.constant 5.000000e-01 : f32
      %234 = vector.broadcast %cst_83 : f32 to vector<8x128xf32>
      %235 = arith.addf %233, %234 : vector<8x128xf32>
      %236 = arith.mulf %225, %200 : vector<8x128xf32>
      %237 = arith.mulf %217, %227 : vector<8x128xf32>
      %238 = arith.addf %236, %237 : vector<8x128xf32>
      %239 = math.tanh %238 : vector<8x128xf32>
      %240 = arith.mulf %235, %239 : vector<8x128xf32>
      %241 = arith.addi %0, %c3_i32 : i32
      %242 = vector.broadcast %241 : i32 to vector<8x1xi32>
      %243 = arith.cmpi slt, %242, %24 : vector<8x1xi32>
      %cst_84 = arith.constant 0.000000e+00 : f32
      %244 = vector.shape_cast %243 : vector<8x1xi1> to vector<8x1xi1>
      %245 = vector.broadcast %244 : vector<8x1xi1> to vector<8x128xi1>
      %246 = vector.broadcast %cst_84 : f32 to vector<8x128xf32>
      %247 = arith.select %245, %240, %246 : vector<8x128xi1>, vector<8x128xf32>
      %248 = arith.truncf %247 : vector<8x128xf32> to vector<8x128xbf16>
      %249 = arith.index_cast %c3_i32 : i32 to index
      %c0_85 = arith.constant 0 : index
      %c0_86 = arith.constant 0 : index
      %250 = vector.load %arg8[%249, %c0_85, %c0_86] : memref<4x8x128xbf16, #tpu.memory_space<vmem>>, vector<1x8x128xbf16>
      %251 = vector.shape_cast %250 : vector<1x8x128xbf16> to vector<8x128xbf16>
      %252 = vector.shape_cast %248 : vector<8x128xbf16> to vector<1x8x128xbf16>
      tpu.vector_store %arg8[%249, %c0_85, %c0_86], %252 {strides = array<i32>} : memref<4x8x128xbf16, #tpu.memory_space<vmem>>, vector<1x8x128xbf16>,
      %253 = vector.shape_cast %243 : vector<8x1xi1> to vector<8x1xi1>
      %254 = vector.broadcast %253 : vector<8x1xi1> to vector<8x128xi1>
      %255 = arith.select %254, %240, %197 : vector<8x128xi1>, vector<8x128xf32>
      %256 = vector.shape_cast %243 : vector<8x1xi1> to vector<8x1xi1>
      %257 = vector.broadcast %256 : vector<8x1xi1> to vector<8x128xi1>
      %258 = arith.select %257, %238, %200 : vector<8x128xi1>, vector<8x128xf32>
      %c4_i32_87 = arith.constant 4 : i32
      %c0_88 = arith.constant 0 : index
      %c0_89 = arith.constant 0 : index
      %259 = vector.load %arg12[%c0_88, %c0_89] : memref<8x128xf32, #tpu.memory_space<vmem>>, vector<8x128xf32>
      tpu.vector_store %arg12[%c0_88, %c0_89], %255 {strides = array<i32>} : memref<8x128xf32, #tpu.memory_space<vmem>>, vector<8x128xf32>,
      %c0_90 = arith.constant 0 : index
      %c0_91 = arith.constant 0 : index
      %260 = vector.load %arg13[%c0_90, %c0_91] : memref<8x128xf32, #tpu.memory_space<vmem>>, vector<8x128xf32>
      tpu.vector_store %arg13[%c0_90, %c0_91], %258 {strides = array<i32>} : memref<8x128xf32, #tpu.memory_space<vmem>>, vector<8x128xf32>,
    } else {
    }
    %9 = arith.cmpi sge, %0, %2 : i32
    %10 = arith.extui %9 : i1 to i32
    %c0_i32_2 = arith.constant 0 : i32
    %11 = arith.cmpi ne, %10, %c0_i32_2 : i32
    scf.if %11 {
      %cst = arith.constant 0.000000e+00 : bf16
      %15 = vector.broadcast %cst : bf16 to vector<4x8x128xbf16>
      %c0 = arith.constant 0 : index
      %c0_4 = arith.constant 0 : index
      %c0_5 = arith.constant 0 : index
      %16 = vector.load %arg8[%c0, %c0_4, %c0_5] : memref<4x8x128xbf16, #tpu.memory_space<vmem>>, vector<4x8x128xbf16>
      tpu.vector_store %arg8[%c0, %c0_4, %c0_5], %15 {strides = array<i32>} : memref<4x8x128xbf16, #tpu.memory_space<vmem>>, vector<4x8x128xbf16>,
    } else {
    }
    %c2_i32 = arith.constant 2 : i32
    %12 = arith.cmpi eq, %arg1, %c2_i32 : i32
    %13 = arith.extui %12 : i1 to i32
    %c0_i32_3 = arith.constant 0 : i32
    %14 = arith.cmpi ne, %13, %c0_i32_3 : i32
    scf.if %14 {
      %c0 = arith.constant 0 : index
      %c0_4 = arith.constant 0 : index
      %15 = vector.load %arg12[%c0, %c0_4] : memref<8x128xf32, #tpu.memory_space<vmem>>, vector<8x128xf32>
      %c0_5 = arith.constant 0 : index
      %c0_6 = arith.constant 0 : index
      %16 = vector.load %arg9[%c0_5, %c0_6] : memref<8x128xf32, #tpu.memory_space<vmem>>, vector<8x128xf32>
      tpu.vector_store %arg9[%c0_5, %c0_6], %15 {strides = array<i32>} : memref<8x128xf32, #tpu.memory_space<vmem>>, vector<8x128xf32>,
      %c0_7 = arith.constant 0 : index
      %c0_8 = arith.constant 0 : index
      %17 = vector.load %arg13[%c0_7, %c0_8] : memref<8x128xf32, #tpu.memory_space<vmem>>, vector<8x128xf32>
      %c0_9 = arith.constant 0 : index
      %c0_10 = arith.constant 0 : index
      %18 = vector.load %arg10[%c0_9, %c0_10] : memref<8x128xf32, #tpu.memory_space<vmem>>, vector<8x128xf32>
      tpu.vector_store %arg10[%c0_9, %c0_10], %17 {strides = array<i32>} : memref<8x128xf32, #tpu.memory_space<vmem>>, vector<8x128xf32>,
    } else {
    }
    return
  }
  func.func @transform_0(%arg0: i32, %arg1: i32, %arg2: memref<1xi32, #tpu.memory_space<smem>>) -> (i32, i32, i32) {
    %c0_i32 = arith.constant 0 : i32
    %c0_i32_0 = arith.constant 0 : i32
    return %arg0, %arg1, %c0_i32 : i32, i32, i32
  }
  func.func @transform_1(%arg0: i32, %arg1: i32, %arg2: memref<1xi32, #tpu.memory_space<smem>>) -> (i32, i32) {
    %c0_i32 = arith.constant 0 : i32
    %c0_i32_0 = arith.constant 0 : i32
    %c0_i32_1 = arith.constant 0 : i32
    return %c0_i32, %c0_i32_0 : i32, i32
  }
  func.func @transform_2(%arg0: i32, %arg1: i32, %arg2: memref<1xi32, #tpu.memory_space<smem>>) -> (i32, i32) {
    %c0_i32 = arith.constant 0 : i32
    %c0_i32_0 = arith.constant 0 : i32
    %c0_i32_1 = arith.constant 0 : i32
    return %c0_i32, %c0_i32_0 : i32, i32
  }
  func.func @transform_3(%arg0: i32, %arg1: i32, %arg2: memref<1xi32, #tpu.memory_space<smem>>) -> (i32, i32) {
    %c0_i32 = arith.constant 0 : i32
    %c0_i32_0 = arith.constant 0 : i32
    %c0_i32_1 = arith.constant 0 : i32
    return %c0_i32, %c0_i32_0 : i32, i32
  }
  func.func @transform_4(%arg0: i32, %arg1: i32, %arg2: memref<1xi32, #tpu.memory_space<smem>>) -> (i32, i32) {
    %c0_i32 = arith.constant 0 : i32
    %c0_i32_0 = arith.constant 0 : i32
    return %arg0, %c0_i32 : i32, i32
  }
  func.func @transform_5(%arg0: i32, %arg1: i32, %arg2: memref<1xi32, #tpu.memory_space<smem>>) -> (i32, i32, i32) {
    %c0_i32 = arith.constant 0 : i32
    %c0_i32_0 = arith.constant 0 : i32
    return %arg1, %arg0, %c0_i32 : i32, i32, i32
  }
  func.func @transform_6(%arg0: i32, %arg1: i32, %arg2: memref<1xi32, #tpu.memory_space<smem>>) -> (i32, i32) {
    %c0_i32 = arith.constant 0 : i32
    %c0_i32_0 = arith.constant 0 : i32
    return %arg0, %c0_i32 : i32, i32
  }
  func.func @transform_7(%arg0: i32, %arg1: i32, %arg2: memref<1xi32, #tpu.memory_space<smem>>) -> (i32, i32) {
    %c0_i32 = arith.constant 0 : i32
    %c0_i32_0 = arith.constant 0 : i32
    return %arg0, %c0_i32 : i32, i32
  }
}

</mosaic_0001>

<llo_original>
// kernel: tpu_custom_call.1
$region0: #{tpu_custom_call.1}
  #allocation0 [shape = 'u32[]', space=smem, size = 0x4, offset = 0x4, fixed_abs, tag = 'smem constant byte address 0x4 - core index']
  #allocation1 [shape = 'u32[72,128]{1,0:T(1,128)}', space=vmem, size = 0x9000, scoped, tag = 'internal scratch']
  #allocation2 [shape = 'bf16[32,512]{1,0:T(8,128)(2,1)}', space=vmem, size = 0x8000, scoped, tag = 'scratch operand']
  #allocation3 [shape = 'f32[8,128]{1,0:T(8,128)}', space=vmem, size = 0x1000, scoped, tag = 'scratch operand']
  #allocation4 [shape = 'f32[8,128]{1,0:T(8,128)}', space=vmem, size = 0x1000, scoped, tag = 'scratch operand']
  #allocation5 [shape = 's32[1]{0}', space=sflag, size = 0x4, scoped, tag = 'scoped memory for tpu_custom_call.1']
  #allocation6 [shape = 's32[1]{0:T(128)S(6)}', space=smem, size = 0x200, scoped, tag = 'prefetched SMEM operand 0']
  %s0 = inlined_call_operand.<no memory space> [shape: s32[1], index: 0, kind: input, shape index: {}]
  %s1 = inlined_call_operand.hbm [shape: bf16[1,96,128], index: 1, kind: input, shape index: {}]
  %s2 = inlined_call_operand.hbm [shape: bf16[128,512], index: 2, kind: input, shape index: {}]
  %s3 = inlined_call_operand.hbm [shape: bf16[128,512], index: 3, kind: input, shape index: {}]
  %s4 = inlined_call_operand.vmem [shape: f32[1,512], index: 4, kind: input, shape index: {}]
  %s5 = inlined_call_operand.vmem [shape: s32[8,1], index: 5, kind: input, shape index: {}]
  %s6 = inlined_call_operand.hbm [shape: bf16[12,8,128], index: 6, kind: output, shape index: {0}]
  %s7 = inlined_call_operand.hbm [shape: f32[8,128], index: 7, kind: output, shape index: {1}]
  %s8 = inlined_call_operand.hbm [shape: f32[8,128], index: 8, kind: output, shape index: {2}]
  %9 = xla_tuple %s6, %s7, %s8
  %s10 = sld [smem:[#allocation0]]
  $region97: #{tpu_custom_call.1} parent=0
    _
  %s12 = ssub.s32 1, %s10
  %s13 = scalar_select 0, %s12, %s10
  %14 = sst [smem:[#allocation6]] %s0
  $region1: #{tpu_custom_call.1} parent=0
    #allocation7 [shape = 'u8[16384]{0}', space=vmem, size = 0x4000, scoped, tag = 'input window, operand 1']
    #allocation8 [shape = 's32[2]{0}', space=sflag, size = 0x8, scoped, tag = 'scoped memory for tpu_custom_call.1']
    #allocation9 [shape = 's32[2]{0}', space=sflag, size = 0x8, scoped, tag = 'scoped memory for tpu_custom_call.1']
    #allocation10 [shape = 'u8[131072]{0}', space=vmem, size = 0x20000, scoped, tag = 'input window, operand 2, single buffered']
    #allocation11 [shape = 's32[1]{0}', space=sflag, size = 0x4, scoped, tag = 'scoped memory for tpu_custom_call.1']
    #allocation12 [shape = 'u8[131072]{0}', space=vmem, size = 0x20000, scoped, tag = 'input window, operand 3, single buffered']
    #allocation13 [shape = 'u8[16384]{0}', space=vmem, size = 0x4000, scoped, tag = 'output window, operand 0']
    #allocation14 [shape = 'u8[4096]{0}', space=vmem, size = 0x1000, scoped, tag = 'output window, operand 1, single buffered']
    #allocation15 [shape = 's32[1]{0}', space=sflag, size = 0x4, scoped, tag = 'scoped memory for tpu_custom_call.1']
    #allocation16 [shape = 'u8[4096]{0}', space=vmem, size = 0x1000, scoped, tag = 'output window, operand 2, single buffered']
    %15 = vsyncpa [#allocation8], 0
    %s16 = scalar_lea.sflag [#allocation8], 1
    %17 = vsyncpa %s16, 0
    %18 = vsyncpa [#allocation11], 0
    %19 = vsyncpa [#allocation9], 0
    %s20 = scalar_lea.sflag [#allocation9], 1
    %21 = vsyncpa %s20, 0
    %22 = vsyncpa [#allocation15], 0
    loop: start=0, step=1, limit=5
    $region2: #{tpu_custom_call.1} parent=1 // loop_pre_header
      _
    $region3: #{tpu_custom_call.1} parent=1 // loop_header
      %s24 = sphi 0, %s28
      %p25 = scmp.ge.s32.totalorder %s24, 5
      %s31 = sphi 0, %s43
      %s32 = sphi 0, %s39
      %s33 = sphi 0, %s31
      %s34 = sphi 0, %s32
      %s35 = sphi 0, %s33
      %s36 = sphi 0, %s34
      %s48 = sphi 0, %s50
      %s51 = sphi 0, %s48
      %s52 = sphi 0, %s51
      %s68 = sphi 0, %s52
      %s72 = sphi 0, %s72
      %s74 = sphi 0, %s72
      %s75 = sphi 0, %s74
      %s89 = sphi 0, %s75
      %s93 = sphi 0, %s93
      %s95 = sphi 0, %s93
      %s96 = sphi 0, %s95
      %s110 = sphi 0, %s96
      %s114 = sphi 0, %s114
      %s116 = sphi 0, %s114
      %s117 = sphi 0, %s116
      %s131 = sphi 0, %s117
      %s137 = sphi 0, %s139
      %s140 = sphi 0, %s137
      %s141 = sphi 0, %s140
      %s157 = sphi 0, %s141
      %s165 = sphi 0, %s167
      %s168 = sphi 0, %s165
      %s169 = sphi 0, %s168
      %s185 = sphi 0, %s169
      %s191 = sphi 0, %s193
      %s194 = sphi 0, %s191
      %s195 = sphi 0, %s194
      %s211 = sphi 0, %s195
      %s217 = sphi 0, %s219
      %s220 = sphi 0, %s217
      %s221 = sphi 0, %s220
      %s237 = sphi 0, %s221
    $region4: #{tpu_custom_call.1} parent=1 // loop_header_branch
      %27 = sbr.rel (%p25) target = $region8
    $region5: #{tpu_custom_call.1} parent=1 // loop_body
      %s29 = ssub.s32 %s24, 1
      %s30 = ssub.s32 %s24, 2
      %s37 = sadd.s32 1, %s32
      %p38 = scmp.ge.s32.totalorder %s37, 3
      %s39 = scalar_select %p38, 0, %s37
      %s40 = sadd.s32 1, %s31
      %s41 = scalar_select %p38, %s40, %s31
      %p42 = scmp.ge.s32.totalorder %s41, 1
      %s43 = scalar_select %p42, 0, %s41
      %s44 = ssub.s32 %s31, %s43
      %s45 = ssub.s32 %s32, %s39
      %s46 = sor.u32 %s44, %s45
      %p47 = scmp.eq.s32.totalorder %s46, 0
      %s49 = sadd.s32 %s48, 1
      %s50 = scalar_select %p47, %s48, %s49
      %p53 = pneg %p47
      %p54 = scmp.eq.s32.totalorder %s24, 2
      %p55 = por %p53, %p54
      %p56 = scmp.ne.s32.totalorder %s48, %s51
      %p57 = scmp.eq.s32.totalorder %s24, 0
      %p58 = por %p56, %p57
      %p59 = scmp.ne.s32.totalorder %s48, %s51
      %p60 = scmp.eq.s32.totalorder %s29, 2
      %p61 = por %p59, %p60
      %p62 = scmp.ne.s32.totalorder %s51, %s52
      %p63 = scmp.eq.s32.totalorder %s29, 0
      %p64 = por %p62, %p63
      %p65 = scmp.ne.s32.totalorder %s51, %s52
      %p66 = scmp.eq.s32.totalorder %s30, 2
      %p67 = por %p65, %p66
      %p69 = scmp.ne.s32.totalorder %s52, %s68
      %p70 = scmp.eq.s32.totalorder %s30, 0
      %p71 = por %p69, %p70
      %s73 = sadd.s32 %s72, 1
      %p76 = scmp.eq.s32.totalorder %s24, 2
      %p77 = scmp.ne.s32.totalorder %s72, %s74
      %p78 = scmp.eq.s32.totalorder %s24, 0
      %p79 = por %p77, %p78
      %p80 = scmp.ne.s32.totalorder %s72, %s74
      %p81 = scmp.eq.s32.totalorder %s29, 2
      %p82 = por %p80, %p81
      %p83 = scmp.ne.s32.totalorder %s74, %s75
      %p84 = scmp.eq.s32.totalorder %s29, 0
      %p85 = por %p83, %p84
      %p86 = scmp.ne.s32.totalorder %s74, %s75
      %p87 = scmp.eq.s32.totalorder %s30, 2
      %p88 = por %p86, %p87
      %p90 = scmp.ne.s32.totalorder %s75, %s89
      %p91 = scmp.eq.s32.totalorder %s30, 0
      %p92 = por %p90, %p91
      %s94 = sadd.s32 %s93, 1
      %p97 = scmp.eq.s32.totalorder %s24, 2
      %p98 = scmp.ne.s32.totalorder %s93, %s95
      %p99 = scmp.eq.s32.totalorder %s24, 0
      %p100 = por %p98, %p99
      %p101 = scmp.ne.s32.totalorder %s93, %s95
      %p102 = scmp.eq.s32.totalorder %s29, 2
      %p103 = por %p101, %p102
      %p104 = scmp.ne.s32.totalorder %s95, %s96
      %p105 = scmp.eq.s32.totalorder %s29, 0
      %p106 = por %p104, %p105
      %p107 = scmp.ne.s32.totalorder %s95, %s96
      %p108 = scmp.eq.s32.totalorder %s30, 2
      %p109 = por %p107, %p108
      %p111 = scmp.ne.s32.totalorder %s96, %s110
      %p112 = scmp.eq.s32.totalorder %s30, 0
      %p113 = por %p111, %p112
      %s115 = sadd.s32 %s114, 1
      %p118 = scmp.eq.s32.totalorder %s24, 2
      %p119 = scmp.ne.s32.totalorder %s114, %s116
      %p120 = scmp.eq.s32.totalorder %s24, 0
      %p121 = por %p119, %p120
      %p122 = scmp.ne.s32.totalorder %s114, %s116
      %p123 = scmp.eq.s32.totalorder %s29, 2
      %p124 = por %p122, %p123
      %p125 = scmp.ne.s32.totalorder %s116, %s117
      %p126 = scmp.eq.s32.totalorder %s29, 0
      %p127 = por %p125, %p126
      %p128 = scmp.ne.s32.totalorder %s116, %s117
      %p129 = scmp.eq.s32.totalorder %s30, 2
      %p130 = por %p128, %p129
      %p132 = scmp.ne.s32.totalorder %s117, %s131
      %p133 = scmp.eq.s32.totalorder %s30, 0
      %p134 = por %p132, %p133
      %s135 = ssub.s32 %s31, %s43
      %p136 = scmp.eq.s32.totalorder %s135, 0
      %s138 = sadd.s32 %s137, 1
      %s139 = scalar_select %p136, %s137, %s138
      %p142 = pneg %p136
      %p143 = scmp.eq.s32.totalorder %s24, 2
      %p144 = por %p142, %p143
      %p145 = scmp.ne.s32.totalorder %s137, %s140
      %p146 = scmp.eq.s32.totalorder %s24, 0
      %p147 = por %p145, %p146
      %p148 = scmp.ne.s32.totalorder %s137, %s140
      %p149 = scmp.eq.s32.totalorder %s29, 2
      %p150 = por %p148, %p149
      %p151 = scmp.ne.s32.totalorder %s140, %s141
      %p152 = scmp.eq.s32.totalorder %s29, 0
      %p153 = por %p151, %p152
      %p154 = scmp.ne.s32.totalorder %s140, %s141
      %p155 = scmp.eq.s32.totalorder %s30, 2
      %p156 = por %p154, %p155
      %p158 = scmp.ne.s32.totalorder %s141, %s157
      %p159 = scmp.eq.s32.totalorder %s30, 0
      %p160 = por %p158, %p159
      %s161 = ssub.s32 %s32, %s39
      %s162 = ssub.s32 %s31, %s43
      %s163 = sor.u32 %s161, %s162
      %p164 = scmp.eq.s32.totalorder %s163, 0
      %s166 = sadd.s32 %s165, 1
      %s167 = scalar_select %p164, %s165, %s166
      %p170 = pneg %p164
      %p171 = scmp.eq.s32.totalorder %s24, 2
      %p172 = por %p170, %p171
      %p173 = scmp.ne.s32.totalorder %s165, %s168
      %p174 = scmp.eq.s32.totalorder %s24, 0
      %p175 = por %p173, %p174
      %p176 = scmp.ne.s32.totalorder %s165, %s168
      %p177 = scmp.eq.s32.totalorder %s29, 2
      %p178 = por %p176, %p177
      %p179 = scmp.ne.s32.totalorder %s168, %s169
      %p180 = scmp.eq.s32.totalorder %s29, 0
      %p181 = por %p179, %p180
      %p182 = scmp.ne.s32.totalorder %s168, %s169
      %p183 = scmp.eq.s32.totalorder %s30, 2
      %p184 = por %p182, %p183
      %p186 = scmp.ne.s32.totalorder %s169, %s185
      %p187 = scmp.eq.s32.totalorder %s30, 0
      %p188 = por %p186, %p187
      %s189 = ssub.s32 %s31, %s43
      %p190 = scmp.eq.s32.totalorder %s189, 0
      %s192 = sadd.s32 %s191, 1
      %s193 = scalar_select %p190, %s191, %s192
      %p196 = pneg %p190
      %p197 = scmp.eq.s32.totalorder %s24, 2
      %p198 = por %p196, %p197
      %p199 = scmp.ne.s32.totalorder %s191, %s194
      %p200 = scmp.eq.s32.totalorder %s24, 0
      %p201 = por %p199, %p200
      %p202 = scmp.ne.s32.totalorder %s191, %s194
      %p203 = scmp.eq.s32.totalorder %s29, 2
      %p204 = por %p202, %p203
      %p205 = scmp.ne.s32.totalorder %s194, %s195
      %p206 = scmp.eq.s32.totalorder %s29, 0
      %p207 = por %p205, %p206
      %p208 = scmp.ne.s32.totalorder %s194, %s195
      %p209 = scmp.eq.s32.totalorder %s30, 2
      %p210 = por %p208, %p209
      %p212 = scmp.ne.s32.totalorder %s195, %s211
      %p213 = scmp.eq.s32.totalorder %s30, 0
      %p214 = por %p212, %p213
      %s215 = ssub.s32 %s31, %s43
      %p216 = scmp.eq.s32.totalorder %s215, 0
      %s218 = sadd.s32 %s217, 1
      %s219 = scalar_select %p216, %s217, %s218
      %p222 = pneg %p216
      %p223 = scmp.eq.s32.totalorder %s24, 2
      %p224 = por %p222, %p223
      %p225 = scmp.ne.s32.totalorder %s217, %s220
      %p226 = scmp.eq.s32.totalorder %s24, 0
      %p227 = por %p225, %p226
      %p228 = scmp.ne.s32.totalorder %s217, %s220
      %p229 = scmp.eq.s32.totalorder %s29, 2
      %p230 = por %p228, %p229
      %p231 = scmp.ne.s32.totalorder %s220, %s221
      %p232 = scmp.eq.s32.totalorder %s29, 0
      %p233 = por %p231, %p232
      %p234 = scmp.ne.s32.totalorder %s220, %s221
      %p235 = scmp.eq.s32.totalorder %s30, 2
      %p236 = por %p234, %p235
      %p238 = scmp.ne.s32.totalorder %s221, %s237
      %p239 = scmp.eq.s32.totalorder %s30, 0
      %p240 = por %p238, %p239
      %p241 = scmp.le.s32.totalorder 1, %s24
      %p242 = scmp.lt.s32.totalorder %s24, 4
      %p243 = pnand %p241, %p242
      %p244 = pneg %p243
      // Predicated region
      $region9: #{tpu_custom_call.1} parent=5 // pred_check
        _
      $region10: #{tpu_custom_call.1} parent=5 // pred_check_branch
        %246 = sbr.rel (%p243) target = $region12
      $region11: #{tpu_custom_call.1} parent=5 // pred_region
        %s247 = ssub.s32 %s24, 1
        // Predicated region
        $region13: #{tpu_custom_call.1} parent=11 // pred_check
          %p248 = pneg %p85
        $region14: #{tpu_custom_call.1} parent=11 // pred_check_branch
          %250 = sbr.rel (%p248) target = $region16
        $region15: #{tpu_custom_call.1} parent=11 // pred_region
          %252 = vsyncadd [#allocation11], 0
          %s253 = sshll.u32 %s2, 4
          %s254 = int_to_ptr.hbm [resolvable:$true] %s253
          %s255 = sshll.u32 [#allocation10], 4
          %s256 = int_to_ptr.vmem [resolvable:$true] %s255
          %261 = dma.hbm_to_vmem [thread:$0]  %s254, 4096, %s256, [#allocation11], 256, 256, 16
        $region16: #{tpu_custom_call.1} parent=11 // pred_fallthru
          _
        // Predicated region
        $region17: #{tpu_custom_call.1} parent=11 // pred_check
          %p262 = pneg %p106
        $region18: #{tpu_custom_call.1} parent=11 // pred_check_branch
          %264 = sbr.rel (%p262) target = $region20
        $region19: #{tpu_custom_call.1} parent=11 // pred_region
          %266 = vsyncadd [#allocation11], 0
          %s267 = sshll.u32 %s3, 4
          %s268 = int_to_ptr.hbm [resolvable:$true] %s267
          %s269 = sshll.u32 [#allocation12], 4
          %s270 = int_to_ptr.vmem [resolvable:$true] %s269
          %275 = dma.hbm_to_vmem [thread:$0]  %s268, 4096, %s270, [#allocation11], 256, 256, 16
        $region20: #{tpu_custom_call.1} parent=11 // pred_fallthru
          _
        // Predicated region
        $region21: #{tpu_custom_call.1} parent=11 // pred_check
          %p276 = pneg %p127
        $region22: #{tpu_custom_call.1} parent=11 // pred_check_branch
          %278 = sbr.rel (%p276) target = $region24
        $region23: #{tpu_custom_call.1} parent=11 // pred_region
          _
        $region24: #{tpu_custom_call.1} parent=11 // pred_fallthru
          _
        // Predicated region
        $region25: #{tpu_custom_call.1} parent=11 // pred_check
          %p279 = pneg %p153
        $region26: #{tpu_custom_call.1} parent=11 // pred_check_branch
          %281 = sbr.rel (%p279) target = $region28
        $region27: #{tpu_custom_call.1} parent=11 // pred_region
          %p282 = scmp.lt.s32.totalorder %s33, 0
          %s283 = scalar_select %p282, %s33, 0
          %s284 = smul.addr %s283, 8
          %s285 = scalar_lea.vmem %s5, %s284
        $region28: #{tpu_custom_call.1} parent=11 // pred_fallthru
          _
      $region12: #{tpu_custom_call.1} parent=5 // pred_fallthru
        _
      %p286 = scmp.lt.s32.totalorder %s24, 3
      // Predicated region
      $region29: #{tpu_custom_call.1} parent=5 // pred_check
        %p287 = pneg %p286
      $region30: #{tpu_custom_call.1} parent=5 // pred_check_branch
        %289 = sbr.rel (%p287) target = $region32
      $region31: #{tpu_custom_call.1} parent=5 // pred_region
        // Predicated region
        $region33: #{tpu_custom_call.1} parent=31 // pred_check
          %p290 = pneg %p58
        $region34: #{tpu_custom_call.1} parent=31 // pred_check_branch
          %292 = sbr.rel (%p290) target = $region36
        $region35: #{tpu_custom_call.1} parent=31 // pred_region
          %s293 = sand.u32 %s48, 1
          %s294 = scalar_lea.sflag [#allocation8], %s293
          %s295 = sand.u32 %s48, 1
          %s296 = smul.addr %s295, 16
          %s297 = scalar_lea.vmem [#allocation7], %s296
          %s298 = smul.u32 4, %s32
          %300 = vsyncadd %s294, 0
          %s301 = smul.addr %s31, 12
          %s302 = sadd.s32 %s298, %s301
          %s303 = smul.addr %s302, 4
          %s304 = scalar_lea.hbm %s1, %s303
          %s305 = sshll.u32 %s304, 4
          %s306 = int_to_ptr.hbm [resolvable:$true] %s305
          %s307 = sshll.u32 %s297, 4
          %s308 = int_to_ptr.vmem [resolvable:$true] %s307
          %313 = dma.hbm_to_vmem [thread:$0]  %s306, 256, %s308, %s294, 64, 64, 4
        $region36: #{tpu_custom_call.1} parent=31 // pred_fallthru
          _
      $region32: #{tpu_custom_call.1} parent=5 // pred_fallthru
        _
      %p314 = scmp.le.s32.totalorder 1, %s24
      %p315 = scmp.lt.s32.totalorder %s24, 4
      %p316 = pnand %p314, %p315
      %p317 = pneg %p316
      // Predicated region
      $region37: #{tpu_custom_call.1} parent=5 // pred_check
        _
      $region38: #{tpu_custom_call.1} parent=5 // pred_check_branch
        %319 = sbr.rel (%p316) target = $region40
      $region39: #{tpu_custom_call.1} parent=5 // pred_region
        %s320 = ssub.s32 %s24, 1
        %s321 = sand.u32 %s51, 1
        %s322 = scalar_lea.sflag [#allocation8], %s321
        %s323 = sand.u32 %s51, 1
        %s324 = smul.addr %s323, 16
        %s325 = scalar_lea.vmem [#allocation7], %s324
        // Predicated region
        $region41: #{tpu_custom_call.1} parent=39 // pred_check
          %p326 = pneg %p64
        $region42: #{tpu_custom_call.1} parent=39 // pred_check_branch
          %328 = sbr.rel (%p326) target = $region44
        $region43: #{tpu_custom_call.1} parent=39 // pred_region
          %330 = dma.done %s322, 256
        $region44: #{tpu_custom_call.1} parent=39 // pred_fallthru
          _
        // Predicated region
        $region45: #{tpu_custom_call.1} parent=39 // pred_check
          %p331 = pneg %p85
        $region46: #{tpu_custom_call.1} parent=39 // pred_check_branch
          %333 = sbr.rel (%p331) target = $region48
        $region47: #{tpu_custom_call.1} parent=39 // pred_region
          %335 = dma.done [#allocation11], 4096
        $region48: #{tpu_custom_call.1} parent=39 // pred_fallthru
          _
        // Predicated region
        $region49: #{tpu_custom_call.1} parent=39 // pred_check
          %p336 = pneg %p106
        $region50: #{tpu_custom_call.1} parent=39 // pred_check_branch
          %338 = sbr.rel (%p336) target = $region52
        $region51: #{tpu_custom_call.1} parent=39 // pred_region
          %340 = dma.done [#allocation11], 4096
        $region52: #{tpu_custom_call.1} parent=39 // pred_fallthru
          _
        %s341 = sand.u32 %s51, 1
        %s342 = scalar_lea.sflag [#allocation8], %s341
        %s343 = sand.u32 %s51, 1
        %s344 = smul.addr %s343, 16
        %s345 = scalar_lea.vmem [#allocation7], %s344
        %p346 = pneg %p64
        %p347 = pneg %p61
        %p348 = pneg %p85
        %p349 = pneg %p82
        %p350 = pneg %p106
        %p351 = pneg %p103
        %p352 = pneg %p127
        %p353 = pneg %p124
        %p354 = scmp.lt.s32.totalorder %s33, 0
        %s355 = scalar_select %p354, %s33, 0
        %s356 = smul.addr %s355, 8
        %s357 = scalar_lea.vmem %s5, %s356
        %p358 = pneg %p153
        %p359 = pneg %p150
        %p360 = pneg %p181
        %p361 = pneg %p178
        %s362 = sand.u32 %s168, 1
        %s363 = scalar_lea.sflag [#allocation9], %s362
        %s364 = sand.u32 %s168, 1
        %s365 = smul.addr %s364, 16
        %s366 = scalar_lea.vmem [#allocation13], %s365
        %p367 = pneg %p207
        %p368 = pneg %p204
        %p369 = pneg %p233
        %p370 = pneg %p230
        %s371 = smul.u32 4, %s34
        %p372 = scmp.lt.s32.totalorder %s33, 0
        %s373 = scalar_select %p372, %s33, 0
        %s374 = smul.addr %s373, 8
        %s375 = scalar_lea.vmem %s5, %s374
        %s376 = smul.u32 4, %s34
        %s378 = smul.u32 %s34, 4
        %s379 = sld [smem:[#allocation6 + %s33]]
        %p380 = scmp.eq.s32.totalorder %s34, 0
        // Predicated region
        $region53: #{tpu_custom_call.1} parent=39 // pred_check
          %p381 = pneg %p380
        $region54: #{tpu_custom_call.1} parent=39 // pred_check_branch
          %383 = sbr.rel (%p381) target = $region56
        $region55: #{tpu_custom_call.1} parent=39 // pred_region
          %384 = vst [vmem:[#allocation3] sm:$0xff] 0.0
          %385 = vst [vmem:[#allocation4] sm:$0xff] 0.0
        $region56: #{tpu_custom_call.1} parent=39 // pred_fallthru
          _
        %p386 = scmp.lt.s32.totalorder %s378, %s379
        // Predicated region
        $region57: #{tpu_custom_call.1} parent=39 // pred_check
          %p387 = pneg %p386
        $region58: #{tpu_custom_call.1} parent=39 // pred_check_branch
          %389 = sbr.rel (%p387) target = $region60
        $region59: #{tpu_custom_call.1} parent=39 // pred_region
          %v390 = vld [vmem:[%s325] sm:$0xf]
          %v391 = vld [vmem:[%s325 + $0x4] sm:$0xf]
          %v392 = vld [vmem:[%s325 + $0x8] sm:$0xf]
          %v393 = vld [vmem:[%s325 + $0xc] sm:$0xf]
          %v394 = vld [vmem:[#allocation10] sm:$0xff]
          %v395 = vld [vmem:[#allocation10 + $0x8] sm:$0xff]
          %v396 = vld [vmem:[#allocation10 + $0x10] sm:$0xff]
          %v397 = vld [vmem:[#allocation10 + $0x18] sm:$0xff]
          %v398 = vld [vmem:[#allocation10 + $0x20] sm:$0xff]
          %v399 = vld [vmem:[#allocation10 + $0x28] sm:$0xff]
          %v400 = vld [vmem:[#allocation10 + $0x30] sm:$0xff]
          %v401 = vld [vmem:[#allocation10 + $0x38] sm:$0xff]
          %v402 = vld [vmem:[#allocation10 + $0x40] sm:$0xff]
          %v403 = vld [vmem:[#allocation10 + $0x48] sm:$0xff]
          %v404 = vld [vmem:[#allocation10 + $0x50] sm:$0xff]
          %v405 = vld [vmem:[#allocation10 + $0x58] sm:$0xff]
          %v406 = vld [vmem:[#allocation10 + $0x60] sm:$0xff]
          %v407 = vld [vmem:[#allocation10 + $0x68] sm:$0xff]
          %v408 = vld [vmem:[#allocation10 + $0x70] sm:$0xff]
          %v409 = vld [vmem:[#allocation10 + $0x78] sm:$0xff]
          %v410 = vld [vmem:[#allocation10 + $0x80] sm:$0xff]
          %v411 = vld [vmem:[#allocation10 + $0x88] sm:$0xff]
          %v412 = vld [vmem:[#allocation10 + $0x90] sm:$0xff]
          %v413 = vld [vmem:[#allocation10 + $0x98] sm:$0xff]
          %v414 = vld [vmem:[#allocation10 + $0xa0] sm:$0xff]
          %v415 = vld [vmem:[#allocation10 + $0xa8] sm:$0xff]
          %v416 = vld [vmem:[#allocation10 + $0xb0] sm:$0xff]
          %v417 = vld [vmem:[#allocation10 + $0xb8] sm:$0xff]
          %v418 = vld [vmem:[#allocation10 + $0xc0] sm:$0xff]
          %v419 = vld [vmem:[#allocation10 + $0xc8] sm:$0xff]
          %v420 = vld [vmem:[#allocation10 + $0xd0] sm:$0xff]
          %v421 = vld [vmem:[#allocation10 + $0xd8] sm:$0xff]
          %v422 = vld [vmem:[#allocation10 + $0xe0] sm:$0xff]
          %v423 = vld [vmem:[#allocation10 + $0xe8] sm:$0xff]
          %v424 = vld [vmem:[#allocation10 + $0xf0] sm:$0xff]
          %v425 = vld [vmem:[#allocation10 + $0xf8] sm:$0xff]
          %v426 = vld [vmem:[%s4] sm:$0xf]
          %v428 = vperm.slane %v426, 0
          %v429 = vperm.slane %v426, 1
          %v430 = vperm.slane %v426, 2
          %v431 = vperm.slane %v426, 3
          %v440 = vunpack.c.l.b16 %v390
          %v441 = vunpack.c.l.b16 %v391
          %v442 = vunpack.c.l.b16 %v392
          %v443 = vunpack.c.l.b16 %v393
          %v444 = vpack.c.b16 %v441, %v440
          %v445 = vpack.c.b16 %v443, %v442
          %v480 = vunpack.c.l.b16 %v394
          %v481 = vunpack.c.h.b16 %v394
          %v482 = vunpack.c.l.b16 %v395
          %v483 = vunpack.c.h.b16 %v395
          %v484 = vunpack.c.l.b16 %v396
          %v485 = vunpack.c.h.b16 %v396
          %v486 = vunpack.c.l.b16 %v397
          %v487 = vunpack.c.h.b16 %v397
          %v488 = vunpack.c.l.b16 %v398
          %v489 = vunpack.c.h.b16 %v398
          %v490 = vunpack.c.l.b16 %v399
          %v491 = vunpack.c.h.b16 %v399
          %v492 = vunpack.c.l.b16 %v400
          %v493 = vunpack.c.h.b16 %v400
          %v494 = vunpack.c.l.b16 %v401
          %v495 = vunpack.c.h.b16 %v401
          %v496 = vunpack.c.l.b16 %v402
          %v497 = vunpack.c.h.b16 %v402
          %v498 = vunpack.c.l.b16 %v403
          %v499 = vunpack.c.h.b16 %v403
          %v500 = vunpack.c.l.b16 %v404
          %v501 = vunpack.c.h.b16 %v404
          %v502 = vunpack.c.l.b16 %v405
          %v503 = vunpack.c.h.b16 %v405
          %v504 = vunpack.c.l.b16 %v406
          %v505 = vunpack.c.h.b16 %v406
          %v506 = vunpack.c.l.b16 %v407
          %v507 = vunpack.c.h.b16 %v407
          %v508 = vunpack.c.l.b16 %v408
          %v509 = vunpack.c.h.b16 %v408
          %v510 = vunpack.c.l.b16 %v409
          %v511 = vunpack.c.h.b16 %v409
          %v512 = vunpack.c.l.b16 %v410
          %v513 = vunpack.c.h.b16 %v410
          %v514 = vunpack.c.l.b16 %v411
          %v515 = vunpack.c.h.b16 %v411
          %v516 = vunpack.c.l.b16 %v412
          %v517 = vunpack.c.h.b16 %v412
          %v518 = vunpack.c.l.b16 %v413
          %v519 = vunpack.c.h.b16 %v413
          %v520 = vunpack.c.l.b16 %v414
          %v521 = vunpack.c.h.b16 %v414
          %v522 = vunpack.c.l.b16 %v415
          %v523 = vunpack.c.h.b16 %v415
          %v524 = vunpack.c.l.b16 %v416
          %v525 = vunpack.c.h.b16 %v416
          %v526 = vunpack.c.l.b16 %v417
          %v527 = vunpack.c.h.b16 %v417
          %v528 = vunpack.c.l.b16 %v418
          %v529 = vunpack.c.h.b16 %v418
          %v530 = vunpack.c.l.b16 %v419
          %v531 = vunpack.c.h.b16 %v419
          %v532 = vunpack.c.l.b16 %v420
          %v533 = vunpack.c.h.b16 %v420
          %v534 = vunpack.c.l.b16 %v421
          %v535 = vunpack.c.h.b16 %v421
          %v536 = vunpack.c.l.b16 %v422
          %v537 = vunpack.c.h.b16 %v422
          %v538 = vunpack.c.l.b16 %v423
          %v539 = vunpack.c.h.b16 %v423
          %v540 = vunpack.c.l.b16 %v424
          %v541 = vunpack.c.h.b16 %v424
          %v542 = vunpack.c.l.b16 %v425
          %v543 = vunpack.c.h.b16 %v425
          %v544 = vpack.c.b16 %v484, %v480
          %v545 = vpack.c.b16 %v485, %v481
          %v546 = vpack.c.b16 %v486, %v482
          %v547 = vpack.c.b16 %v487, %v483
          %v548 = vpack.c.b16 %v492, %v488
          %v549 = vpack.c.b16 %v493, %v489
          %v550 = vpack.c.b16 %v494, %v490
          %v551 = vpack.c.b16 %v495, %v491
          %v552 = vpack.c.b16 %v500, %v496
          %v553 = vpack.c.b16 %v501, %v497
          %v554 = vpack.c.b16 %v502, %v498
          %v555 = vpack.c.b16 %v503, %v499
          %v556 = vpack.c.b16 %v508, %v504
          %v557 = vpack.c.b16 %v509, %v505
          %v558 = vpack.c.b16 %v510, %v506
          %v559 = vpack.c.b16 %v511, %v507
          %v560 = vpack.c.b16 %v516, %v512
          %v561 = vpack.c.b16 %v517, %v513
          %v562 = vpack.c.b16 %v518, %v514
          %v563 = vpack.c.b16 %v519, %v515
          %v564 = vpack.c.b16 %v524, %v520
          %v565 = vpack.c.b16 %v525, %v521
          %v566 = vpack.c.b16 %v526, %v522
          %v567 = vpack.c.b16 %v527, %v523
          %v568 = vpack.c.b16 %v532, %v528
          %v569 = vpack.c.b16 %v533, %v529
          %v570 = vpack.c.b16 %v534, %v530
          %v571 = vpack.c.b16 %v535, %v531
          %v572 = vpack.c.b16 %v540, %v536
          %v573 = vpack.c.b16 %v541, %v537
          %v574 = vpack.c.b16 %v542, %v538
          %v575 = vpack.c.b16 %v543, %v539
          %608 = vmatpush.bf16.msra.mxu0 %v572
          %609 = vmatpush.bf16.msra.mxu0 %v568
          %610 = vmatpush.bf16.msra.mxu0 %v564
          %611 = vmatpush.bf16.msra.mxu0 %v560
          %612 = vmatpush.bf16.msra.mxu0 %v556
          %613 = vmatpush.bf16.msra.mxu0 %v552
          %614 = vmatpush.bf16.msra.mxu0 %v548
          %615 = vmatpush.bf16.msra.mxu0 %v544
          %616 = vmatmul.bf16.gmra.mxu0 %v444
          %v617 = vpop.f32.mrf.mxu0
          %v618 = vadd.f32 %v428, %v617
          %v619 = vpop.f32.mrf.mxu0
          %v620 = vadd.f32 %v428, %v619
          %621 = vmatmul.bf16.gmra.mxu0 %v445
          %v622 = vpop.f32.mrf.mxu0
          %v623 = vadd.f32 %v428, %v622
          %v624 = vpop.f32.mrf.mxu0
          %v625 = vadd.f32 %v428, %v624
          %626 = vdwg.mxu0
          %627 = vmatpush.bf16.msra.mxu0 %v573
          %628 = vmatpush.bf16.msra.mxu0 %v569
          %629 = vmatpush.bf16.msra.mxu0 %v565
          %630 = vmatpush.bf16.msra.mxu0 %v561
          %631 = vmatpush.bf16.msra.mxu0 %v557
          %632 = vmatpush.bf16.msra.mxu0 %v553
          %633 = vmatpush.bf16.msra.mxu0 %v549
          %634 = vmatpush.bf16.msra.mxu0 %v545
          %635 = vmatmul.bf16.gmra.mxu0 %v444
          %v636 = vpop.f32.mrf.mxu0
          %v637 = vadd.f32 %v429, %v636
          %v638 = vpop.f32.mrf.mxu0
          %v639 = vadd.f32 %v429, %v638
          %640 = vmatmul.bf16.gmra.mxu0 %v445
          %v641 = vpop.f32.mrf.mxu0
          %v642 = vadd.f32 %v429, %v641
          %v643 = vpop.f32.mrf.mxu0
          %v644 = vadd.f32 %v429, %v643
          %645 = vdwg.mxu0
          %646 = vmatpush.bf16.msra.mxu0 %v574
          %647 = vmatpush.bf16.msra.mxu0 %v570
          %648 = vmatpush.bf16.msra.mxu0 %v566
          %649 = vmatpush.bf16.msra.mxu0 %v562
          %650 = vmatpush.bf16.msra.mxu0 %v558
          %651 = vmatpush.bf16.msra.mxu0 %v554
          %652 = vmatpush.bf16.msra.mxu0 %v550
          %653 = vmatpush.bf16.msra.mxu0 %v546
          %654 = vmatmul.bf16.gmra.mxu0 %v444
          %v655 = vpop.f32.mrf.mxu0
          %v656 = vadd.f32 %v430, %v655
          %v657 = vpop.f32.mrf.mxu0
          %v658 = vadd.f32 %v430, %v657
          %659 = vmatmul.bf16.gmra.mxu0 %v445
          %v660 = vpop.f32.mrf.mxu0
          %v661 = vadd.f32 %v430, %v660
          %v662 = vpop.f32.mrf.mxu0
          %v663 = vadd.f32 %v430, %v662
          %664 = vdwg.mxu0
          %665 = vmatpush.bf16.msra.mxu0 %v575
          %666 = vmatpush.bf16.msra.mxu0 %v571
          %667 = vmatpush.bf16.msra.mxu0 %v567
          %668 = vmatpush.bf16.msra.mxu0 %v563
          %669 = vmatpush.bf16.msra.mxu0 %v559
          %670 = vmatpush.bf16.msra.mxu0 %v555
          %671 = vmatpush.bf16.msra.mxu0 %v551
          %672 = vmatpush.bf16.msra.mxu0 %v547
          %673 = vmatmul.bf16.gmra.mxu0 %v444
          %v674 = vpop.f32.mrf.mxu0
          %v675 = vadd.f32 %v431, %v674
          %v676 = vpop.f32.mrf.mxu0
          %v677 = vadd.f32 %v431, %v676
          %678 = vmatmul.bf16.gmra.mxu0 %v445
          %v679 = vpop.f32.mrf.mxu0
          %v680 = vadd.f32 %v431, %v679
          %v681 = vpop.f32.mrf.mxu0
          %v682 = vadd.f32 %v431, %v681
          %683 = vdwg.mxu0
          %v684 = vpack.c.bf16 %v637, %v618
          %v685 = vpack.c.bf16 %v675, %v656
          %v686 = vpack.c.bf16 %v639, %v620
          %v687 = vpack.c.bf16 %v677, %v658
          %v688 = vpack.c.bf16 %v642, %v623
          %v689 = vpack.c.bf16 %v680, %v661
          %v690 = vpack.c.bf16 %v644, %v625
          %v691 = vpack.c.bf16 %v682, %v663
          %692 = vst [vmem:[#allocation2] sm:$0xff] %v684
          %693 = vst [vmem:[#allocation2 + $0x8] sm:$0xff] %v685
          %694 = vst [vmem:[#allocation2 + $0x10] sm:$0xff] %v686
          %695 = vst [vmem:[#allocation2 + $0x18] sm:$0xff] %v687
          %696 = vst [vmem:[#allocation2 + $0x20] sm:$0xff] %v688
          %697 = vst [vmem:[#allocation2 + $0x28] sm:$0xff] %v689
          %698 = vst [vmem:[#allocation2 + $0x30] sm:$0xff] %v690
          %699 = vst [vmem:[#allocation2 + $0x38] sm:$0xff] %v691
          %v700 = vld [vmem:[%s375] sm:$0xff]
          %v701 = vld [vmem:[#allocation3] sm:$0xff]
          %v702 = vld [vmem:[#allocation4] sm:$0xff]
          %s703 = smul.u32 0, 4
          %s704 = smul.addr %s703, 4
          %s705 = scalar_lea.vmem [#allocation2], %s704
          %v706 = vld [vmem:[%s705] sm:$0xff]
          %v707 = vld [vmem:[%s705 + $0x8] sm:$0xff]
          %v708 = vunpack.c.l.bf16 %v706
          %v709 = vunpack.c.h.bf16 %v706
          %v710 = vunpack.c.l.bf16 %v707
          %v711 = vunpack.c.h.bf16 %v707
          %v712 = vpack.c.bf16 %v701, %v701
          %v713 = vld [vmem:[#allocation12] sm:$0xff]
          %v714 = vld [vmem:[#allocation12 + $0x8] sm:$0xff]
          %v715 = vld [vmem:[#allocation12 + $0x10] sm:$0xff]
          %v716 = vld [vmem:[#allocation12 + $0x18] sm:$0xff]
          %v717 = vld [vmem:[#allocation12 + $0x20] sm:$0xff]
          %v718 = vld [vmem:[#allocation12 + $0x28] sm:$0xff]
          %v719 = vld [vmem:[#allocation12 + $0x30] sm:$0xff]
          %v720 = vld [vmem:[#allocation12 + $0x38] sm:$0xff]
          %v721 = vld [vmem:[#allocation12 + $0x40] sm:$0xff]
          %v722 = vld [vmem:[#allocation12 + $0x48] sm:$0xff]
          %v723 = vld [vmem:[#allocation12 + $0x50] sm:$0xff]
          %v724 = vld [vmem:[#allocation12 + $0x58] sm:$0xff]
          %v725 = vld [vmem:[#allocation12 + $0x60] sm:$0xff]
          %v726 = vld [vmem:[#allocation12 + $0x68] sm:$0xff]
          %v727 = vld [vmem:[#allocation12 + $0x70] sm:$0xff]
          %v728 = vld [vmem:[#allocation12 + $0x78] sm:$0xff]
          %v729 = vld [vmem:[#allocation12 + $0x80] sm:$0xff]
          %v730 = vld [vmem:[#allocation12 + $0x88] sm:$0xff]
          %v731 = vld [vmem:[#allocation12 + $0x90] sm:$0xff]
          %v732 = vld [vmem:[#allocation12 + $0x98] sm:$0xff]
          %v733 = vld [vmem:[#allocation12 + $0xa0] sm:$0xff]
          %v734 = vld [vmem:[#allocation12 + $0xa8] sm:$0xff]
          %v735 = vld [vmem:[#allocation12 + $0xb0] sm:$0xff]
          %v736 = vld [vmem:[#allocation12 + $0xb8] sm:$0xff]
          %v737 = vld [vmem:[#allocation12 + $0xc0] sm:$0xff]
          %v738 = vld [vmem:[#allocation12 + $0xc8] sm:$0xff]
          %v739 = vld [vmem:[#allocation12 + $0xd0] sm:$0xff]
          %v740 = vld [vmem:[#allocation12 + $0xd8] sm:$0xff]
          %v741 = vld [vmem:[#allocation12 + $0xe0] sm:$0xff]
          %v742 = vld [vmem:[#allocation12 + $0xe8] sm:$0xff]
          %v743 = vld [vmem:[#allocation12 + $0xf0] sm:$0xff]
          %v744 = vld [vmem:[#allocation12 + $0xf8] sm:$0xff]
          %v777 = vunpack.c.l.b16 %v713
          %v778 = vunpack.c.h.b16 %v713
          %v779 = vunpack.c.l.b16 %v714
          %v780 = vunpack.c.h.b16 %v714
          %v781 = vunpack.c.l.b16 %v715
          %v782 = vunpack.c.h.b16 %v715
          %v783 = vunpack.c.l.b16 %v716
          %v784 = vunpack.c.h.b16 %v716
          %v785 = vunpack.c.l.b16 %v717
          %v786 = vunpack.c.h.b16 %v717
          %v787 = vunpack.c.l.b16 %v718
          %v788 = vunpack.c.h.b16 %v718
          %v789 = vunpack.c.l.b16 %v719
          %v790 = vunpack.c.h.b16 %v719
          %v791 = vunpack.c.l.b16 %v720
          %v792 = vunpack.c.h.b16 %v720
          %v793 = vunpack.c.l.b16 %v721
          %v794 = vunpack.c.h.b16 %v721
          %v795 = vunpack.c.l.b16 %v722
          %v796 = vunpack.c.h.b16 %v722
          %v797 = vunpack.c.l.b16 %v723
          %v798 = vunpack.c.h.b16 %v723
          %v799 = vunpack.c.l.b16 %v724
          %v800 = vunpack.c.h.b16 %v724
          %v801 = vunpack.c.l.b16 %v725
          %v802 = vunpack.c.h.b16 %v725
          %v803 = vunpack.c.l.b16 %v726
          %v804 = vunpack.c.h.b16 %v726
          %v805 = vunpack.c.l.b16 %v727
          %v806 = vunpack.c.h.b16 %v727
          %v807 = vunpack.c.l.b16 %v728
          %v808 = vunpack.c.h.b16 %v728
          %v809 = vunpack.c.l.b16 %v729
          %v810 = vunpack.c.h.b16 %v729
          %v811 = vunpack.c.l.b16 %v730
          %v812 = vunpack.c.h.b16 %v730
          %v813 = vunpack.c.l.b16 %v731
          %v814 = vunpack.c.h.b16 %v731
          %v815 = vunpack.c.l.b16 %v732
          %v816 = vunpack.c.h.b16 %v732
          %v817 = vunpack.c.l.b16 %v733
          %v818 = vunpack.c.h.b16 %v733
          %v819 = vunpack.c.l.b16 %v734
          %v820 = vunpack.c.h.b16 %v734
          %v821 = vunpack.c.l.b16 %v735
          %v822 = vunpack.c.h.b16 %v735
          %v823 = vunpack.c.l.b16 %v736
          %v824 = vunpack.c.h.b16 %v736
          %v825 = vunpack.c.l.b16 %v737
          %v826 = vunpack.c.h.b16 %v737
          %v827 = vunpack.c.l.b16 %v738
          %v828 = vunpack.c.h.b16 %v738
          %v829 = vunpack.c.l.b16 %v739
          %v830 = vunpack.c.h.b16 %v739
          %v831 = vunpack.c.l.b16 %v740
          %v832 = vunpack.c.h.b16 %v740
          %v833 = vunpack.c.l.b16 %v741
          %v834 = vunpack.c.h.b16 %v741
          %v835 = vunpack.c.l.b16 %v742
          %v836 = vunpack.c.h.b16 %v742
          %v837 = vunpack.c.l.b16 %v743
          %v838 = vunpack.c.h.b16 %v743
          %v839 = vunpack.c.l.b16 %v744
          %v840 = vunpack.c.h.b16 %v744
          %v841 = vpack.c.b16 %v781, %v777
          %v842 = vpack.c.b16 %v782, %v778
          %v843 = vpack.c.b16 %v783, %v779
          %v844 = vpack.c.b16 %v784, %v780
          %v845 = vpack.c.b16 %v789, %v785
          %v846 = vpack.c.b16 %v790, %v786
          %v847 = vpack.c.b16 %v791, %v787
          %v848 = vpack.c.b16 %v792, %v788
          %v849 = vpack.c.b16 %v797, %v793
          %v850 = vpack.c.b16 %v798, %v794
          %v851 = vpack.c.b16 %v799, %v795
          %v852 = vpack.c.b16 %v800, %v796
          %v853 = vpack.c.b16 %v805, %v801
          %v854 = vpack.c.b16 %v806, %v802
          %v855 = vpack.c.b16 %v807, %v803
          %v856 = vpack.c.b16 %v808, %v804
          %v857 = vpack.c.b16 %v813, %v809
          %v858 = vpack.c.b16 %v814, %v810
          %v859 = vpack.c.b16 %v815, %v811
          %v860 = vpack.c.b16 %v816, %v812
          %v861 = vpack.c.b16 %v821, %v817
          %v862 = vpack.c.b16 %v822, %v818
          %v863 = vpack.c.b16 %v823, %v819
          %v864 = vpack.c.b16 %v824, %v820
          %v865 = vpack.c.b16 %v829, %v825
          %v866 = vpack.c.b16 %v830, %v826
          %v867 = vpack.c.b16 %v831, %v827
          %v868 = vpack.c.b16 %v832, %v828
          %v869 = vpack.c.b16 %v837, %v833
          %v870 = vpack.c.b16 %v838, %v834
          %v871 = vpack.c.b16 %v839, %v835
          %v872 = vpack.c.b16 %v840, %v836
          %905 = vmatpush.bf16.msra.mxu0 %v869
          %906 = vmatpush.bf16.msra.mxu0 %v865
          %907 = vmatpush.bf16.msra.mxu0 %v861
          %908 = vmatpush.bf16.msra.mxu0 %v857
          %909 = vmatpush.bf16.msra.mxu0 %v853
          %910 = vmatpush.bf16.msra.mxu0 %v849
          %911 = vmatpush.bf16.msra.mxu0 %v845
          %912 = vmatpush.bf16.msra.mxu0 %v841
          %913 = vmatmul.bf16.gmra.mxu0 %v712
          %v914 = vpop.f32.mrf.mxu0
          %v915 = vadd.f32 0.0, %v914
          %v916 = vpop.f32.mrf.mxu0
          %917 = vdwg.mxu0
          %918 = vmatpush.bf16.msra.mxu0 %v870
          %919 = vmatpush.bf16.msra.mxu0 %v866
          %920 = vmatpush.bf16.msra.mxu0 %v862
          %921 = vmatpush.bf16.msra.mxu0 %v858
          %922 = vmatpush.bf16.msra.mxu0 %v854
          %923 = vmatpush.bf16.msra.mxu0 %v850
          %924 = vmatpush.bf16.msra.mxu0 %v846
          %925 = vmatpush.bf16.msra.mxu0 %v842
          %926 = vmatmul.bf16.gmra.mxu0 %v712
          %v927 = vpop.f32.mrf.mxu0
          %v928 = vadd.f32 0.0, %v927
          %v929 = vpop.f32.mrf.mxu0
          %930 = vdwg.mxu0
          %931 = vmatpush.bf16.msra.mxu0 %v871
          %932 = vmatpush.bf16.msra.mxu0 %v867
          %933 = vmatpush.bf16.msra.mxu0 %v863
          %934 = vmatpush.bf16.msra.mxu0 %v859
          %935 = vmatpush.bf16.msra.mxu0 %v855
          %936 = vmatpush.bf16.msra.mxu0 %v851
          %937 = vmatpush.bf16.msra.mxu0 %v847
          %938 = vmatpush.bf16.msra.mxu0 %v843
          %939 = vmatmul.bf16.gmra.mxu0 %v712
          %v940 = vpop.f32.mrf.mxu0
          %v941 = vadd.f32 0.0, %v940
          %v942 = vpop.f32.mrf.mxu0
          %943 = vdwg.mxu0
          %944 = vmatpush.bf16.msra.mxu0 %v872
          %945 = vmatpush.bf16.msra.mxu0 %v868
          %946 = vmatpush.bf16.msra.mxu0 %v864
          %947 = vmatpush.bf16.msra.mxu0 %v860
          %948 = vmatpush.bf16.msra.mxu0 %v856
          %949 = vmatpush.bf16.msra.mxu0 %v852
          %950 = vmatpush.bf16.msra.mxu0 %v848
          %951 = vmatpush.bf16.msra.mxu0 %v844
          %952 = vmatmul.bf16.gmra.mxu0 %v712
          %v953 = vpop.f32.mrf.mxu0
          %v954 = vadd.f32 0.0, %v953
          %v955 = vpop.f32.mrf.mxu0
          %956 = vdwg.mxu0
          %v957 = vadd.f32 %v708, %v915
          %v958 = vadd.f32 %v709, %v928
          %v959 = vadd.f32 %v710, %v941
          %v960 = vadd.f32 %v711, %v954
          %v961 = vmul.f32 %v957, 0.5
          %v962 = vtanh.pop %v961
          %v963 = vmul.f32 %v962, 0.5
          %v964 = vadd.f32 %v963, 0.5
          %v965 = vmul.f32 %v958, 0.5
          %v966 = vtanh.pop %v965
          %v967 = vmul.f32 %v966, 0.5
          %v968 = vadd.f32 %v967, 0.5
          %v969 = vtanh.pop %v959
          %v970 = vmul.f32 %v960, 0.5
          %v971 = vtanh.pop %v970
          %v972 = vmul.f32 %v971, 0.5
          %v973 = vadd.f32 %v972, 0.5
          %v974 = vmul.f32 %v968, %v702
          %v975 = vmul.f32 %v964, %v969
          %v976 = vadd.f32 %v974, %v975
          %v977 = vtanh.pop %v976
          %v978 = vmul.f32 %v973, %v977
          %v979 = vstv %s378
          %vm980 = vcmp.lt.s32.totalorder %v979, %v700
          %v981 = vsel %vm980, 1, 0
          %982 = vset.pattern.permute.xlu0 0
          %983 = vperm.xlu0 %982, %v981
          %v984 = vpop.permute.xlu0 %983
          %vm985 = vcmp.eq.s32.totalorder %v984, 1
          %v986 = vsel %vm985, %v978, 0.0
          %v987 = vpack.c.bf16 %v986, %v986
          %988 = vst [vmem:[%s366] sm:$0xf] %v987
          %v989 = vsel %vm985, %v978, %v701
          %v990 = vsel %vm985, %v976, %v702
          %s991 = smul.u32 1, 4
          %s992 = smul.addr %s991, 4
          %s993 = scalar_lea.vmem [#allocation2], %s992
          %v994 = vld [vmem:[%s993] sm:$0xff]
          %v995 = vld [vmem:[%s993 + $0x8] sm:$0xff]
          %v996 = vunpack.c.l.bf16 %v994
          %v997 = vunpack.c.h.bf16 %v994
          %v998 = vunpack.c.l.bf16 %v995
          %v999 = vunpack.c.h.bf16 %v995
          %v1000 = vpack.c.bf16 %v989, %v989
          %v1001 = vld [vmem:[#allocation12] sm:$0xff]
          %v1002 = vld [vmem:[#allocation12 + $0x8] sm:$0xff]
          %v1003 = vld [vmem:[#allocation12 + $0x10] sm:$0xff]
          %v1004 = vld [vmem:[#allocation12 + $0x18] sm:$0xff]
          %v1005 = vld [vmem:[#allocation12 + $0x20] sm:$0xff]
          %v1006 = vld [vmem:[#allocation12 + $0x28] sm:$0xff]
          %v1007 = vld [vmem:[#allocation12 + $0x30] sm:$0xff]
          %v1008 = vld [vmem:[#allocation12 + $0x38] sm:$0xff]
          %v1009 = vld [vmem:[#allocation12 + $0x40] sm:$0xff]
          %v1010 = vld [vmem:[#allocation12 + $0x48] sm:$0xff]
          %v1011 = vld [vmem:[#allocation12 + $0x50] sm:$0xff]
          %v1012 = vld [vmem:[#allocation12 + $0x58] sm:$0xff]
          %v1013 = vld [vmem:[#allocation12 + $0x60] sm:$0xff]
          %v1014 = vld [vmem:[#allocation12 + $0x68] sm:$0xff]
          %v1015 = vld [vmem:[#allocation12 + $0x70] sm:$0xff]
          %v1016 = vld [vmem:[#allocation12 + $0x78] sm:$0xff]
          %v1017 = vld [vmem:[#allocation12 + $0x80] sm:$0xff]
          %v1018 = vld [vmem:[#allocation12 + $0x88] sm:$0xff]
          %v1019 = vld [vmem:[#allocation12 + $0x90] sm:$0xff]
          %v1020 = vld [vmem:[#allocation12 + $0x98] sm:$0xff]
          %v1021 = vld [vmem:[#allocation12 + $0xa0] sm:$0xff]
          %v1022 = vld [vmem:[#allocation12 + $0xa8] sm:$0xff]
          %v1023 = vld [vmem:[#allocation12 + $0xb0] sm:$0xff]
          %v1024 = vld [vmem:[#allocation12 + $0xb8] sm:$0xff]
          %v1025 = vld [vmem:[#allocation12 + $0xc0] sm:$0xff]
          %v1026 = vld [vmem:[#allocation12 + $0xc8] sm:$0xff]
          %v1027 = vld [vmem:[#allocation12 + $0xd0] sm:$0xff]
          %v1028 = vld [vmem:[#allocation12 + $0xd8] sm:$0xff]
          %v1029 = vld [vmem:[#allocation12 + $0xe0] sm:$0xff]
          %v1030 = vld [vmem:[#allocation12 + $0xe8] sm:$0xff]
          %v1031 = vld [vmem:[#allocation12 + $0xf0] sm:$0xff]
          %v1032 = vld [vmem:[#allocation12 + $0xf8] sm:$0xff]
          %v1065 = vunpack.c.l.b16 %v1001
          %v1066 = vunpack.c.h.b16 %v1001
          %v1067 = vunpack.c.l.b16 %v1002
          %v1068 = vunpack.c.h.b16 %v1002
          %v1069 = vunpack.c.l.b16 %v1003
          %v1070 = vunpack.c.h.b16 %v1003
          %v1071 = vunpack.c.l.b16 %v1004
          %v1072 = vunpack.c.h.b16 %v1004
          %v1073 = vunpack.c.l.b16 %v1005
          %v1074 = vunpack.c.h.b16 %v1005
          %v1075 = vunpack.c.l.b16 %v1006
          %v1076 = vunpack.c.h.b16 %v1006
          %v1077 = vunpack.c.l.b16 %v1007
          %v1078 = vunpack.c.h.b16 %v1007
          %v1079 = vunpack.c.l.b16 %v1008
          %v1080 = vunpack.c.h.b16 %v1008
          %v1081 = vunpack.c.l.b16 %v1009
          %v1082 = vunpack.c.h.b16 %v1009
          %v1083 = vunpack.c.l.b16 %v1010
          %v1084 = vunpack.c.h.b16 %v1010
          %v1085 = vunpack.c.l.b16 %v1011
          %v1086 = vunpack.c.h.b16 %v1011
          %v1087 = vunpack.c.l.b16 %v1012
          %v1088 = vunpack.c.h.b16 %v1012
          %v1089 = vunpack.c.l.b16 %v1013
          %v1090 = vunpack.c.h.b16 %v1013
          %v1091 = vunpack.c.l.b16 %v1014
          %v1092 = vunpack.c.h.b16 %v1014
          %v1093 = vunpack.c.l.b16 %v1015
          %v1094 = vunpack.c.h.b16 %v1015
          %v1095 = vunpack.c.l.b16 %v1016
          %v1096 = vunpack.c.h.b16 %v1016
          %v1097 = vunpack.c.l.b16 %v1017
          %v1098 = vunpack.c.h.b16 %v1017
          %v1099 = vunpack.c.l.b16 %v1018
          %v1100 = vunpack.c.h.b16 %v1018
          %v1101 = vunpack.c.l.b16 %v1019
          %v1102 = vunpack.c.h.b16 %v1019
          %v1103 = vunpack.c.l.b16 %v1020
          %v1104 = vunpack.c.h.b16 %v1020
          %v1105 = vunpack.c.l.b16 %v1021
          %v1106 = vunpack.c.h.b16 %v1021
          %v1107 = vunpack.c.l.b16 %v1022
          %v1108 = vunpack.c.h.b16 %v1022
          %v1109 = vunpack.c.l.b16 %v1023
          %v1110 = vunpack.c.h.b16 %v1023
          %v1111 = vunpack.c.l.b16 %v1024
          %v1112 = vunpack.c.h.b16 %v1024
          %v1113 = vunpack.c.l.b16 %v1025
          %v1114 = vunpack.c.h.b16 %v1025
          %v1115 = vunpack.c.l.b16 %v1026
          %v1116 = vunpack.c.h.b16 %v1026
          %v1117 = vunpack.c.l.b16 %v1027
          %v1118 = vunpack.c.h.b16 %v1027
          %v1119 = vunpack.c.l.b16 %v1028
          %v1120 = vunpack.c.h.b16 %v1028
          %v1121 = vunpack.c.l.b16 %v1029
          %v1122 = vunpack.c.h.b16 %v1029
          %v1123 = vunpack.c.l.b16 %v1030
          %v1124 = vunpack.c.h.b16 %v1030
          %v1125 = vunpack.c.l.b16 %v1031
          %v1126 = vunpack.c.h.b16 %v1031
          %v1127 = vunpack.c.l.b16 %v1032
          %v1128 = vunpack.c.h.b16 %v1032
          %v1129 = vpack.c.b16 %v1069, %v1065
          %v1130 = vpack.c.b16 %v1070, %v1066
          %v1131 = vpack.c.b16 %v1071, %v1067
          %v1132 = vpack.c.b16 %v1072, %v1068
          %v1133 = vpack.c.b16 %v1077, %v1073
          %v1134 = vpack.c.b16 %v1078, %v1074
          %v1135 = vpack.c.b16 %v1079, %v1075
          %v1136 = vpack.c.b16 %v1080, %v1076
          %v1137 = vpack.c.b16 %v1085, %v1081
          %v1138 = vpack.c.b16 %v1086, %v1082
          %v1139 = vpack.c.b16 %v1087, %v1083
          %v1140 = vpack.c.b16 %v1088, %v1084
          %v1141 = vpack.c.b16 %v1093, %v1089
          %v1142 = vpack.c.b16 %v1094, %v1090
          %v1143 = vpack.c.b16 %v1095, %v1091
          %v1144 = vpack.c.b16 %v1096, %v1092
          %v1145 = vpack.c.b16 %v1101, %v1097
          %v1146 = vpack.c.b16 %v1102, %v1098
          %v1147 = vpack.c.b16 %v1103, %v1099
          %v1148 = vpack.c.b16 %v1104, %v1100
          %v1149 = vpack.c.b16 %v1109, %v1105
          %v1150 = vpack.c.b16 %v1110, %v1106
          %v1151 = vpack.c.b16 %v1111, %v1107
          %v1152 = vpack.c.b16 %v1112, %v1108
          %v1153 = vpack.c.b16 %v1117, %v1113
          %v1154 = vpack.c.b16 %v1118, %v1114
          %v1155 = vpack.c.b16 %v1119, %v1115
          %v1156 = vpack.c.b16 %v1120, %v1116
          %v1157 = vpack.c.b16 %v1125, %v1121
          %v1158 = vpack.c.b16 %v1126, %v1122
          %v1159 = vpack.c.b16 %v1127, %v1123
          %v1160 = vpack.c.b16 %v1128, %v1124
          %1193 = vmatpush.bf16.msra.mxu0 %v1157
          %1194 = vmatpush.bf16.msra.mxu0 %v1153
          %1195 = vmatpush.bf16.msra.mxu0 %v1149
          %1196 = vmatpush.bf16.msra.mxu0 %v1145
          %1197 = vmatpush.bf16.msra.mxu0 %v1141
          %1198 = vmatpush.bf16.msra.mxu0 %v1137
          %1199 = vmatpush.bf16.msra.mxu0 %v1133
          %1200 = vmatpush.bf16.msra.mxu0 %v1129
          %1201 = vmatmul.bf16.gmra.mxu0 %v1000
          %v1202 = vpop.f32.mrf.mxu0
          %v1203 = vadd.f32 0.0, %v1202
          %v1204 = vpop.f32.mrf.mxu0
          %1205 = vdwg.mxu0
          %1206 = vmatpush.bf16.msra.mxu0 %v1158
          %1207 = vmatpush.bf16.msra.mxu0 %v1154
          %1208 = vmatpush.bf16.msra.mxu0 %v1150
          %1209 = vmatpush.bf16.msra.mxu0 %v1146
          %1210 = vmatpush.bf16.msra.mxu0 %v1142
          %1211 = vmatpush.bf16.msra.mxu0 %v1138
          %1212 = vmatpush.bf16.msra.mxu0 %v1134
          %1213 = vmatpush.bf16.msra.mxu0 %v1130
          %1214 = vmatmul.bf16.gmra.mxu0 %v1000
          %v1215 = vpop.f32.mrf.mxu0
          %v1216 = vadd.f32 0.0, %v1215
          %v1217 = vpop.f32.mrf.mxu0
          %1218 = vdwg.mxu0
          %1219 = vmatpush.bf16.msra.mxu0 %v1159
          %1220 = vmatpush.bf16.msra.mxu0 %v1155
          %1221 = vmatpush.bf16.msra.mxu0 %v1151
          %1222 = vmatpush.bf16.msra.mxu0 %v1147
          %1223 = vmatpush.bf16.msra.mxu0 %v1143
          %1224 = vmatpush.bf16.msra.mxu0 %v1139
          %1225 = vmatpush.bf16.msra.mxu0 %v1135
          %1226 = vmatpush.bf16.msra.mxu0 %v1131
          %1227 = vmatmul.bf16.gmra.mxu0 %v1000
          %v1228 = vpop.f32.mrf.mxu0
          %v1229 = vadd.f32 0.0, %v1228
          %v1230 = vpop.f32.mrf.mxu0
          %1231 = vdwg.mxu0
          %1232 = vmatpush.bf16.msra.mxu0 %v1160
          %1233 = vmatpush.bf16.msra.mxu0 %v1156
          %1234 = vmatpush.bf16.msra.mxu0 %v1152
          %1235 = vmatpush.bf16.msra.mxu0 %v1148
          %1236 = vmatpush.bf16.msra.mxu0 %v1144
          %1237 = vmatpush.bf16.msra.mxu0 %v1140
          %1238 = vmatpush.bf16.msra.mxu0 %v1136
          %1239 = vmatpush.bf16.msra.mxu0 %v1132
          %1240 = vmatmul.bf16.gmra.mxu0 %v1000
          %v1241 = vpop.f32.mrf.mxu0
          %v1242 = vadd.f32 0.0, %v1241
          %v1243 = vpop.f32.mrf.mxu0
          %1244 = vdwg.mxu0
          %v1245 = vadd.f32 %v996, %v1203
          %v1246 = vadd.f32 %v997, %v1216
          %v1247 = vadd.f32 %v998, %v1229
          %v1248 = vadd.f32 %v999, %v1242
          %v1249 = vmul.f32 %v1245, 0.5
          %v1250 = vtanh.pop %v1249
          %v1251 = vmul.f32 %v1250, 0.5
          %v1252 = vadd.f32 %v1251, 0.5
          %v1253 = vmul.f32 %v1246, 0.5
          %v1254 = vtanh.pop %v1253
          %v1255 = vmul.f32 %v1254, 0.5
          %v1256 = vadd.f32 %v1255, 0.5
          %v1257 = vtanh.pop %v1247
          %v1258 = vmul.f32 %v1248, 0.5
          %v1259 = vtanh.pop %v1258
          %v1260 = vmul.f32 %v1259, 0.5
          %v1261 = vadd.f32 %v1260, 0.5
          %v1262 = vmul.f32 %v1256, %v990
          %v1263 = vmul.f32 %v1252, %v1257
          %v1264 = vadd.f32 %v1262, %v1263
          %v1265 = vtanh.pop %v1264
          %v1266 = vmul.f32 %v1261, %v1265
          %s1267 = sadd.s32 %s378, 1
          %v1268 = vstv %s1267
          %vm1269 = vcmp.lt.s32.totalorder %v1268, %v700
          %v1270 = vsel %vm1269, 1, 0
          %1271 = vset.pattern.permute.xlu0 0
          %1272 = vperm.xlu0 %1271, %v1270
          %v1273 = vpop.permute.xlu0 %1272
          %vm1274 = vcmp.eq.s32.totalorder %v1273, 1
          %v1275 = vsel %vm1274, %v1266, 0.0
          %v1276 = vpack.c.bf16 %v1275, %v1275
          %s1277 = scalar_lea.vmem %s366, 4 [#allocation13]
          %1278 = vst [vmem:[%s1277] sm:$0xf] %v1276
          %v1279 = vsel %vm1274, %v1266, %v989
          %v1280 = vsel %vm1274, %v1264, %v990
          %s1281 = smul.u32 2, 4
          %s1282 = smul.addr %s1281, 4
          %s1283 = scalar_lea.vmem [#allocation2], %s1282
          %v1284 = vld [vmem:[%s1283] sm:$0xff]
          %v1285 = vld [vmem:[%s1283 + $0x8] sm:$0xff]
          %v1286 = vunpack.c.l.bf16 %v1284
          %v1287 = vunpack.c.h.bf16 %v1284
          %v1288 = vunpack.c.l.bf16 %v1285
          %v1289 = vunpack.c.h.bf16 %v1285
          %v1290 = vpack.c.bf16 %v1279, %v1279
          %v1291 = vld [vmem:[#allocation12] sm:$0xff]
          %v1292 = vld [vmem:[#allocation12 + $0x8] sm:$0xff]
          %v1293 = vld [vmem:[#allocation12 + $0x10] sm:$0xff]
          %v1294 = vld [vmem:[#allocation12 + $0x18] sm:$0xff]
          %v1295 = vld [vmem:[#allocation12 + $0x20] sm:$0xff]
          %v1296 = vld [vmem:[#allocation12 + $0x28] sm:$0xff]
          %v1297 = vld [vmem:[#allocation12 + $0x30] sm:$0xff]
          %v1298 = vld [vmem:[#allocation12 + $0x38] sm:$0xff]
          %v1299 = vld [vmem:[#allocation12 + $0x40] sm:$0xff]
          %v1300 = vld [vmem:[#allocation12 + $0x48] sm:$0xff]
          %v1301 = vld [vmem:[#allocation12 + $0x50] sm:$0xff]
          %v1302 = vld [vmem:[#allocation12 + $0x58] sm:$0xff]
          %v1303 = vld [vmem:[#allocation12 + $0x60] sm:$0xff]
          %v1304 = vld [vmem:[#allocation12 + $0x68] sm:$0xff]
          %v1305 = vld [vmem:[#allocation12 + $0x70] sm:$0xff]
          %v1306 = vld [vmem:[#allocation12 + $0x78] sm:$0xff]
          %v1307 = vld [vmem:[#allocation12 + $0x80] sm:$0xff]
          %v1308 = vld [vmem:[#allocation12 + $0x88] sm:$0xff]
          %v1309 = vld [vmem:[#allocation12 + $0x90] sm:$0xff]
          %v1310 = vld [vmem:[#allocation12 + $0x98] sm:$0xff]
          %v1311 = vld [vmem:[#allocation12 + $0xa0] sm:$0xff]
          %v1312 = vld [vmem:[#allocation12 + $0xa8] sm:$0xff]
          %v1313 = vld [vmem:[#allocation12 + $0xb0] sm:$0xff]
          %v1314 = vld [vmem:[#allocation12 + $0xb8] sm:$0xff]
          %v1315 = vld [vmem:[#allocation12 + $0xc0] sm:$0xff]
          %v1316 = vld [vmem:[#allocation12 + $0xc8] sm:$0xff]
          %v1317 = vld [vmem:[#allocation12 + $0xd0] sm:$0xff]
          %v1318 = vld [vmem:[#allocation12 + $0xd8] sm:$0xff]
          %v1319 = vld [vmem:[#allocation12 + $0xe0] sm:$0xff]
          %v1320 = vld [vmem:[#allocation12 + $0xe8] sm:$0xff]
          %v1321 = vld [vmem:[#allocation12 + $0xf0] sm:$0xff]
          %v1322 = vld [vmem:[#allocation12 + $0xf8] sm:$0xff]
          %v1355 = vunpack.c.l.b16 %v1291
          %v1356 = vunpack.c.h.b16 %v1291
          %v1357 = vunpack.c.l.b16 %v1292
          %v1358 = vunpack.c.h.b16 %v1292
          %v1359 = vunpack.c.l.b16 %v1293
          %v1360 = vunpack.c.h.b16 %v1293
          %v1361 = vunpack.c.l.b16 %v1294
          %v1362 = vunpack.c.h.b16 %v1294
          %v1363 = vunpack.c.l.b16 %v1295
          %v1364 = vunpack.c.h.b16 %v1295
          %v1365 = vunpack.c.l.b16 %v1296
          %v1366 = vunpack.c.h.b16 %v1296
          %v1367 = vunpack.c.l.b16 %v1297
          %v1368 = vunpack.c.h.b16 %v1297
          %v1369 = vunpack.c.l.b16 %v1298
          %v1370 = vunpack.c.h.b16 %v1298
          %v1371 = vunpack.c.l.b16 %v1299
          %v1372 = vunpack.c.h.b16 %v1299
          %v1373 = vunpack.c.l.b16 %v1300
          %v1374 = vunpack.c.h.b16 %v1300
          %v1375 = vunpack.c.l.b16 %v1301
          %v1376 = vunpack.c.h.b16 %v1301
          %v1377 = vunpack.c.l.b16 %v1302
          %v1378 = vunpack.c.h.b16 %v1302
          %v1379 = vunpack.c.l.b16 %v1303
          %v1380 = vunpack.c.h.b16 %v1303
          %v1381 = vunpack.c.l.b16 %v1304
          %v1382 = vunpack.c.h.b16 %v1304
          %v1383 = vunpack.c.l.b16 %v1305
          %v1384 = vunpack.c.h.b16 %v1305
          %v1385 = vunpack.c.l.b16 %v1306
          %v1386 = vunpack.c.h.b16 %v1306
          %v1387 = vunpack.c.l.b16 %v1307
          %v1388 = vunpack.c.h.b16 %v1307
          %v1389 = vunpack.c.l.b16 %v1308
          %v1390 = vunpack.c.h.b16 %v1308
          %v1391 = vunpack.c.l.b16 %v1309
          %v1392 = vunpack.c.h.b16 %v1309
          %v1393 = vunpack.c.l.b16 %v1310
          %v1394 = vunpack.c.h.b16 %v1310
          %v1395 = vunpack.c.l.b16 %v1311
          %v1396 = vunpack.c.h.b16 %v1311
          %v1397 = vunpack.c.l.b16 %v1312
          %v1398 = vunpack.c.h.b16 %v1312
          %v1399 = vunpack.c.l.b16 %v1313
          %v1400 = vunpack.c.h.b16 %v1313
          %v1401 = vunpack.c.l.b16 %v1314
          %v1402 = vunpack.c.h.b16 %v1314
          %v1403 = vunpack.c.l.b16 %v1315
          %v1404 = vunpack.c.h.b16 %v1315
          %v1405 = vunpack.c.l.b16 %v1316
          %v1406 = vunpack.c.h.b16 %v1316
          %v1407 = vunpack.c.l.b16 %v1317
          %v1408 = vunpack.c.h.b16 %v1317
          %v1409 = vunpack.c.l.b16 %v1318
          %v1410 = vunpack.c.h.b16 %v1318
          %v1411 = vunpack.c.l.b16 %v1319
          %v1412 = vunpack.c.h.b16 %v1319
          %v1413 = vunpack.c.l.b16 %v1320
          %v1414 = vunpack.c.h.b16 %v1320
          %v1415 = vunpack.c.l.b16 %v1321
          %v1416 = vunpack.c.h.b16 %v1321
          %v1417 = vunpack.c.l.b16 %v1322
          %v1418 = vunpack.c.h.b16 %v1322
          %v1419 = vpack.c.b16 %v1359, %v1355
          %v1420 = vpack.c.b16 %v1360, %v1356
          %v1421 = vpack.c.b16 %v1361, %v1357
          %v1422 = vpack.c.b16 %v1362, %v1358
          %v1423 = vpack.c.b16 %v1367, %v1363
          %v1424 = vpack.c.b16 %v1368, %v1364
          %v1425 = vpack.c.b16 %v1369, %v1365
          %v1426 = vpack.c.b16 %v1370, %v1366
          %v1427 = vpack.c.b16 %v1375, %v1371
          %v1428 = vpack.c.b16 %v1376, %v1372
          %v1429 = vpack.c.b16 %v1377, %v1373
          %v1430 = vpack.c.b16 %v1378, %v1374
          %v1431 = vpack.c.b16 %v1383, %v1379
          %v1432 = vpack.c.b16 %v1384, %v1380
          %v1433 = vpack.c.b16 %v1385, %v1381
          %v1434 = vpack.c.b16 %v1386, %v1382
          %v1435 = vpack.c.b16 %v1391, %v1387
          %v1436 = vpack.c.b16 %v1392, %v1388
          %v1437 = vpack.c.b16 %v1393, %v1389
          %v1438 = vpack.c.b16 %v1394, %v1390
          %v1439 = vpack.c.b16 %v1399, %v1395
          %v1440 = vpack.c.b16 %v1400, %v1396
          %v1441 = vpack.c.b16 %v1401, %v1397
          %v1442 = vpack.c.b16 %v1402, %v1398
          %v1443 = vpack.c.b16 %v1407, %v1403
          %v1444 = vpack.c.b16 %v1408, %v1404
          %v1445 = vpack.c.b16 %v1409, %v1405
          %v1446 = vpack.c.b16 %v1410, %v1406
          %v1447 = vpack.c.b16 %v1415, %v1411
          %v1448 = vpack.c.b16 %v1416, %v1412
          %v1449 = vpack.c.b16 %v1417, %v1413
          %v1450 = vpack.c.b16 %v1418, %v1414
          %1483 = vmatpush.bf16.msra.mxu0 %v1447
          %1484 = vmatpush.bf16.msra.mxu0 %v1443
          %1485 = vmatpush.bf16.msra.mxu0 %v1439
          %1486 = vmatpush.bf16.msra.mxu0 %v1435
          %1487 = vmatpush.bf16.msra.mxu0 %v1431
          %1488 = vmatpush.bf16.msra.mxu0 %v1427
          %1489 = vmatpush.bf16.msra.mxu0 %v1423
          %1490 = vmatpush.bf16.msra.mxu0 %v1419
          %1491 = vmatmul.bf16.gmra.mxu0 %v1290
          %v1492 = vpop.f32.mrf.mxu0
          %v1493 = vadd.f32 0.0, %v1492
          %v1494 = vpop.f32.mrf.mxu0
          %1495 = vdwg.mxu0
          %1496 = vmatpush.bf16.msra.mxu0 %v1448
          %1497 = vmatpush.bf16.msra.mxu0 %v1444
          %1498 = vmatpush.bf16.msra.mxu0 %v1440
          %1499 = vmatpush.bf16.msra.mxu0 %v1436
          %1500 = vmatpush.bf16.msra.mxu0 %v1432
          %1501 = vmatpush.bf16.msra.mxu0 %v1428
          %1502 = vmatpush.bf16.msra.mxu0 %v1424
          %1503 = vmatpush.bf16.msra.mxu0 %v1420
          %1504 = vmatmul.bf16.gmra.mxu0 %v1290
          %v1505 = vpop.f32.mrf.mxu0
          %v1506 = vadd.f32 0.0, %v1505
          %v1507 = vpop.f32.mrf.mxu0
          %1508 = vdwg.mxu0
          %1509 = vmatpush.bf16.msra.mxu0 %v1449
          %1510 = vmatpush.bf16.msra.mxu0 %v1445
          %1511 = vmatpush.bf16.msra.mxu0 %v1441
          %1512 = vmatpush.bf16.msra.mxu0 %v1437
          %1513 = vmatpush.bf16.msra.mxu0 %v1433
          %1514 = vmatpush.bf16.msra.mxu0 %v1429
          %1515 = vmatpush.bf16.msra.mxu0 %v1425
          %1516 = vmatpush.bf16.msra.mxu0 %v1421
          %1517 = vmatmul.bf16.gmra.mxu0 %v1290
          %v1518 = vpop.f32.mrf.mxu0
          %v1519 = vadd.f32 0.0, %v1518
          %v1520 = vpop.f32.mrf.mxu0
          %1521 = vdwg.mxu0
          %1522 = vmatpush.bf16.msra.mxu0 %v1450
          %1523 = vmatpush.bf16.msra.mxu0 %v1446
          %1524 = vmatpush.bf16.msra.mxu0 %v1442
          %1525 = vmatpush.bf16.msra.mxu0 %v1438
          %1526 = vmatpush.bf16.msra.mxu0 %v1434
          %1527 = vmatpush.bf16.msra.mxu0 %v1430
          %1528 = vmatpush.bf16.msra.mxu0 %v1426
          %1529 = vmatpush.bf16.msra.mxu0 %v1422
          %1530 = vmatmul.bf16.gmra.mxu0 %v1290
          %v1531 = vpop.f32.mrf.mxu0
          %v1532 = vadd.f32 0.0, %v1531
          %v1533 = vpop.f32.mrf.mxu0
          %1534 = vdwg.mxu0
          %v1535 = vadd.f32 %v1286, %v1493
          %v1536 = vadd.f32 %v1287, %v1506
          %v1537 = vadd.f32 %v1288, %v1519
          %v1538 = vadd.f32 %v1289, %v1532
          %v1539 = vmul.f32 %v1535, 0.5
          %v1540 = vtanh.pop %v1539
          %v1541 = vmul.f32 %v1540, 0.5
          %v1542 = vadd.f32 %v1541, 0.5
          %v1543 = vmul.f32 %v1536, 0.5
          %v1544 = vtanh.pop %v1543
          %v1545 = vmul.f32 %v1544, 0.5
          %v1546 = vadd.f32 %v1545, 0.5
          %v1547 = vtanh.pop %v1537
          %v1548 = vmul.f32 %v1538, 0.5
          %v1549 = vtanh.pop %v1548
          %v1550 = vmul.f32 %v1549, 0.5
          %v1551 = vadd.f32 %v1550, 0.5
          %v1552 = vmul.f32 %v1546, %v1280
          %v1553 = vmul.f32 %v1542, %v1547
          %v1554 = vadd.f32 %v1552, %v1553
          %v1555 = vtanh.pop %v1554
          %v1556 = vmul.f32 %v1551, %v1555
          %s1557 = sadd.s32 %s378, 2
          %v1558 = vstv %s1557
          %vm1559 = vcmp.lt.s32.totalorder %v1558, %v700
          %v1560 = vsel %vm1559, 1, 0
          %1561 = vset.pattern.permute.xlu0 0
          %1562 = vperm.xlu0 %1561, %v1560
          %v1563 = vpop.permute.xlu0 %1562
          %vm1564 = vcmp.eq.s32.totalorder %v1563, 1
          %v1565 = vsel %vm1564, %v1556, 0.0
          %v1566 = vpack.c.bf16 %v1565, %v1565
          %s1567 = scalar_lea.vmem %s366, 8 [#allocation13]
          %1568 = vst [vmem:[%s1567] sm:$0xf] %v1566
          %v1569 = vsel %vm1564, %v1556, %v1279
          %v1570 = vsel %vm1564, %v1554, %v1280
          %s1571 = smul.u32 3, 4
          %s1572 = smul.addr %s1571, 4
          %s1573 = scalar_lea.vmem [#allocation2], %s1572
          %v1574 = vld [vmem:[%s1573] sm:$0xff]
          %v1575 = vld [vmem:[%s1573 + $0x8] sm:$0xff]
          %v1576 = vunpack.c.l.bf16 %v1574
          %v1577 = vunpack.c.h.bf16 %v1574
          %v1578 = vunpack.c.l.bf16 %v1575
          %v1579 = vunpack.c.h.bf16 %v1575
          %v1580 = vpack.c.bf16 %v1569, %v1569
          %v1581 = vld [vmem:[#allocation12] sm:$0xff]
          %v1582 = vld [vmem:[#allocation12 + $0x8] sm:$0xff]
          %v1583 = vld [vmem:[#allocation12 + $0x10] sm:$0xff]
          %v1584 = vld [vmem:[#allocation12 + $0x18] sm:$0xff]
          %v1585 = vld [vmem:[#allocation12 + $0x20] sm:$0xff]
          %v1586 = vld [vmem:[#allocation12 + $0x28] sm:$0xff]
          %v1587 = vld [vmem:[#allocation12 + $0x30] sm:$0xff]
          %v1588 = vld [vmem:[#allocation12 + $0x38] sm:$0xff]
          %v1589 = vld [vmem:[#allocation12 + $0x40] sm:$0xff]
          %v1590 = vld [vmem:[#allocation12 + $0x48] sm:$0xff]
          %v1591 = vld [vmem:[#allocation12 + $0x50] sm:$0xff]
          %v1592 = vld [vmem:[#allocation12 + $0x58] sm:$0xff]
          %v1593 = vld [vmem:[#allocation12 + $0x60] sm:$0xff]
          %v1594 = vld [vmem:[#allocation12 + $0x68] sm:$0xff]
          %v1595 = vld [vmem:[#allocation12 + $0x70] sm:$0xff]
          %v1596 = vld [vmem:[#allocation12 + $0x78] sm:$0xff]
          %v1597 = vld [vmem:[#allocation12 + $0x80] sm:$0xff]
          %v1598 = vld [vmem:[#allocation12 + $0x88] sm:$0xff]
          %v1599 = vld [vmem:[#allocation12 + $0x90] sm:$0xff]
          %v1600 = vld [vmem:[#allocation12 + $0x98] sm:$0xff]
          %v1601 = vld [vmem:[#allocation12 + $0xa0] sm:$0xff]
          %v1602 = vld [vmem:[#allocation12 + $0xa8] sm:$0xff]
          %v1603 = vld [vmem:[#allocation12 + $0xb0] sm:$0xff]
          %v1604 = vld [vmem:[#allocation12 + $0xb8] sm:$0xff]
          %v1605 = vld [vmem:[#allocation12 + $0xc0] sm:$0xff]
          %v1606 = vld [vmem:[#allocation12 + $0xc8] sm:$0xff]
          %v1607 = vld [vmem:[#allocation12 + $0xd0] sm:$0xff]
          %v1608 = vld [vmem:[#allocation12 + $0xd8] sm:$0xff]
          %v1609 = vld [vmem:[#allocation12 + $0xe0] sm:$0xff]
          %v1610 = vld [vmem:[#allocation12 + $0xe8] sm:$0xff]
          %v1611 = vld [vmem:[#allocation12 + $0xf0] sm:$0xff]
          %v1612 = vld [vmem:[#allocation12 + $0xf8] sm:$0xff]
          %v1645 = vunpack.c.l.b16 %v1581
          %v1646 = vunpack.c.h.b16 %v1581
          %v1647 = vunpack.c.l.b16 %v1582
          %v1648 = vunpack.c.h.b16 %v1582
          %v1649 = vunpack.c.l.b16 %v1583
          %v1650 = vunpack.c.h.b16 %v1583
          %v1651 = vunpack.c.l.b16 %v1584
          %v1652 = vunpack.c.h.b16 %v1584
          %v1653 = vunpack.c.l.b16 %v1585
          %v1654 = vunpack.c.h.b16 %v1585
          %v1655 = vunpack.c.l.b16 %v1586
          %v1656 = vunpack.c.h.b16 %v1586
          %v1657 = vunpack.c.l.b16 %v1587
          %v1658 = vunpack.c.h.b16 %v1587
          %v1659 = vunpack.c.l.b16 %v1588
          %v1660 = vunpack.c.h.b16 %v1588
          %v1661 = vunpack.c.l.b16 %v1589
          %v1662 = vunpack.c.h.b16 %v1589
          %v1663 = vunpack.c.l.b16 %v1590
          %v1664 = vunpack.c.h.b16 %v1590
          %v1665 = vunpack.c.l.b16 %v1591
          %v1666 = vunpack.c.h.b16 %v1591
          %v1667 = vunpack.c.l.b16 %v1592
          %v1668 = vunpack.c.h.b16 %v1592
          %v1669 = vunpack.c.l.b16 %v1593
          %v1670 = vunpack.c.h.b16 %v1593
          %v1671 = vunpack.c.l.b16 %v1594
          %v1672 = vunpack.c.h.b16 %v1594
          %v1673 = vunpack.c.l.b16 %v1595
          %v1674 = vunpack.c.h.b16 %v1595
          %v1675 = vunpack.c.l.b16 %v1596
          %v1676 = vunpack.c.h.b16 %v1596
          %v1677 = vunpack.c.l.b16 %v1597
          %v1678 = vunpack.c.h.b16 %v1597
          %v1679 = vunpack.c.l.b16 %v1598
          %v1680 = vunpack.c.h.b16 %v1598
          %v1681 = vunpack.c.l.b16 %v1599
          %v1682 = vunpack.c.h.b16 %v1599
          %v1683 = vunpack.c.l.b16 %v1600
          %v1684 = vunpack.c.h.b16 %v1600
          %v1685 = vunpack.c.l.b16 %v1601
          %v1686 = vunpack.c.h.b16 %v1601
          %v1687 = vunpack.c.l.b16 %v1602
          %v1688 = vunpack.c.h.b16 %v1602
          %v1689 = vunpack.c.l.b16 %v1603
          %v1690 = vunpack.c.h.b16 %v1603
          %v1691 = vunpack.c.l.b16 %v1604
          %v1692 = vunpack.c.h.b16 %v1604
          %v1693 = vunpack.c.l.b16 %v1605
          %v1694 = vunpack.c.h.b16 %v1605
          %v1695 = vunpack.c.l.b16 %v1606
          %v1696 = vunpack.c.h.b16 %v1606
          %v1697 = vunpack.c.l.b16 %v1607
          %v1698 = vunpack.c.h.b16 %v1607
          %v1699 = vunpack.c.l.b16 %v1608
          %v1700 = vunpack.c.h.b16 %v1608
          %v1701 = vunpack.c.l.b16 %v1609
          %v1702 = vunpack.c.h.b16 %v1609
          %v1703 = vunpack.c.l.b16 %v1610
          %v1704 = vunpack.c.h.b16 %v1610
          %v1705 = vunpack.c.l.b16 %v1611
          %v1706 = vunpack.c.h.b16 %v1611
          %v1707 = vunpack.c.l.b16 %v1612
          %v1708 = vunpack.c.h.b16 %v1612
          %v1709 = vpack.c.b16 %v1649, %v1645
          %v1710 = vpack.c.b16 %v1650, %v1646
          %v1711 = vpack.c.b16 %v1651, %v1647
          %v1712 = vpack.c.b16 %v1652, %v1648
          %v1713 = vpack.c.b16 %v1657, %v1653
          %v1714 = vpack.c.b16 %v1658, %v1654
          %v1715 = vpack.c.b16 %v1659, %v1655
          %v1716 = vpack.c.b16 %v1660, %v1656
          %v1717 = vpack.c.b16 %v1665, %v1661
          %v1718 = vpack.c.b16 %v1666, %v1662
          %v1719 = vpack.c.b16 %v1667, %v1663
          %v1720 = vpack.c.b16 %v1668, %v1664
          %v1721 = vpack.c.b16 %v1673, %v1669
          %v1722 = vpack.c.b16 %v1674, %v1670
          %v1723 = vpack.c.b16 %v1675, %v1671
          %v1724 = vpack.c.b16 %v1676, %v1672
          %v1725 = vpack.c.b16 %v1681, %v1677
          %v1726 = vpack.c.b16 %v1682, %v1678
          %v1727 = vpack.c.b16 %v1683, %v1679
          %v1728 = vpack.c.b16 %v1684, %v1680
          %v1729 = vpack.c.b16 %v1689, %v1685
          %v1730 = vpack.c.b16 %v1690, %v1686
          %v1731 = vpack.c.b16 %v1691, %v1687
          %v1732 = vpack.c.b16 %v1692, %v1688
          %v1733 = vpack.c.b16 %v1697, %v1693
          %v1734 = vpack.c.b16 %v1698, %v1694
          %v1735 = vpack.c.b16 %v1699, %v1695
          %v1736 = vpack.c.b16 %v1700, %v1696
          %v1737 = vpack.c.b16 %v1705, %v1701
          %v1738 = vpack.c.b16 %v1706, %v1702
          %v1739 = vpack.c.b16 %v1707, %v1703
          %v1740 = vpack.c.b16 %v1708, %v1704
          %1773 = vmatpush.bf16.msra.mxu0 %v1737
          %1774 = vmatpush.bf16.msra.mxu0 %v1733
          %1775 = vmatpush.bf16.msra.mxu0 %v1729
          %1776 = vmatpush.bf16.msra.mxu0 %v1725
          %1777 = vmatpush.bf16.msra.mxu0 %v1721
          %1778 = vmatpush.bf16.msra.mxu0 %v1717
          %1779 = vmatpush.bf16.msra.mxu0 %v1713
          %1780 = vmatpush.bf16.msra.mxu0 %v1709
          %1781 = vmatmul.bf16.gmra.mxu0 %v1580
          %v1782 = vpop.f32.mrf.mxu0
          %v1783 = vadd.f32 0.0, %v1782
          %v1784 = vpop.f32.mrf.mxu0
          %1785 = vdwg.mxu0
          %1786 = vmatpush.bf16.msra.mxu0 %v1738
          %1787 = vmatpush.bf16.msra.mxu0 %v1734
          %1788 = vmatpush.bf16.msra.mxu0 %v1730
          %1789 = vmatpush.bf16.msra.mxu0 %v1726
          %1790 = vmatpush.bf16.msra.mxu0 %v1722
          %1791 = vmatpush.bf16.msra.mxu0 %v1718
          %1792 = vmatpush.bf16.msra.mxu0 %v1714
          %1793 = vmatpush.bf16.msra.mxu0 %v1710
          %1794 = vmatmul.bf16.gmra.mxu0 %v1580
          %v1795 = vpop.f32.mrf.mxu0
          %v1796 = vadd.f32 0.0, %v1795
          %v1797 = vpop.f32.mrf.mxu0
          %1798 = vdwg.mxu0
          %1799 = vmatpush.bf16.msra.mxu0 %v1739
          %1800 = vmatpush.bf16.msra.mxu0 %v1735
          %1801 = vmatpush.bf16.msra.mxu0 %v1731
          %1802 = vmatpush.bf16.msra.mxu0 %v1727
          %1803 = vmatpush.bf16.msra.mxu0 %v1723
          %1804 = vmatpush.bf16.msra.mxu0 %v1719
          %1805 = vmatpush.bf16.msra.mxu0 %v1715
          %1806 = vmatpush.bf16.msra.mxu0 %v1711
          %1807 = vmatmul.bf16.gmra.mxu0 %v1580
          %v1808 = vpop.f32.mrf.mxu0
          %v1809 = vadd.f32 0.0, %v1808
          %v1810 = vpop.f32.mrf.mxu0
          %1811 = vdwg.mxu0
          %1812 = vmatpush.bf16.msra.mxu0 %v1740
          %1813 = vmatpush.bf16.msra.mxu0 %v1736
          %1814 = vmatpush.bf16.msra.mxu0 %v1732
          %1815 = vmatpush.bf16.msra.mxu0 %v1728
          %1816 = vmatpush.bf16.msra.mxu0 %v1724
          %1817 = vmatpush.bf16.msra.mxu0 %v1720
          %1818 = vmatpush.bf16.msra.mxu0 %v1716
          %1819 = vmatpush.bf16.msra.mxu0 %v1712
          %1820 = vmatmul.bf16.gmra.mxu0 %v1580
          %v1821 = vpop.f32.mrf.mxu0
          %v1822 = vadd.f32 0.0, %v1821
          %v1823 = vpop.f32.mrf.mxu0
          %1824 = vdwg.mxu0
          %v1825 = vadd.f32 %v1576, %v1783
          %v1826 = vadd.f32 %v1577, %v1796
          %v1827 = vadd.f32 %v1578, %v1809
          %v1828 = vadd.f32 %v1579, %v1822
          %v1829 = vmul.f32 %v1825, 0.5
          %v1830 = vtanh.pop %v1829
          %v1831 = vmul.f32 %v1830, 0.5
          %v1832 = vadd.f32 %v1831, 0.5
          %v1833 = vmul.f32 %v1826, 0.5
          %v1834 = vtanh.pop %v1833
          %v1835 = vmul.f32 %v1834, 0.5
          %v1836 = vadd.f32 %v1835, 0.5
          %v1837 = vtanh.pop %v1827
          %v1838 = vmul.f32 %v1828, 0.5
          %v1839 = vtanh.pop %v1838
          %v1840 = vmul.f32 %v1839, 0.5
          %v1841 = vadd.f32 %v1840, 0.5
          %v1842 = vmul.f32 %v1836, %v1570
          %v1843 = vmul.f32 %v1832, %v1837
          %v1844 = vadd.f32 %v1842, %v1843
          %v1845 = vtanh.pop %v1844
          %v1846 = vmul.f32 %v1841, %v1845
          %s1847 = sadd.s32 %s378, 3
          %v1848 = vstv %s1847
          %vm1849 = vcmp.lt.s32.totalorder %v1848, %v700
          %v1850 = vsel %vm1849, 1, 0
          %1851 = vset.pattern.permute.xlu0 0
          %1852 = vperm.xlu0 %1851, %v1850
          %v1853 = vpop.permute.xlu0 %1852
          %vm1854 = vcmp.eq.s32.totalorder %v1853, 1
          %v1855 = vsel %vm1854, %v1846, 0.0
          %v1856 = vpack.c.bf16 %v1855, %v1855
          %s1857 = scalar_lea.vmem %s366, 12 [#allocation13]
          %1858 = vst [vmem:[%s1857] sm:$0xf] %v1856
          %v1859 = vsel %vm1854, %v1846, %v1569
          %v1860 = vsel %vm1854, %v1844, %v1570
          %1861 = vst [vmem:[#allocation3] sm:$0xff] %v1859
          %1862 = vst [vmem:[#allocation4] sm:$0xff] %v1860
        $region60: #{tpu_custom_call.1} parent=39 // pred_fallthru
          _
        %p1863 = scmp.ge.s32.totalorder %s378, %s379
        // Predicated region
        $region61: #{tpu_custom_call.1} parent=39 // pred_check
          %p1864 = pneg %p1863
        $region62: #{tpu_custom_call.1} parent=39 // pred_check_branch
          %1866 = sbr.rel (%p1864) target = $region64
        $region63: #{tpu_custom_call.1} parent=39 // pred_region
          %1867 = vst [vmem:[%s366] sm:$0xf] 0
          %1868 = vst [vmem:[%s366 + $0x4] sm:$0xf] 0
          %1869 = vst [vmem:[%s366 + $0x8] sm:$0xf] 0
          %1870 = vst [vmem:[%s366 + $0xc] sm:$0xf] 0
        $region64: #{tpu_custom_call.1} parent=39 // pred_fallthru
          _
        %p1871 = scmp.eq.s32.totalorder %s34, 2
        // Predicated region
        $region65: #{tpu_custom_call.1} parent=39 // pred_check
          %p1872 = pneg %p1871
        $region66: #{tpu_custom_call.1} parent=39 // pred_check_branch
          %1874 = sbr.rel (%p1872) target = $region68
        $region67: #{tpu_custom_call.1} parent=39 // pred_region
          %v1875 = vld [vmem:[#allocation3] sm:$0xff]
          %1876 = vst [vmem:[#allocation14] sm:$0xff] %v1875
          %v1877 = vld [vmem:[#allocation4] sm:$0xff]
          %1878 = vst [vmem:[#allocation16] sm:$0xff] %v1877
        $region68: #{tpu_custom_call.1} parent=39 // pred_fallthru
          _
        %s1879 = sand.u32 %s168, 1
        %s1880 = scalar_lea.sflag [#allocation9], %s1879
        %s1881 = sand.u32 %s168, 1
        %s1882 = smul.addr %s1881, 16
        %s1883 = scalar_lea.vmem [#allocation13], %s1882
        // Predicated region
        $region69: #{tpu_custom_call.1} parent=39 // pred_check
          %p1884 = pneg %p178
        $region70: #{tpu_custom_call.1} parent=39 // pred_check_branch
          %1886 = sbr.rel (%p1884) target = $region72
        $region71: #{tpu_custom_call.1} parent=39 // pred_region
          %s1887 = smul.u32 4, %s34
          %1889 = vsyncadd %s1880, 0
          %s1890 = sadd.s32 %s33, %s1887
          %s1891 = smul.addr %s1890, 4
          %s1892 = scalar_lea.hbm %s6, %s1891
          %s1893 = sshll.u32 %s1883, 4
          %s1894 = int_to_ptr.vmem [resolvable:$true] %s1893
          %s1895 = sshll.u32 %s1892, 4
          %s1896 = int_to_ptr.hbm [resolvable:$true] %s1895
          %1901 = dma.vmem_to_hbm [thread:$0]  %s1894, 256, %s1896, %s1880, 64, 64, 4
        $region72: #{tpu_custom_call.1} parent=39 // pred_fallthru
          _
        // Predicated region
        $region73: #{tpu_custom_call.1} parent=39 // pred_check
          %p1902 = pneg %p204
        $region74: #{tpu_custom_call.1} parent=39 // pred_check_branch
          %1904 = sbr.rel (%p1902) target = $region76
        $region75: #{tpu_custom_call.1} parent=39 // pred_region
          %1906 = vsyncadd [#allocation15], 0
          %s1907 = smul.addr %s33, 8
          %s1908 = scalar_lea.hbm %s7, %s1907
          %s1910 = sshll.u32 [#allocation14], 4
          %s1911 = int_to_ptr.vmem [resolvable:$true] %s1910
          %s1912 = sshll.u32 %s1908, 4
          %s1913 = int_to_ptr.hbm [resolvable:$true] %s1912
          %1915 = dma.vmem_to_hbm [thread:$0]  %s1911, 128, %s1913, [#allocation15]
        $region76: #{tpu_custom_call.1} parent=39 // pred_fallthru
          _
        // Predicated region
        $region77: #{tpu_custom_call.1} parent=39 // pred_check
          %p1916 = pneg %p230
        $region78: #{tpu_custom_call.1} parent=39 // pred_check_branch
          %1918 = sbr.rel (%p1916) target = $region80
        $region79: #{tpu_custom_call.1} parent=39 // pred_region
          %1920 = vsyncadd [#allocation15], 0
          %s1921 = smul.addr %s33, 8
          %s1922 = scalar_lea.hbm %s8, %s1921
          %s1924 = sshll.u32 [#allocation16], 4
          %s1925 = int_to_ptr.vmem [resolvable:$true] %s1924
          %s1926 = sshll.u32 %s1922, 4
          %s1927 = int_to_ptr.hbm [resolvable:$true] %s1926
          %1929 = dma.vmem_to_hbm [thread:$0]  %s1925, 128, %s1927, [#allocation15]
        $region80: #{tpu_custom_call.1} parent=39 // pred_fallthru
          _
        // Predicated region
        $region81: #{tpu_custom_call.1} parent=39 // pred_check
          %p1930 = pneg %p204
        $region82: #{tpu_custom_call.1} parent=39 // pred_check_branch
          %1932 = sbr.rel (%p1930) target = $region84
        $region83: #{tpu_custom_call.1} parent=39 // pred_region
          %1934 = dma.done [#allocation15], 128
        $region84: #{tpu_custom_call.1} parent=39 // pred_fallthru
          _
        // Predicated region
        $region85: #{tpu_custom_call.1} parent=39 // pred_check
          %p1935 = pneg %p230
        $region86: #{tpu_custom_call.1} parent=39 // pred_check_branch
          %1937 = sbr.rel (%p1935) target = $region88
        $region87: #{tpu_custom_call.1} parent=39 // pred_region
          %1939 = dma.done [#allocation15], 128
        $region88: #{tpu_custom_call.1} parent=39 // pred_fallthru
          _
      $region40: #{tpu_custom_call.1} parent=5 // pred_fallthru
        _
      %p1940 = scmp.le.s32.totalorder 2, %s24
      // Predicated region
      $region89: #{tpu_custom_call.1} parent=5 // pred_check
        %p1941 = pneg %p1940
      $region90: #{tpu_custom_call.1} parent=5 // pred_check_branch
        %1943 = sbr.rel (%p1941) target = $region92
      $region91: #{tpu_custom_call.1} parent=5 // pred_region
        %s1944 = ssub.s32 %s24, 2
        // Predicated region
        $region93: #{tpu_custom_call.1} parent=91 // pred_check
          %p1945 = pneg %p184
        $region94: #{tpu_custom_call.1} parent=91 // pred_check_branch
          %1947 = sbr.rel (%p1945) target = $region96
        $region95: #{tpu_custom_call.1} parent=91 // pred_region
          %s1948 = sand.u32 %s169, 1
          %s1949 = scalar_lea.sflag [#allocation9], %s1948
          %s1950 = sand.u32 %s169, 1
          %s1951 = smul.addr %s1950, 16
          %s1952 = scalar_lea.vmem [#allocation13], %s1951
          %1954 = dma.done %s1949, 256
        $region96: #{tpu_custom_call.1} parent=91 // pred_fallthru
          _
      $region92: #{tpu_custom_call.1} parent=5 // pred_fallthru
        _
    $region6: #{tpu_custom_call.1} parent=1 // loop_footer
      %s28 = sadd.s32 1, %s24
    $region7: #{tpu_custom_call.1} parent=1 // loop_footer_branch
      %23 = sbr.rel target = $region3
    $region8: #{tpu_custom_call.1} parent=1 // loop_exit
      _
    %1955 = vsyncpa [#allocation8], 1
    %s1956 = scalar_lea.sflag [#allocation8], 1
    %1957 = vsyncpa %s1956, 1
    %1958 = vsyncpa [#allocation11], 1
    %1959 = vsyncpa [#allocation9], 1
    %s1960 = scalar_lea.sflag [#allocation9], 1
    %1961 = vsyncpa %s1960, 1
    %1962 = vsyncpa [#allocation15], 1

// kernel: tpu_custom_call.1
$region0: #{tpu_custom_call.1}
  #allocation0 [shape = 'u32[]', space=smem, size = 0x4, offset = 0x4, fixed_abs, tag = 'smem constant byte address 0x4 - core index']
  #allocation1 [shape = 'u32[72,128]{1,0:T(1,128)}', space=vmem, size = 0x9000, scoped, tag = 'internal scratch']
  #allocation2 [shape = 'bf16[32,512]{1,0:T(8,128)(2,1)}', space=vmem, size = 0x8000, scoped, tag = 'scratch operand']
  #allocation3 [shape = 'f32[8,128]{1,0:T(8,128)}', space=vmem, size = 0x1000, scoped, tag = 'scratch operand']
  #allocation4 [shape = 'f32[8,128]{1,0:T(8,128)}', space=vmem, size = 0x1000, scoped, tag = 'scratch operand']
  #allocation5 [shape = 's32[1]{0}', space=sflag, size = 0x4, scoped, tag = 'scoped memory for tpu_custom_call.1']
  #allocation6 [shape = 's32[1]{0:T(128)S(6)}', space=smem, size = 0x200, scoped, tag = 'prefetched SMEM operand 0']
  %s0 = inlined_call_operand.<no memory space> [shape: s32[1], index: 0, kind: input, shape index: {}]
  %s1 = inlined_call_operand.hbm [shape: bf16[1,96,128], index: 1, kind: input, shape index: {}]
  %s2 = inlined_call_operand.hbm [shape: bf16[128,512], index: 2, kind: input, shape index: {}]
  %s3 = inlined_call_operand.hbm [shape: bf16[128,512], index: 3, kind: input, shape index: {}]
  %s4 = inlined_call_operand.vmem [shape: f32[1,512], index: 4, kind: input, shape index: {}]
  %s5 = inlined_call_operand.vmem [shape: s32[8,1], index: 5, kind: input, shape index: {}]
  %s6 = inlined_call_operand.hbm [shape: bf16[12,8,128], index: 6, kind: output, shape index: {0}]
  %s7 = inlined_call_operand.hbm [shape: f32[8,128], index: 7, kind: output, shape index: {1}]
  %s8 = inlined_call_operand.hbm [shape: f32[8,128], index: 8, kind: output, shape index: {2}]
  %9 = xla_tuple %s6, %s7, %s8
  %s10 = sld [smem:[#allocation0]]
  $region97: #{tpu_custom_call.1} parent=0
    _
  %s12 = ssub.s32 1, %s10
  %s13 = scalar_select 0, %s12, %s10
  %14 = sst [smem:[#allocation6]] %s0
  $region1: #{tpu_custom_call.1} parent=0
    #allocation7 [shape = 'u8[16384]{0}', space=vmem, size = 0x4000, scoped, tag = 'input window, operand 1']
    #allocation8 [shape = 's32[2]{0}', space=sflag, size = 0x8, scoped, tag = 'scoped memory for tpu_custom_call.1']
    #allocation9 [shape = 's32[2]{0}', space=sflag, size = 0x8, scoped, tag = 'scoped memory for tpu_custom_call.1']
    #allocation10 [shape = 'u8[131072]{0}', space=vmem, size = 0x20000, scoped, tag = 'input window, operand 2, single buffered']
    #allocation11 [shape = 's32[1]{0}', space=sflag, size = 0x4, scoped, tag = 'scoped memory for tpu_custom_call.1']
    #allocation12 [shape = 'u8[131072]{0}', space=vmem, size = 0x20000, scoped, tag = 'input window, operand 3, single buffered']
    #allocation13 [shape = 'u8[16384]{0}', space=vmem, size = 0x4000, scoped, tag = 'output window, operand 0']
    #allocation14 [shape = 'u8[4096]{0}', space=vmem, size = 0x1000, scoped, tag = 'output window, operand 1, single buffered']
    #allocation15 [shape = 's32[1]{0}', space=sflag, size = 0x4, scoped, tag = 'scoped memory for tpu_custom_call.1']
    #allocation16 [shape = 'u8[4096]{0}', space=vmem, size = 0x1000, scoped, tag = 'output window, operand 2, single buffered']
    %15 = vsyncpa [#allocation8], 0
    %s16 = scalar_lea.sflag [#allocation8], 1
    %17 = vsyncpa %s16, 0
    %18 = vsyncpa [#allocation11], 0
    %19 = vsyncpa [#allocation9], 0
    %s20 = scalar_lea.sflag [#allocation9], 1
    %21 = vsyncpa %s20, 0
    %22 = vsyncpa [#allocation15], 0
    loop: start=0, step=1, limit=5
    $region2: #{tpu_custom_call.1} parent=1 // loop_pre_header
      _
    $region3: #{tpu_custom_call.1} parent=1 // loop_header
      %s24 = sphi 0, %s28
      %p25 = scmp.ge.s32.totalorder %s24, 5
      %s31 = sphi 0, %s43
      %s32 = sphi 0, %s39
      %s33 = sphi 0, %s31
      %s34 = sphi 0, %s32
      %s35 = sphi 0, %s33
      %s36 = sphi 0, %s34
      %s48 = sphi 0, %s50
      %s51 = sphi 0, %s48
      %s52 = sphi 0, %s51
      %s68 = sphi 0, %s52
      %s72 = sphi 0, %s72
      %s74 = sphi 0, %s72
      %s75 = sphi 0, %s74
      %s89 = sphi 0, %s75
      %s93 = sphi 0, %s93
      %s95 = sphi 0, %s93
      %s96 = sphi 0, %s95
      %s110 = sphi 0, %s96
      %s114 = sphi 0, %s114
      %s116 = sphi 0, %s114
      %s117 = sphi 0, %s116
      %s131 = sphi 0, %s117
      %s137 = sphi 0, %s139
      %s140 = sphi 0, %s137
      %s141 = sphi 0, %s140
      %s157 = sphi 0, %s141
      %s165 = sphi 0, %s167
      %s168 = sphi 0, %s165
      %s169 = sphi 0, %s168
      %s185 = sphi 0, %s169
      %s191 = sphi 0, %s193
      %s194 = sphi 0, %s191
      %s195 = sphi 0, %s194
      %s211 = sphi 0, %s195
      %s217 = sphi 0, %s219
      %s220 = sphi 0, %s217
      %s221 = sphi 0, %s220
      %s237 = sphi 0, %s221
    $region4: #{tpu_custom_call.1} parent=1 // loop_header_branch
      %27 = sbr.rel (%p25) target = $region8
    $region5: #{tpu_custom_call.1} parent=1 // loop_body
      %s29 = ssub.s32 %s24, 1
      %s30 = ssub.s32 %s24, 2
      %s37 = sadd.s32 1, %s32
      %p38 = scmp.ge.s32.totalorder %s37, 3
      %s39 = scalar_select %p38, 0, %s37
      %s40 = sadd.s32 1, %s31
      %s41 = scalar_select %p38, %s40, %s31
      %p42 = scmp.ge.s32.totalorder %s41, 1
      %s43 = scalar_select %p42, 0, %s41
      %s44 = ssub.s32 %s31, %s43
      %s45 = ssub.s32 %s32, %s39
      %s46 = sor.u32 %s44, %s45
      %p47 = scmp.eq.s32.totalorder %s46, 0
      %s49 = sadd.s32 %s48, 1
      %s50 = scalar_select %p47, %s48, %s49
      %p53 = pneg %p47
      %p54 = scmp.eq.s32.totalorder %s24, 2
      %p55 = por %p53, %p54
      %p56 = scmp.ne.s32.totalorder %s48, %s51
      %p57 = scmp.eq.s32.totalorder %s24, 0
      %p58 = por %p56, %p57
      %p59 = scmp.ne.s32.totalorder %s48, %s51
      %p60 = scmp.eq.s32.totalorder %s29, 2
      %p61 = por %p59, %p60
      %p62 = scmp.ne.s32.totalorder %s51, %s52
      %p63 = scmp.eq.s32.totalorder %s29, 0
      %p64 = por %p62, %p63
      %p65 = scmp.ne.s32.totalorder %s51, %s52
      %p66 = scmp.eq.s32.totalorder %s30, 2
      %p67 = por %p65, %p66
      %p69 = scmp.ne.s32.totalorder %s52, %s68
      %p70 = scmp.eq.s32.totalorder %s30, 0
      %p71 = por %p69, %p70
      %s73 = sadd.s32 %s72, 1
      %p76 = scmp.eq.s32.totalorder %s24, 2
      %p77 = scmp.ne.s32.totalorder %s72, %s74
      %p78 = scmp.eq.s32.totalorder %s24, 0
      %p79 = por %p77, %p78
      %p80 = scmp.ne.s32.totalorder %s72, %s74
      %p81 = scmp.eq.s32.totalorder %s29, 2
      %p82 = por %p80, %p81
      %p83 = scmp.ne.s32.totalorder %s74, %s75
      %p84 = scmp.eq.s32.totalorder %s29, 0
      %p85 = por %p83, %p84
      %p86 = scmp.ne.s32.totalorder %s74, %s75
      %p87 = scmp.eq.s32.totalorder %s30, 2
      %p88 = por %p86, %p87
      %p90 = scmp.ne.s32.totalorder %s75, %s89
      %p91 = scmp.eq.s32.totalorder %s30, 0
      %p92 = por %p90, %p91
      %s94 = sadd.s32 %s93, 1
      %p97 = scmp.eq.s32.totalorder %s24, 2
      %p98 = scmp.ne.s32.totalorder %s93, %s95
      %p99 = scmp.eq.s32.totalorder %s24, 0
      %p100 = por %p98, %p99
      %p101 = scmp.ne.s32.totalorder %s93, %s95
      %p102 = scmp.eq.s32.totalorder %s29, 2
      %p103 = por %p101, %p102
      %p104 = scmp.ne.s32.totalorder %s95, %s96
      %p105 = scmp.eq.s32.totalorder %s29, 0
      %p106 = por %p104, %p105
      %p107 = scmp.ne.s32.totalorder %s95, %s96
      %p108 = scmp.eq.s32.totalorder %s30, 2
      %p109 = por %p107, %p108
      %p111 = scmp.ne.s32.totalorder %s96, %s110
      %p112 = scmp.eq.s32.totalorder %s30, 0
      %p113 = por %p111, %p112
      %s115 = sadd.s32 %s114, 1
      %p118 = scmp.eq.s32.totalorder %s24, 2
      %p119 = scmp.ne.s32.totalorder %s114, %s116
      %p120 = scmp.eq.s32.totalorder %s24, 0
      %p121 = por %p119, %p120
      %p122 = scmp.ne.s32.totalorder %s114, %s116
      %p123 = scmp.eq.s32.totalorder %s29, 2
      %p124 = por %p122, %p123
      %p125 = scmp.ne.s32.totalorder %s116, %s117
      %p126 = scmp.eq.s32.totalorder %s29, 0
      %p127 = por %p125, %p126
      %p128 = scmp.ne.s32.totalorder %s116, %s117
      %p129 = scmp.eq.s32.totalorder %s30, 2
      %p130 = por %p128, %p129
      %p132 = scmp.ne.s32.totalorder %s117, %s131
      %p133 = scmp.eq.s32.totalorder %s30, 0
      %p134 = por %p132, %p133
      %s135 = ssub.s32 %s31, %s43
      %p136 = scmp.eq.s32.totalorder %s135, 0
      %s138 = sadd.s32 %s137, 1
      %s139 = scalar_select %p136, %s137, %s138
      %p142 = pneg %p136
      %p143 = scmp.eq.s32.totalorder %s24, 2
      %p144 = por %p142, %p143
      %p145 = scmp.ne.s32.totalorder %s137, %s140
      %p146 = scmp.eq.s32.totalorder %s24, 0
      %p147 = por %p145, %p146
      %p148 = scmp.ne.s32.totalorder %s137, %s140
      %p149 = scmp.eq.s32.totalorder %s29, 2
      %p150 = por %p148, %p149
      %p151 = scmp.ne.s32.totalorder %s140, %s141
      %p152 = scmp.eq.s32.totalorder %s29, 0
      %p153 = por %p151, %p152
      %p154 = scmp.ne.s32.totalorder %s140, %s141
      %p155 = scmp.eq.s32.totalorder %s30, 2
      %p156 = por %p154, %p155
      %p158 = scmp.ne.s32.totalorder %s141, %s157
      %p159 = scmp.eq.s32.totalorder %s30, 0
      %p160 = por %p158, %p159
      %s161 = ssub.s32 %s32, %s39
      %s162 = ssub.s32 %s31, %s43
      %s163 = sor.u32 %s161, %s162
      %p164 = scmp.eq.s32.totalorder %s163, 0
      %s166 = sadd.s32 %s165, 1
      %s167 = scalar_select %p164, %s165, %s166
      %p170 = pneg %p164
      %p171 = scmp.eq.s32.totalorder %s24, 2
      %p172 = por %p170, %p171
      %p173 = scmp.ne.s32.totalorder %s165, %s168
      %p174 = scmp.eq.s32.totalorder %s24, 0
      %p175 = por %p173, %p174
      %p176 = scmp.ne.s32.totalorder %s165, %s168
      %p177 = scmp.eq.s32.totalorder %s29, 2
      %p178 = por %p176, %p177
      %p179 = scmp.ne.s32.totalorder %s168, %s169
      %p180 = scmp.eq.s32.totalorder %s29, 0
      %p181 = por %p179, %p180
      %p182 = scmp.ne.s32.totalorder %s168, %s169
      %p183 = scmp.eq.s32.totalorder %s30, 2
      %p184 = por %p182, %p183
      %p186 = scmp.ne.s32.totalorder %s169, %s185
      %p187 = scmp.eq.s32.totalorder %s30, 0
      %p188 = por %p186, %p187
      %s189 = ssub.s32 %s31, %s43
      %p190 = scmp.eq.s32.totalorder %s189, 0
      %s192 = sadd.s32 %s191, 1
      %s193 = scalar_select %p190, %s191, %s192
      %p196 = pneg %p190
      %p197 = scmp.eq.s32.totalorder %s24, 2
      %p198 = por %p196, %p197
      %p199 = scmp.ne.s32.totalorder %s191, %s194
      %p200 = scmp.eq.s32.totalorder %s24, 0
      %p201 = por %p199, %p200
      %p202 = scmp.ne.s32.totalorder %s191, %s194
      %p203 = scmp.eq.s32.totalorder %s29, 2
      %p204 = por %p202, %p203
      %p205 = scmp.ne.s32.totalorder %s194, %s195
      %p206 = scmp.eq.s32.totalorder %s29, 0
      %p207 = por %p205, %p206
      %p208 = scmp.ne.s32.totalorder %s194, %s195
      %p209 = scmp.eq.s32.totalorder %s30, 2
      %p210 = por %p208, %p209
      %p212 = scmp.ne.s32.totalorder %s195, %s211
      %p213 = scmp.eq.s32.totalorder %s30, 0
      %p214 = por %p212, %p213
      %s215 = ssub.s32 %s31, %s43
      %p216 = scmp.eq.s32.totalorder %s215, 0
      %s218 = sadd.s32 %s217, 1
      %s219 = scalar_select %p216, %s217, %s218
      %p222 = pneg %p216
      %p223 = scmp.eq.s32.totalorder %s24, 2
      %p224 = por %p222, %p223
      %p225 = scmp.ne.s32.totalorder %s217, %s220
      %p226 = scmp.eq.s32.totalorder %s24, 0
      %p227 = por %p225, %p226
      %p228 = scmp.ne.s32.totalorder %s217, %s220
      %p229 = scmp.eq.s32.totalorder %s29, 2
      %p230 = por %p228, %p229
      %p231 = scmp.ne.s32.totalorder %s220, %s221
      %p232 = scmp.eq.s32.totalorder %s29, 0
      %p233 = por %p231, %p232
      %p234 = scmp.ne.s32.totalorder %s220, %s221
      %p235 = scmp.eq.s32.totalorder %s30, 2
      %p236 = por %p234, %p235
      %p238 = scmp.ne.s32.totalorder %s221, %s237
      %p239 = scmp.eq.s32.totalorder %s30, 0
      %p240 = por %p238, %p239
      %p241 = scmp.le.s32.totalorder 1, %s24
      %p242 = scmp.lt.s32.totalorder %s24, 4
      %p243 = pnand %p241, %p242
      %p244 = pneg %p243
      // Predicated region
      $region9: #{tpu_custom_call.1} parent=5 // pred_check
        _
      $region10: #{tpu_custom_call.1} parent=5 // pred_check_branch
        %246 = sbr.rel (%p243) target = $region12
      $region11: #{tpu_custom_call.1} parent=5 // pred_region
        %s247 = ssub.s32 %s24, 1
        // Predicated region
        $region13: #{tpu_custom_call.1} parent=11 // pred_check
          %p248 = pneg %p85
        $region14: #{tpu_custom_call.1} parent=11 // pred_check_branch
          %250 = sbr.rel (%p248) target = $region16
        $region15: #{tpu_custom_call.1} parent=11 // pred_region
          %252 = vsyncadd [#allocation11], 0
          %s253 = sshll.u32 %s2, 4
          %s254 = int_to_ptr.hbm [resolvable:$true] %s253
          %s255 = sshll.u32 [#allocation10], 4
          %s256 = int_to_ptr.vmem [resolvable:$true] %s255
          %261 = dma.hbm_to_vmem [thread:$0]  %s254, 4096, %s256, [#allocation11], 256, 256, 16
        $region16: #{tpu_custom_call.1} parent=11 // pred_fallthru
          _
        // Predicated region
        $region17: #{tpu_custom_call.1} parent=11 // pred_check
          %p262 = pneg %p106
        $region18: #{tpu_custom_call.1} parent=11 // pred_check_branch
          %264 = sbr.rel (%p262) target = $region20
        $region19: #{tpu_custom_call.1} parent=11 // pred_region
          %266 = vsyncadd [#allocation11], 0
          %s267 = sshll.u32 %s3, 4
          %s268 = int_to_ptr.hbm [resolvable:$true] %s267
          %s269 = sshll.u32 [#allocation12], 4
          %s270 = int_to_ptr.vmem [resolvable:$true] %s269
          %275 = dma.hbm_to_vmem [thread:$0]  %s268, 4096, %s270, [#allocation11], 256, 256, 16
        $region20: #{tpu_custom_call.1} parent=11 // pred_fallthru
          _
        // Predicated region
        $region21: #{tpu_custom_call.1} parent=11 // pred_check
          %p276 = pneg %p127
        $region22: #{tpu_custom_call.1} parent=11 // pred_check_branch
          %278 = sbr.rel (%p276) target = $region24
        $region23: #{tpu_custom_call.1} parent=11 // pred_region
          _
        $region24: #{tpu_custom_call.1} parent=11 // pred_fallthru
          _
        // Predicated region
        $region25: #{tpu_custom_call.1} parent=11 // pred_check
          %p279 = pneg %p153
        $region26: #{tpu_custom_call.1} parent=11 // pred_check_branch
          %281 = sbr.rel (%p279) target = $region28
        $region27: #{tpu_custom_call.1} parent=11 // pred_region
          %p282 = scmp.lt.s32.totalorder %s33, 0
          %s283 = scalar_select %p282, %s33, 0
          %s284 = smul.addr %s283, 8
          %s285 = scalar_lea.vmem %s5, %s284
        $region28: #{tpu_custom_call.1} parent=11 // pred_fallthru
          _
      $region12: #{tpu_custom_call.1} parent=5 // pred_fallthru
        _
      %p286 = scmp.lt.s32.totalorder %s24, 3
      // Predicated region
      $region29: #{tpu_custom_call.1} parent=5 // pred_check
        %p287 = pneg %p286
      $region30: #{tpu_custom_call.1} parent=5 // pred_check_branch
        %289 = sbr.rel (%p287) target = $region32
      $region31: #{tpu_custom_call.1} parent=5 // pred_region
        // Predicated region
        $region33: #{tpu_custom_call.1} parent=31 // pred_check
          %p290 = pneg %p58
        $region34: #{tpu_custom_call.1} parent=31 // pred_check_branch
          %292 = sbr.rel (%p290) target = $region36
        $region35: #{tpu_custom_call.1} parent=31 // pred_region
          %s293 = sand.u32 %s48, 1
          %s294 = scalar_lea.sflag [#allocation8], %s293
          %s295 = sand.u32 %s48, 1
          %s296 = smul.addr %s295, 16
          %s297 = scalar_lea.vmem [#allocation7], %s296
          %s298 = smul.u32 4, %s32
          %300 = vsyncadd %s294, 0
          %s301 = smul.addr %s31, 12
          %s302 = sadd.s32 %s298, %s301
          %s303 = smul.addr %s302, 4
          %s304 = scalar_lea.hbm %s1, %s303
          %s305 = sshll.u32 %s304, 4
          %s306 = int_to_ptr.hbm [resolvable:$true] %s305
          %s307 = sshll.u32 %s297, 4
          %s308 = int_to_ptr.vmem [resolvable:$true] %s307
          %313 = dma.hbm_to_vmem [thread:$0]  %s306, 256, %s308, %s294, 64, 64, 4
        $region36: #{tpu_custom_call.1} parent=31 // pred_fallthru
          _
      $region32: #{tpu_custom_call.1} parent=5 // pred_fallthru
        _
      %p314 = scmp.le.s32.totalorder 1, %s24
      %p315 = scmp.lt.s32.totalorder %s24, 4
      %p316 = pnand %p314, %p315
      %p317 = pneg %p316
      // Predicated region
      $region37: #{tpu_custom_call.1} parent=5 // pred_check
        _
      $region38: #{tpu_custom_call.1} parent=5 // pred_check_branch
        %319 = sbr.rel (%p316) target = $region40
      $region39: #{tpu_custom_call.1} parent=5 // pred_region
        %s320 = ssub.s32 %s24, 1
        %s321 = sand.u32 %s51, 1
        %s322 = scalar_lea.sflag [#allocation8], %s321
        %s323 = sand.u32 %s51, 1
        %s324 = smul.addr %s323, 16
        %s325 = scalar_lea.vmem [#allocation7], %s324
        // Predicated region
        $region41: #{tpu_custom_call.1} parent=39 // pred_check
          %p326 = pneg %p64
        $region42: #{tpu_custom_call.1} parent=39 // pred_check_branch
          %328 = sbr.rel (%p326) target = $region44
        $region43: #{tpu_custom_call.1} parent=39 // pred_region
          %330 = dma.done %s322, 256
        $region44: #{tpu_custom_call.1} parent=39 // pred_fallthru
          _
        // Predicated region
        $region45: #{tpu_custom_call.1} parent=39 // pred_check
          %p331 = pneg %p85
        $region46: #{tpu_custom_call.1} parent=39 // pred_check_branch
          %333 = sbr.rel (%p331) target = $region48
        $region47: #{tpu_custom_call.1} parent=39 // pred_region
          %335 = dma.done [#allocation11], 4096
        $region48: #{tpu_custom_call.1} parent=39 // pred_fallthru
          _
        // Predicated region
        $region49: #{tpu_custom_call.1} parent=39 // pred_check
          %p336 = pneg %p106
        $region50: #{tpu_custom_call.1} parent=39 // pred_check_branch
          %338 = sbr.rel (%p336) target = $region52
        $region51: #{tpu_custom_call.1} parent=39 // pred_region
          %340 = dma.done [#allocation11], 4096
        $region52: #{tpu_custom_call.1} parent=39 // pred_fallthru
          _
        %s341 = sand.u32 %s51, 1
        %s342 = scalar_lea.sflag [#allocation8], %s341
        %s343 = sand.u32 %s51, 1
        %s344 = smul.addr %s343, 16
        %s345 = scalar_lea.vmem [#allocation7], %s344
        %p346 = pneg %p64
        %p347 = pneg %p61
        %p348 = pneg %p85
        %p349 = pneg %p82
        %p350 = pneg %p106
        %p351 = pneg %p103
        %p352 = pneg %p127
        %p353 = pneg %p124
        %p354 = scmp.lt.s32.totalorder %s33, 0
        %s355 = scalar_select %p354, %s33, 0
        %s356 = smul.addr %s355, 8
        %s357 = scalar_lea.vmem %s5, %s356
        %p358 = pneg %p153
        %p359 = pneg %p150
        %p360 = pneg %p181
        %p361 = pneg %p178
        %s362 = sand.u32 %s168, 1
        %s363 = scalar_lea.sflag [#allocation9], %s362
        %s364 = sand.u32 %s168, 1
        %s365 = smul.addr %s364, 16
        %s366 = scalar_lea.vmem [#allocation13], %s365
        %p367 = pneg %p207
        %p368 = pneg %p204
        %p369 = pneg %p233
        %p370 = pneg %p230
        %s371 = smul.u32 4, %s34
        %p372 = scmp.lt.s32.totalorder %s33, 0
        %s373 = scalar_select %p372, %s33, 0
        %s374 = smul.addr %s373, 8
        %s375 = scalar_lea.vmem %s5, %s374
        %s376 = smul.u32 4, %s34
        %s378 = smul.u32 %s34, 4
        %s379 = sld [smem:[#allocation6 + %s33]]
        %p380 = scmp.eq.s32.totalorder %s34, 0
        // Predicated region
        $region53: #{tpu_custom_call.1} parent=39 // pred_check
          %p381 = pneg %p380
        $region54: #{tpu_custom_call.1} parent=39 // pred_check_branch
          %383 = sbr.rel (%p381) target = $region56
        $region55: #{tpu_custom_call.1} parent=39 // pred_region
          %384 = vst [vmem:[#allocation3] sm:$0xff] 0.0
          %385 = vst [vmem:[#allocation4] sm:$0xff] 0.0
        $region56: #{tpu_custom_call.1} parent=39 // pred_fallthru
          _
        %p386 = scmp.lt.s32.totalorder %s378, %s379
        // Predicated region
        $region57: #{tpu_custom_call.1} parent=39 // pred_check
          %p387 = pneg %p386
        $region58: #{tpu_custom_call.1} parent=39 // pred_check_branch
          %389 = sbr.rel (%p387) target = $region60
        $region59: #{tpu_custom_call.1} parent=39 // pred_region
          %v390 = vld [vmem:[%s325] sm:$0xf]
          %v391 = vld [vmem:[%s325 + $0x4] sm:$0xf]
          %v392 = vld [vmem:[%s325 + $0x8] sm:$0xf]
          %v393 = vld [vmem:[%s325 + $0xc] sm:$0xf]
          %v394 = vld [vmem:[#allocation10] sm:$0xff]
          %v395 = vld [vmem:[#allocation10 + $0x8] sm:$0xff]
          %v396 = vld [vmem:[#allocation10 + $0x10] sm:$0xff]
          %v397 = vld [vmem:[#allocation10 + $0x18] sm:$0xff]
          %v398 = vld [vmem:[#allocation10 + $0x20] sm:$0xff]
          %v399 = vld [vmem:[#allocation10 + $0x28] sm:$0xff]
          %v400 = vld [vmem:[#allocation10 + $0x30] sm:$0xff]
          %v401 = vld [vmem:[#allocation10 + $0x38] sm:$0xff]
          %v402 = vld [vmem:[#allocation10 + $0x40] sm:$0xff]
          %v403 = vld [vmem:[#allocation10 + $0x48] sm:$0xff]
          %v404 = vld [vmem:[#allocation10 + $0x50] sm:$0xff]
          %v405 = vld [vmem:[#allocation10 + $0x58] sm:$0xff]
          %v406 = vld [vmem:[#allocation10 + $0x60] sm:$0xff]
          %v407 = vld [vmem:[#allocation10 + $0x68] sm:$0xff]
          %v408 = vld [vmem:[#allocation10 + $0x70] sm:$0xff]
          %v409 = vld [vmem:[#allocation10 + $0x78] sm:$0xff]
          %v410 = vld [vmem:[#allocation10 + $0x80] sm:$0xff]
          %v411 = vld [vmem:[#allocation10 + $0x88] sm:$0xff]
          %v412 = vld [vmem:[#allocation10 + $0x90] sm:$0xff]
          %v413 = vld [vmem:[#allocation10 + $0x98] sm:$0xff]
          %v414 = vld [vmem:[#allocation10 + $0xa0] sm:$0xff]
          %v415 = vld [vmem:[#allocation10 + $0xa8] sm:$0xff]
          %v416 = vld [vmem:[#allocation10 + $0xb0] sm:$0xff]
          %v417 = vld [vmem:[#allocation10 + $0xb8] sm:$0xff]
          %v418 = vld [vmem:[#allocation10 + $0xc0] sm:$0xff]
          %v419 = vld [vmem:[#allocation10 + $0xc8] sm:$0xff]
          %v420 = vld [vmem:[#allocation10 + $0xd0] sm:$0xff]
          %v421 = vld [vmem:[#allocation10 + $0xd8] sm:$0xff]
          %v422 = vld [vmem:[#allocation10 + $0xe0] sm:$0xff]
          %v423 = vld [vmem:[#allocation10 + $0xe8] sm:$0xff]
          %v424 = vld [vmem:[#allocation10 + $0xf0] sm:$0xff]
          %v425 = vld [vmem:[#allocation10 + $0xf8] sm:$0xff]
          %v426 = vld [vmem:[%s4] sm:$0xf]
          %v428 = vperm.slane %v426, 0
          %v429 = vperm.slane %v426, 1
          %v430 = vperm.slane %v426, 2
          %v431 = vperm.slane %v426, 3
          %v440 = vunpack.c.l.b16 %v390
          %v441 = vunpack.c.l.b16 %v391
          %v442 = vunpack.c.l.b16 %v392
          %v443 = vunpack.c.l.b16 %v393
          %v444 = vpack.c.b16 %v441, %v440
          %v445 = vpack.c.b16 %v443, %v442
          %v480 = vunpack.c.l.b16 %v394
          %v481 = vunpack.c.h.b16 %v394
          %v482 = vunpack.c.l.b16 %v395
          %v483 = vunpack.c.h.b16 %v395
          %v484 = vunpack.c.l.b16 %v396
          %v485 = vunpack.c.h.b16 %v396
          %v486 = vunpack.c.l.b16 %v397
          %v487 = vunpack.c.h.b16 %v397
          %v488 = vunpack.c.l.b16 %v398
          %v489 = vunpack.c.h.b16 %v398
          %v490 = vunpack.c.l.b16 %v399
          %v491 = vunpack.c.h.b16 %v399
          %v492 = vunpack.c.l.b16 %v400
          %v493 = vunpack.c.h.b16 %v400
          %v494 = vunpack.c.l.b16 %v401
          %v495 = vunpack.c.h.b16 %v401
          %v496 = vunpack.c.l.b16 %v402
          %v497 = vunpack.c.h.b16 %v402
          %v498 = vunpack.c.l.b16 %v403
          %v499 = vunpack.c.h.b16 %v403
          %v500 = vunpack.c.l.b16 %v404
          %v501 = vunpack.c.h.b16 %v404
          %v502 = vunpack.c.l.b16 %v405
          %v503 = vunpack.c.h.b16 %v405
          %v504 = vunpack.c.l.b16 %v406
          %v505 = vunpack.c.h.b16 %v406
          %v506 = vunpack.c.l.b16 %v407
          %v507 = vunpack.c.h.b16 %v407
          %v508 = vunpack.c.l.b16 %v408
          %v509 = vunpack.c.h.b16 %v408
          %v510 = vunpack.c.l.b16 %v409
          %v511 = vunpack.c.h.b16 %v409
          %v512 = vunpack.c.l.b16 %v410
          %v513 = vunpack.c.h.b16 %v410
          %v514 = vunpack.c.l.b16 %v411
          %v515 = vunpack.c.h.b16 %v411
          %v516 = vunpack.c.l.b16 %v412
          %v517 = vunpack.c.h.b16 %v412
          %v518 = vunpack.c.l.b16 %v413
          %v519 = vunpack.c.h.b16 %v413
          %v520 = vunpack.c.l.b16 %v414
          %v521 = vunpack.c.h.b16 %v414
          %v522 = vunpack.c.l.b16 %v415
          %v523 = vunpack.c.h.b16 %v415
          %v524 = vunpack.c.l.b16 %v416
          %v525 = vunpack.c.h.b16 %v416
          %v526 = vunpack.c.l.b16 %v417
          %v527 = vunpack.c.h.b16 %v417
          %v528 = vunpack.c.l.b16 %v418
          %v529 = vunpack.c.h.b16 %v418
          %v530 = vunpack.c.l.b16 %v419
          %v531 = vunpack.c.h.b16 %v419
          %v532 = vunpack.c.l.b16 %v420
          %v533 = vunpack.c.h.b16 %v420
          %v534 = vunpack.c.l.b16 %v421
          %v535 = vunpack.c.h.b16 %v421
          %v536 = vunpack.c.l.b16 %v422
          %v537 = vunpack.c.h.b16 %v422
          %v538 = vunpack.c.l.b16 %v423
          %v539 = vunpack.c.h.b16 %v423
          %v540 = vunpack.c.l.b16 %v424
          %v541 = vunpack.c.h.b16 %v424
          %v542 = vunpack.c.l.b16 %v425
          %v543 = vunpack.c.h.b16 %v425
          %v544 = vpack.c.b16 %v484, %v480
          %v545 = vpack.c.b16 %v485, %v481
          %v546 = vpack.c.b16 %v486, %v482
          %v547 = vpack.c.b16 %v487, %v483
          %v548 = vpack.c.b16 %v492, %v488
          %v549 = vpack.c.b16 %v493, %v489
          %v550 = vpack.c.b16 %v494, %v490
          %v551 = vpack.c.b16 %v495, %v491
          %v552 = vpack.c.b16 %v500, %v496
          %v553 = vpack.c.b16 %v501, %v497
          %v554 = vpack.c.b16 %v502, %v498
          %v555 = vpack.c.b16 %v503, %v499
          %v556 = vpack.c.b16 %v508, %v504
          %v557 = vpack.c.b16 %v509, %v505
          %v558 = vpack.c.b16 %v510, %v506
          %v559 = vpack.c.b16 %v511, %v507
          %v560 = vpack.c.b16 %v516, %v512
          %v561 = vpack.c.b16 %v517, %v513
          %v562 = vpack.c.b16 %v518, %v514
          %v563 = vpack.c.b16 %v519, %v515
          %v564 = vpack.c.b16 %v524, %v520
          %v565 = vpack.c.b16 %v525, %v521
          %v566 = vpack.c.b16 %v526, %v522
          %v567 = vpack.c.b16 %v527, %v523
          %v568 = vpack.c.b16 %v532, %v528
          %v569 = vpack.c.b16 %v533, %v529
          %v570 = vpack.c.b16 %v534, %v530
          %v571 = vpack.c.b16 %v535, %v531
          %v572 = vpack.c.b16 %v540, %v536
          %v573 = vpack.c.b16 %v541, %v537
          %v574 = vpack.c.b16 %v542, %v538
          %v575 = vpack.c.b16 %v543, %v539
          %608 = vmatpush.bf16.msra.mxu0 %v572
          %609 = vmatpush.bf16.msra.mxu0 %v568
          %610 = vmatpush.bf16.msra.mxu0 %v564
          %611 = vmatpush.bf16.msra.mxu0 %v560
          %612 = vmatpush.bf16.msra.mxu0 %v556
          %613 = vmatpush.bf16.msra.mxu0 %v552
          %614 = vmatpush.bf16.msra.mxu0 %v548
          %615 = vmatpush.bf16.msra.mxu0 %v544
          %616 = vmatmul.bf16.gmra.mxu0 %v444
          %v617 = vpop.f32.mrf.mxu0
          %v618 = vadd.f32 %v428, %v617
          %v619 = vpop.f32.mrf.mxu0
          %v620 = vadd.f32 %v428, %v619
          %621 = vmatmul.bf16.gmra.mxu0 %v445
          %v622 = vpop.f32.mrf.mxu0
          %v623 = vadd.f32 %v428, %v622
          %v624 = vpop.f32.mrf.mxu0
          %v625 = vadd.f32 %v428, %v624
          %626 = vdwg.mxu0
          %627 = vmatpush.bf16.msra.mxu0 %v573
          %628 = vmatpush.bf16.msra.mxu0 %v569
          %629 = vmatpush.bf16.msra.mxu0 %v565
          %630 = vmatpush.bf16.msra.mxu0 %v561
          %631 = vmatpush.bf16.msra.mxu0 %v557
          %632 = vmatpush.bf16.msra.mxu0 %v553
          %633 = vmatpush.bf16.msra.mxu0 %v549
          %634 = vmatpush.bf16.msra.mxu0 %v545
          %635 = vmatmul.bf16.gmra.mxu0 %v444
          %v636 = vpop.f32.mrf.mxu0
          %v637 = vadd.f32 %v429, %v636
          %v638 = vpop.f32.mrf.mxu0
          %v639 = vadd.f32 %v429, %v638
          %640 = vmatmul.bf16.gmra.mxu0 %v445
          %v641 = vpop.f32.mrf.mxu0
          %v642 = vadd.f32 %v429, %v641
          %v643 = vpop.f32.mrf.mxu0
          %v644 = vadd.f32 %v429, %v643
          %645 = vdwg.mxu0
          %646 = vmatpush.bf16.msra.mxu0 %v574
          %647 = vmatpush.bf16.msra.mxu0 %v570
          %648 = vmatpush.bf16.msra.mxu0 %v566
          %649 = vmatpush.bf16.msra.mxu0 %v562
          %650 = vmatpush.bf16.msra.mxu0 %v558
          %651 = vmatpush.bf16.msra.mxu0 %v554
          %652 = vmatpush.bf16.msra.mxu0 %v550
          %653 = vmatpush.bf16.msra.mxu0 %v546
          %654 = vmatmul.bf16.gmra.mxu0 %v444
          %v655 = vpop.f32.mrf.mxu0
          %v656 = vadd.f32 %v430, %v655
          %v657 = vpop.f32.mrf.mxu0
          %v658 = vadd.f32 %v430, %v657
          %659 = vmatmul.bf16.gmra.mxu0 %v445
          %v660 = vpop.f32.mrf.mxu0
          %v661 = vadd.f32 %v430, %v660
          %v662 = vpop.f32.mrf.mxu0
          %v663 = vadd.f32 %v430, %v662
          %664 = vdwg.mxu0
          %665 = vmatpush.bf16.msra.mxu0 %v575
          %666 = vmatpush.bf16.msra.mxu0 %v571
          %667 = vmatpush.bf16.msra.mxu0 %v567
          %668 = vmatpush.bf16.msra.mxu0 %v563
          %669 = vmatpush.bf16.msra.mxu0 %v559
          %670 = vmatpush.bf16.msra.mxu0 %v555
          %671 = vmatpush.bf16.msra.mxu0 %v551
          %672 = vmatpush.bf16.msra.mxu0 %v547
          %673 = vmatmul.bf16.gmra.mxu0 %v444
          %v674 = vpop.f32.mrf.mxu0
          %v675 = vadd.f32 %v431, %v674
          %v676 = vpop.f32.mrf.mxu0
          %v677 = vadd.f32 %v431, %v676
          %678 = vmatmul.bf16.gmra.mxu0 %v445
          %v679 = vpop.f32.mrf.mxu0
          %v680 = vadd.f32 %v431, %v679
          %v681 = vpop.f32.mrf.mxu0
          %v682 = vadd.f32 %v431, %v681
          %683 = vdwg.mxu0
          %v684 = vpack.c.bf16 %v637, %v618
          %v685 = vpack.c.bf16 %v675, %v656
          %v686 = vpack.c.bf16 %v639, %v620
          %v687 = vpack.c.bf16 %v677, %v658
          %v688 = vpack.c.bf16 %v642, %v623
          %v689 = vpack.c.bf16 %v680, %v661
          %v690 = vpack.c.bf16 %v644, %v625
          %v691 = vpack.c.bf16 %v682, %v663
          %692 = vst [vmem:[#allocation2] sm:$0xff] %v684
          %693 = vst [vmem:[#allocation2 + $0x8] sm:$0xff] %v685
          %694 = vst [vmem:[#allocation2 + $0x10] sm:$0xff] %v686
          %695 = vst [vmem:[#allocation2 + $0x18] sm:$0xff] %v687
          %696 = vst [vmem:[#allocation2 + $0x20] sm:$0xff] %v688
          %697 = vst [vmem:[#allocation2 + $0x28] sm:$0xff] %v689
          %698 = vst [vmem:[#allocation2 + $0x30] sm:$0xff] %v690
          %699 = vst [vmem:[#allocation2 + $0x38] sm:$0xff] %v691
          %v700 = vld [vmem:[%s375] sm:$0xff]
          %v701 = vld [vmem:[#allocation3] sm:$0xff]
          %v702 = vld [vmem:[#allocation4] sm:$0xff]
          %s703 = smul.u32 0, 4
          %s704 = smul.addr %s703, 4
          %s705 = scalar_lea.vmem [#allocation2], %s704
          %v706 = vld [vmem:[%s705] sm:$0xff]
          %v707 = vld [vmem:[%s705 + $0x8] sm:$0xff]
          %v708 = vunpack.c.l.bf16 %v706
          %v709 = vunpack.c.h.bf16 %v706
          %v710 = vunpack.c.l.bf16 %v707
          %v711 = vunpack.c.h.bf16 %v707
          %v712 = vpack.c.bf16 %v701, %v701
          %v713 = vld [vmem:[#allocation12] sm:$0xff]
          %v714 = vld [vmem:[#allocation12 + $0x8] sm:$0xff]
          %v715 = vld [vmem:[#allocation12 + $0x10] sm:$0xff]
          %v716 = vld [vmem:[#allocation12 + $0x18] sm:$0xff]
          %v717 = vld [vmem:[#allocation12 + $0x20] sm:$0xff]
          %v718 = vld [vmem:[#allocation12 + $0x28] sm:$0xff]
          %v719 = vld [vmem:[#allocation12 + $0x30] sm:$0xff]
          %v720 = vld [vmem:[#allocation12 + $0x38] sm:$0xff]
          %v721 = vld [vmem:[#allocation12 + $0x40] sm:$0xff]
          %v722 = vld [vmem:[#allocation12 + $0x48] sm:$0xff]
          %v723 = vld [vmem:[#allocation12 + $0x50] sm:$0xff]
          %v724 = vld [vmem:[#allocation12 + $0x58] sm:$0xff]
          %v725 = vld [vmem:[#allocation12 + $0x60] sm:$0xff]
          %v726 = vld [vmem:[#allocation12 + $0x68] sm:$0xff]
          %v727 = vld [vmem:[#allocation12 + $0x70] sm:$0xff]
          %v728 = vld [vmem:[#allocation12 + $0x78] sm:$0xff]
          %v729 = vld [vmem:[#allocation12 + $0x80] sm:$0xff]
          %v730 = vld [vmem:[#allocation12 + $0x88] sm:$0xff]
          %v731 = vld [vmem:[#allocation12 + $0x90] sm:$0xff]
          %v732 = vld [vmem:[#allocation12 + $0x98] sm:$0xff]
          %v733 = vld [vmem:[#allocation12 + $0xa0] sm:$0xff]
          %v734 = vld [vmem:[#allocation12 + $0xa8] sm:$0xff]
          %v735 = vld [vmem:[#allocation12 + $0xb0] sm:$0xff]
          %v736 = vld [vmem:[#allocation12 + $0xb8] sm:$0xff]
          %v737 = vld [vmem:[#allocation12 + $0xc0] sm:$0xff]
          %v738 = vld [vmem:[#allocation12 + $0xc8] sm:$0xff]
          %v739 = vld [vmem:[#allocation12 + $0xd0] sm:$0xff]
          %v740 = vld [vmem:[#allocation12 + $0xd8] sm:$0xff]
          %v741 = vld [vmem:[#allocation12 + $0xe0] sm:$0xff]
          %v742 = vld [vmem:[#allocation12 + $0xe8] sm:$0xff]
          %v743 = vld [vmem:[#allocation12 + $0xf0] sm:$0xff]
          %v744 = vld [vmem:[#allocation12 + $0xf8] sm:$0xff]
          %v777 = vunpack.c.l.b16 %v713
          %v778 = vunpack.c.h.b16 %v713
          %v779 = vunpack.c.l.b16 %v714
          %v780 = vunpack.c.h.b16 %v714
          %v781 = vunpack.c.l.b16 %v715
          %v782 = vunpack.c.h.b16 %v715
          %v783 = vunpack.c.l.b16 %v716
          %v784 = vunpack.c.h.b16 %v716
          %v785 = vunpack.c.l.b16 %v717
          %v786 = vunpack.c.h.b16 %v717
          %v787 = vunpack.c.l.b16 %v718
          %v788 = vunpack.c.h.b16 %v718
          %v789 = vunpack.c.l.b16 %v719
          %v790 = vunpack.c.h.b16 %v719
          %v791 = vunpack.c.l.b16 %v720
          %v792 = vunpack.c.h.b16 %v720
          %v793 = vunpack.c.l.b16 %v721
          %v794 = vunpack.c.h.b16 %v721
          %v795 = vunpack.c.l.b16 %v722
          %v796 = vunpack.c.h.b16 %v722
          %v797 = vunpack.c.l.b16 %v723
          %v798 = vunpack.c.h.b16 %v723
          %v799 = vunpack.c.l.b16 %v724
          %v800 = vunpack.c.h.b16 %v724
          %v801 = vunpack.c.l.b16 %v725
          %v802 = vunpack.c.h.b16 %v725
          %v803 = vunpack.c.l.b16 %v726
          %v804 = vunpack.c.h.b16 %v726
          %v805 = vunpack.c.l.b16 %v727
          %v806 = vunpack.c.h.b16 %v727
          %v807 = vunpack.c.l.b16 %v728
          %v808 = vunpack.c.h.b16 %v728
          %v809 = vunpack.c.l.b16 %v729
          %v810 = vunpack.c.h.b16 %v729
          %v811 = vunpack.c.l.b16 %v730
          %v812 = vunpack.c.h.b16 %v730
          %v813 = vunpack.c.l.b16 %v731
          %v814 = vunpack.c.h.b16 %v731
          %v815 = vunpack.c.l.b16 %v732
          %v816 = vunpack.c.h.b16 %v732
          %v817 = vunpack.c.l.b16 %v733
          %v818 = vunpack.c.h.b16 %v733
          %v819 = vunpack.c.l.b16 %v734
          %v820 = vunpack.c.h.b16 %v734
          %v821 = vunpack.c.l.b16 %v735
          %v822 = vunpack.c.h.b16 %v735
          %v823 = vunpack.c.l.b16 %v736
          %v824 = vunpack.c.h.b16 %v736
          %v825 = vunpack.c.l.b16 %v737
          %v826 = vunpack.c.h.b16 %v737
          %v827 = vunpack.c.l.b16 %v738
          %v828 = vunpack.c.h.b16 %v738
          %v829 = vunpack.c.l.b16 %v739
          %v830 = vunpack.c.h.b16 %v739
          %v831 = vunpack.c.l.b16 %v740
          %v832 = vunpack.c.h.b16 %v740
          %v833 = vunpack.c.l.b16 %v741
          %v834 = vunpack.c.h.b16 %v741
          %v835 = vunpack.c.l.b16 %v742
          %v836 = vunpack.c.h.b16 %v742
          %v837 = vunpack.c.l.b16 %v743
          %v838 = vunpack.c.h.b16 %v743
          %v839 = vunpack.c.l.b16 %v744
          %v840 = vunpack.c.h.b16 %v744
          %v841 = vpack.c.b16 %v781, %v777
          %v842 = vpack.c.b16 %v782, %v778
          %v843 = vpack.c.b16 %v783, %v779
          %v844 = vpack.c.b16 %v784, %v780
          %v845 = vpack.c.b16 %v789, %v785
          %v846 = vpack.c.b16 %v790, %v786
          %v847 = vpack.c.b16 %v791, %v787
          %v848 = vpack.c.b16 %v792, %v788
          %v849 = vpack.c.b16 %v797, %v793
          %v850 = vpack.c.b16 %v798, %v794
          %v851 = vpack.c.b16 %v799, %v795
          %v852 = vpack.c.b16 %v800, %v796
          %v853 = vpack.c.b16 %v805, %v801
          %v854 = vpack.c.b16 %v806, %v802
          %v855 = vpack.c.b16 %v807, %v803
          %v856 = vpack.c.b16 %v808, %v804
          %v857 = vpack.c.b16 %v813, %v809
          %v858 = vpack.c.b16 %v814, %v810
          %v859 = vpack.c.b16 %v815, %v811
          %v860 = vpack.c.b16 %v816, %v812
          %v861 = vpack.c.b16 %v821, %v817
          %v862 = vpack.c.b16 %v822, %v818
          %v863 = vpack.c.b16 %v823, %v819
          %v864 = vpack.c.b16 %v824, %v820
          %v865 = vpack.c.b16 %v829, %v825
          %v866 = vpack.c.b16 %v830, %v826
          %v867 = vpack.c.b16 %v831, %v827
          %v868 = vpack.c.b16 %v832, %v828
          %v869 = vpack.c.b16 %v837, %v833
          %v870 = vpack.c.b16 %v838, %v834
          %v871 = vpack.c.b16 %v839, %v835
          %v872 = vpack.c.b16 %v840, %v836
          %905 = vmatpush.bf16.msra.mxu0 %v869
          %906 = vmatpush.bf16.msra.mxu0 %v865
          %907 = vmatpush.bf16.msra.mxu0 %v861
          %908 = vmatpush.bf16.msra.mxu0 %v857
          %909 = vmatpush.bf16.msra.mxu0 %v853
          %910 = vmatpush.bf16.msra.mxu0 %v849
          %911 = vmatpush.bf16.msra.mxu0 %v845
          %912 = vmatpush.bf16.msra.mxu0 %v841
          %913 = vmatmul.bf16.gmra.mxu0 %v712
          %v914 = vpop.f32.mrf.mxu0
          %v915 = vadd.f32 0.0, %v914
          %v916 = vpop.f32.mrf.mxu0
          %917 = vdwg.mxu0
          %918 = vmatpush.bf16.msra.mxu0 %v870
          %919 = vmatpush.bf16.msra.mxu0 %v866
          %920 = vmatpush.bf16.msra.mxu0 %v862
          %921 = vmatpush.bf16.msra.mxu0 %v858
          %922 = vmatpush.bf16.msra.mxu0 %v854
          %923 = vmatpush.bf16.msra.mxu0 %v850
          %924 = vmatpush.bf16.msra.mxu0 %v846
          %925 = vmatpush.bf16.msra.mxu0 %v842
          %926 = vmatmul.bf16.gmra.mxu0 %v712
          %v927 = vpop.f32.mrf.mxu0
          %v928 = vadd.f32 0.0, %v927
          %v929 = vpop.f32.mrf.mxu0
          %930 = vdwg.mxu0
          %931 = vmatpush.bf16.msra.mxu0 %v871
          %932 = vmatpush.bf16.msra.mxu0 %v867
          %933 = vmatpush.bf16.msra.mxu0 %v863
          %934 = vmatpush.bf16.msra.mxu0 %v859
          %935 = vmatpush.bf16.msra.mxu0 %v855
          %936 = vmatpush.bf16.msra.mxu0 %v851
          %937 = vmatpush.bf16.msra.mxu0 %v847
          %938 = vmatpush.bf16.msra.mxu0 %v843
          %939 = vmatmul.bf16.gmra.mxu0 %v712
          %v940 = vpop.f32.mrf.mxu0
          %v941 = vadd.f32 0.0, %v940
          %v942 = vpop.f32.mrf.mxu0
          %943 = vdwg.mxu0
          %944 = vmatpush.bf16.msra.mxu0 %v872
          %945 = vmatpush.bf16.msra.mxu0 %v868
          %946 = vmatpush.bf16.msra.mxu0 %v864
          %947 = vmatpush.bf16.msra.mxu0 %v860
          %948 = vmatpush.bf16.msra.mxu0 %v856
          %949 = vmatpush.bf16.msra.mxu0 %v852
          %950 = vmatpush.bf16.msra.mxu0 %v848
          %951 = vmatpush.bf16.msra.mxu0 %v844
          %952 = vmatmul.bf16.gmra.mxu0 %v712
          %v953 = vpop.f32.mrf.mxu0
          %v954 = vadd.f32 0.0, %v953
          %v955 = vpop.f32.mrf.mxu0
          %956 = vdwg.mxu0
          %v957 = vadd.f32 %v708, %v915
          %v958 = vadd.f32 %v709, %v928
          %v959 = vadd.f32 %v710, %v941
          %v960 = vadd.f32 %v711, %v954
          %v961 = vmul.f32 %v957, 0.5
          %v962 = vtanh.pop %v961
          %v963 = vmul.f32 %v962, 0.5
          %v964 = vadd.f32 %v963, 0.5
          %v965 = vmul.f32 %v958, 0.5
          %v966 = vtanh.pop %v965
          %v967 = vmul.f32 %v966, 0.5
          %v968 = vadd.f32 %v967, 0.5
          %v969 = vtanh.pop %v959
          %v970 = vmul.f32 %v960, 0.5
          %v971 = vtanh.pop %v970
          %v972 = vmul.f32 %v971, 0.5
          %v973 = vadd.f32 %v972, 0.5
          %v974 = vmul.f32 %v968, %v702
          %v975 = vmul.f32 %v964, %v969
          %v976 = vadd.f32 %v974, %v975
          %v977 = vtanh.pop %v976
          %v978 = vmul.f32 %v973, %v977
          %v979 = vstv %s378
          %vm980 = vcmp.lt.s32.totalorder %v979, %v700
          %v981 = vsel %vm980, 1, 0
          %982 = vset.pattern.permute.xlu0 0
          %983 = vperm.xlu0 %982, %v981
          %v984 = vpop.permute.xlu0 %983
          %vm985 = vcmp.eq.s32.totalorder %v984, 1
          %v986 = vsel %vm985, %v978, 0.0
          %v987 = vpack.c.bf16 %v986, %v986
          %988 = vst [vmem:[%s366] sm:$0xf] %v987
          %v989 = vsel %vm985, %v978, %v701
          %v990 = vsel %vm985, %v976, %v702
          %s991 = smul.u32 1, 4
          %s992 = smul.addr %s991, 4
          %s993 = scalar_lea.vmem [#allocation2], %s992
          %v994 = vld [vmem:[%s993] sm:$0xff]
          %v995 = vld [vmem:[%s993 + $0x8] sm:$0xff]
          %v996 = vunpack.c.l.bf16 %v994
          %v997 = vunpack.c.h.bf16 %v994
          %v998 = vunpack.c.l.bf16 %v995
          %v999 = vunpack.c.h.bf16 %v995
          %v1000 = vpack.c.bf16 %v989, %v989
          %v1001 = vld [vmem:[#allocation12] sm:$0xff]
          %v1002 = vld [vmem:[#allocation12 + $0x8] sm:$0xff]
          %v1003 = vld [vmem:[#allocation12 + $0x10] sm:$0xff]
          %v1004 = vld [vmem:[#allocation12 + $0x18] sm:$0xff]
          %v1005 = vld [vmem:[#allocation12 + $0x20] sm:$0xff]
          %v1006 = vld [vmem:[#allocation12 + $0x28] sm:$0xff]
          %v1007 = vld [vmem:[#allocation12 + $0x30] sm:$0xff]
          %v1008 = vld [vmem:[#allocation12 + $0x38] sm:$0xff]
          %v1009 = vld [vmem:[#allocation12 + $0x40] sm:$0xff]
          %v1010 = vld [vmem:[#allocation12 + $0x48] sm:$0xff]
          %v1011 = vld [vmem:[#allocation12 + $0x50] sm:$0xff]
          %v1012 = vld [vmem:[#allocation12 + $0x58] sm:$0xff]
          %v1013 = vld [vmem:[#allocation12 + $0x60] sm:$0xff]
          %v1014 = vld [vmem:[#allocation12 + $0x68] sm:$0xff]
          %v1015 = vld [vmem:[#allocation12 + $0x70] sm:$0xff]
          %v1016 = vld [vmem:[#allocation12 + $0x78] sm:$0xff]
          %v1017 = vld [vmem:[#allocation12 + $0x80] sm:$0xff]
          %v1018 = vld [vmem:[#allocation12 + $0x88] sm:$0xff]
          %v1019 = vld [vmem:[#allocation12 + $0x90] sm:$0xff]
          %v1020 = vld [vmem:[#allocation12 + $0x98] sm:$0xff]
          %v1021 = vld [vmem:[#allocation12 + $0xa0] sm:$0xff]
          %v1022 = vld [vmem:[#allocation12 + $0xa8] sm:$0xff]
          %v1023 = vld [vmem:[#allocation12 + $0xb0] sm:$0xff]
          %v1024 = vld [vmem:[#allocation12 + $0xb8] sm:$0xff]
          %v1025 = vld [vmem:[#allocation12 + $0xc0] sm:$0xff]
          %v1026 = vld [vmem:[#allocation12 + $0xc8] sm:$0xff]
          %v1027 = vld [vmem:[#allocation12 + $0xd0] sm:$0xff]
          %v1028 = vld [vmem:[#allocation12 + $0xd8] sm:$0xff]
          %v1029 = vld [vmem:[#allocation12 + $0xe0] sm:$0xff]
          %v1030 = vld [vmem:[#allocation12 + $0xe8] sm:$0xff]
          %v1031 = vld [vmem:[#allocation12 + $0xf0] sm:$0xff]
          %v1032 = vld [vmem:[#allocation12 + $0xf8] sm:$0xff]
          %v1065 = vunpack.c.l.b16 %v1001
          %v1066 = vunpack.c.h.b16 %v1001
          %v1067 = vunpack.c.l.b16 %v1002
          %v1068 = vunpack.c.h.b16 %v1002
          %v1069 = vunpack.c.l.b16 %v1003
          %v1070 = vunpack.c.h.b16 %v1003
          %v1071 = vunpack.c.l.b16 %v1004
          %v1072 = vunpack.c.h.b16 %v1004
          %v1073 = vunpack.c.l.b16 %v1005
          %v1074 = vunpack.c.h.b16 %v1005
          %v1075 = vunpack.c.l.b16 %v1006
          %v1076 = vunpack.c.h.b16 %v1006
          %v1077 = vunpack.c.l.b16 %v1007
          %v1078 = vunpack.c.h.b16 %v1007
          %v1079 = vunpack.c.l.b16 %v1008
          %v1080 = vunpack.c.h.b16 %v1008
          %v1081 = vunpack.c.l.b16 %v1009
          %v1082 = vunpack.c.h.b16 %v1009
          %v1083 = vunpack.c.l.b16 %v1010
          %v1084 = vunpack.c.h.b16 %v1010
          %v1085 = vunpack.c.l.b16 %v1011
          %v1086 = vunpack.c.h.b16 %v1011
          %v1087 = vunpack.c.l.b16 %v1012
          %v1088 = vunpack.c.h.b16 %v1012
          %v1089 = vunpack.c.l.b16 %v1013
          %v1090 = vunpack.c.h.b16 %v1013
          %v1091 = vunpack.c.l.b16 %v1014
          %v1092 = vunpack.c.h.b16 %v1014
          %v1093 = vunpack.c.l.b16 %v1015
          %v1094 = vunpack.c.h.b16 %v1015
          %v1095 = vunpack.c.l.b16 %v1016
          %v1096 = vunpack.c.h.b16 %v1016
          %v1097 = vunpack.c.l.b16 %v1017
          %v1098 = vunpack.c.h.b16 %v1017
          %v1099 = vunpack.c.l.b16 %v1018
          %v1100 = vunpack.c.h.b16 %v1018
          %v1101 = vunpack.c.l.b16 %v1019
          %v1102 = vunpack.c.h.b16 %v1019
          %v1103 = vunpack.c.l.b16 %v1020
          %v1104 = vunpack.c.h.b16 %v1020
          %v1105 = vunpack.c.l.b16 %v1021
          %v1106 = vunpack.c.h.b16 %v1021
          %v1107 = vunpack.c.l.b16 %v1022
          %v1108 = vunpack.c.h.b16 %v1022
          %v1109 = vunpack.c.l.b16 %v1023
          %v1110 = vunpack.c.h.b16 %v1023
          %v1111 = vunpack.c.l.b16 %v1024
          %v1112 = vunpack.c.h.b16 %v1024
          %v1113 = vunpack.c.l.b16 %v1025
          %v1114 = vunpack.c.h.b16 %v1025
          %v1115 = vunpack.c.l.b16 %v1026
          %v1116 = vunpack.c.h.b16 %v1026
          %v1117 = vunpack.c.l.b16 %v1027
          %v1118 = vunpack.c.h.b16 %v1027
          %v1119 = vunpack.c.l.b16 %v1028
          %v1120 = vunpack.c.h.b16 %v1028
          %v1121 = vunpack.c.l.b16 %v1029
          %v1122 = vunpack.c.h.b16 %v1029
          %v1123 = vunpack.c.l.b16 %v1030
          %v1124 = vunpack.c.h.b16 %v1030
          %v1125 = vunpack.c.l.b16 %v1031
          %v1126 = vunpack.c.h.b16 %v1031
          %v1127 = vunpack.c.l.b16 %v1032
          %v1128 = vunpack.c.h.b16 %v1032
          %v1129 = vpack.c.b16 %v1069, %v1065
          %v1130 = vpack.c.b16 %v1070, %v1066
          %v1131 = vpack.c.b16 %v1071, %v1067
          %v1132 = vpack.c.b16 %v1072, %v1068
          %v1133 = vpack.c.b16 %v1077, %v1073
          %v1134 = vpack.c.b16 %v1078, %v1074
          %v1135 = vpack.c.b16 %v1079, %v1075
          %v1136 = vpack.c.b16 %v1080, %v1076
          %v1137 = vpack.c.b16 %v1085, %v1081
          %v1138 = vpack.c.b16 %v1086, %v1082
          %v1139 = vpack.c.b16 %v1087, %v1083
          %v1140 = vpack.c.b16 %v1088, %v1084
          %v1141 = vpack.c.b16 %v1093, %v1089
          %v1142 = vpack.c.b16 %v1094, %v1090
          %v1143 = vpack.c.b16 %v1095, %v1091
          %v1144 = vpack.c.b16 %v1096, %v1092
          %v1145 = vpack.c.b16 %v1101, %v1097
          %v1146 = vpack.c.b16 %v1102, %v1098
          %v1147 = vpack.c.b16 %v1103, %v1099
          %v1148 = vpack.c.b16 %v1104, %v1100
          %v1149 = vpack.c.b16 %v1109, %v1105
          %v1150 = vpack.c.b16 %v1110, %v1106
          %v1151 = vpack.c.b16 %v1111, %v1107
          %v1152 = vpack.c.b16 %v1112, %v1108
          %v1153 = vpack.c.b16 %v1117, %v1113
          %v1154 = vpack.c.b16 %v1118, %v1114
          %v1155 = vpack.c.b16 %v1119, %v1115
          %v1156 = vpack.c.b16 %v1120, %v1116
          %v1157 = vpack.c.b16 %v1125, %v1121
          %v1158 = vpack.c.b16 %v1126, %v1122
          %v1159 = vpack.c.b16 %v1127, %v1123
          %v1160 = vpack.c.b16 %v1128, %v1124
          %1193 = vmatpush.bf16.msra.mxu0 %v1157
          %1194 = vmatpush.bf16.msra.mxu0 %v1153
          %1195 = vmatpush.bf16.msra.mxu0 %v1149
          %1196 = vmatpush.bf16.msra.mxu0 %v1145
          %1197 = vmatpush.bf16.msra.mxu0 %v1141
          %1198 = vmatpush.bf16.msra.mxu0 %v1137
          %1199 = vmatpush.bf16.msra.mxu0 %v1133
          %1200 = vmatpush.bf16.msra.mxu0 %v1129
          %1201 = vmatmul.bf16.gmra.mxu0 %v1000
          %v1202 = vpop.f32.mrf.mxu0
          %v1203 = vadd.f32 0.0, %v1202
          %v1204 = vpop.f32.mrf.mxu0
          %1205 = vdwg.mxu0
          %1206 = vmatpush.bf16.msra.mxu0 %v1158
          %1207 = vmatpush.bf16.msra.mxu0 %v1154
          %1208 = vmatpush.bf16.msra.mxu0 %v1150
          %1209 = vmatpush.bf16.msra.mxu0 %v1146
          %1210 = vmatpush.bf16.msra.mxu0 %v1142
          %1211 = vmatpush.bf16.msra.mxu0 %v1138
          %1212 = vmatpush.bf16.msra.mxu0 %v1134
          %1213 = vmatpush.bf16.msra.mxu0 %v1130
          %1214 = vmatmul.bf16.gmra.mxu0 %v1000
          %v1215 = vpop.f32.mrf.mxu0
          %v1216 = vadd.f32 0.0, %v1215
          %v1217 = vpop.f32.mrf.mxu0
          %1218 = vdwg.mxu0
          %1219 = vmatpush.bf16.msra.mxu0 %v1159
          %1220 = vmatpush.bf16.msra.mxu0 %v1155
          %1221 = vmatpush.bf16.msra.mxu0 %v1151
          %1222 = vmatpush.bf16.msra.mxu0 %v1147
          %1223 = vmatpush.bf16.msra.mxu0 %v1143
          %1224 = vmatpush.bf16.msra.mxu0 %v1139
          %1225 = vmatpush.bf16.msra.mxu0 %v1135
          %1226 = vmatpush.bf16.msra.mxu0 %v1131
          %1227 = vmatmul.bf16.gmra.mxu0 %v1000
          %v1228 = vpop.f32.mrf.mxu0
          %v1229 = vadd.f32 0.0, %v1228
          %v1230 = vpop.f32.mrf.mxu0
          %1231 = vdwg.mxu0
          %1232 = vmatpush.bf16.msra.mxu0 %v1160
          %1233 = vmatpush.bf16.msra.mxu0 %v1156
          %1234 = vmatpush.bf16.msra.mxu0 %v1152
          %1235 = vmatpush.bf16.msra.mxu0 %v1148
          %1236 = vmatpush.bf16.msra.mxu0 %v1144
          %1237 = vmatpush.bf16.msra.mxu0 %v1140
          %1238 = vmatpush.bf16.msra.mxu0 %v1136
          %1239 = vmatpush.bf16.msra.mxu0 %v1132
          %1240 = vmatmul.bf16.gmra.mxu0 %v1000
          %v1241 = vpop.f32.mrf.mxu0
          %v1242 = vadd.f32 0.0, %v1241
          %v1243 = vpop.f32.mrf.mxu0
          %1244 = vdwg.mxu0
          %v1245 = vadd.f32 %v996, %v1203
          %v1246 = vadd.f32 %v997, %v1216
          %v1247 = vadd.f32 %v998, %v1229
          %v1248 = vadd.f32 %v999, %v1242
          %v1249 = vmul.f32 %v1245, 0.5
          %v1250 = vtanh.pop %v1249
          %v1251 = vmul.f32 %v1250, 0.5
          %v1252 = vadd.f32 %v1251, 0.5
          %v1253 = vmul.f32 %v1246, 0.5
          %v1254 = vtanh.pop %v1253
          %v1255 = vmul.f32 %v1254, 0.5
          %v1256 = vadd.f32 %v1255, 0.5
          %v1257 = vtanh.pop %v1247
          %v1258 = vmul.f32 %v1248, 0.5
          %v1259 = vtanh.pop %v1258
          %v1260 = vmul.f32 %v1259, 0.5
          %v1261 = vadd.f32 %v1260, 0.5
          %v1262 = vmul.f32 %v1256, %v990
          %v1263 = vmul.f32 %v1252, %v1257
          %v1264 = vadd.f32 %v1262, %v1263
          %v1265 = vtanh.pop %v1264
          %v1266 = vmul.f32 %v1261, %v1265
          %s1267 = sadd.s32 %s378, 1
          %v1268 = vstv %s1267
          %vm1269 = vcmp.lt.s32.totalorder %v1268, %v700
          %v1270 = vsel %vm1269, 1, 0
          %1271 = vset.pattern.permute.xlu0 0
          %1272 = vperm.xlu0 %1271, %v1270
          %v1273 = vpop.permute.xlu0 %1272
          %vm1274 = vcmp.eq.s32.totalorder %v1273, 1
          %v1275 = vsel %vm1274, %v1266, 0.0
          %v1276 = vpack.c.bf16 %v1275, %v1275
          %s1277 = scalar_lea.vmem %s366, 4 [#allocation13]
          %1278 = vst [vmem:[%s1277] sm:$0xf] %v1276
          %v1279 = vsel %vm1274, %v1266, %v989
          %v1280 = vsel %vm1274, %v1264, %v990
          %s1281 = smul.u32 2, 4
          %s1282 = smul.addr %s1281, 4
          %s1283 = scalar_lea.vmem [#allocation2], %s1282
          %v1284 = vld [vmem:[%s1283] sm:$0xff]
          %v1285 = vld [vmem:[%s1283 + $0x8] sm:$0xff]
          %v1286 = vunpack.c.l.bf16 %v1284
          %v1287 = vunpack.c.h.bf16 %v1284
          %v1288 = vunpack.c.l.bf16 %v1285
          %v1289 = vunpack.c.h.bf16 %v1285
          %v1290 = vpack.c.bf16 %v1279, %v1279
          %v1291 = vld [vmem:[#allocation12] sm:$0xff]
          %v1292 = vld [vmem:[#allocation12 + $0x8] sm:$0xff]
          %v1293 = vld [vmem:[#allocation12 + $0x10] sm:$0xff]
          %v1294 = vld [vmem:[#allocation12 + $0x18] sm:$0xff]
          %v1295 = vld [vmem:[#allocation12 + $0x20] sm:$0xff]
          %v1296 = vld [vmem:[#allocation12 + $0x28] sm:$0xff]
          %v1297 = vld [vmem:[#allocation12 + $0x30] sm:$0xff]
          %v1298 = vld [vmem:[#allocation12 + $0x38] sm:$0xff]
          %v1299 = vld [vmem:[#allocation12 + $0x40] sm:$0xff]
          %v1300 = vld [vmem:[#allocation12 + $0x48] sm:$0xff]
          %v1301 = vld [vmem:[#allocation12 + $0x50] sm:$0xff]
          %v1302 = vld [vmem:[#allocation12 + $0x58] sm:$0xff]
          %v1303 = vld [vmem:[#allocation12 + $0x60] sm:$0xff]
          %v1304 = vld [vmem:[#allocation12 + $0x68] sm:$0xff]
          %v1305 = vld [vmem:[#allocation12 + $0x70] sm:$0xff]
          %v1306 = vld [vmem:[#allocation12 + $0x78] sm:$0xff]
          %v1307 = vld [vmem:[#allocation12 + $0x80] sm:$0xff]
          %v1308 = vld [vmem:[#allocation12 + $0x88] sm:$0xff]
          %v1309 = vld [vmem:[#allocation12 + $0x90] sm:$0xff]
          %v1310 = vld [vmem:[#allocation12 + $0x98] sm:$0xff]
          %v1311 = vld [vmem:[#allocation12 + $0xa0] sm:$0xff]
          %v1312 = vld [vmem:[#allocation12 + $0xa8] sm:$0xff]
          %v1313 = vld [vmem:[#allocation12 + $0xb0] sm:$0xff]
          %v1314 = vld [vmem:[#allocation12 + $0xb8] sm:$0xff]
          %v1315 = vld [vmem:[#allocation12 + $0xc0] sm:$0xff]
          %v1316 = vld [vmem:[#allocation12 + $0xc8] sm:$0xff]
          %v1317 = vld [vmem:[#allocation12 + $0xd0] sm:$0xff]
          %v1318 = vld [vmem:[#allocation12 + $0xd8] sm:$0xff]
          %v1319 = vld [vmem:[#allocation12 + $0xe0] sm:$0xff]
          %v1320 = vld [vmem:[#allocation12 + $0xe8] sm:$0xff]
          %v1321 = vld [vmem:[#allocation12 + $0xf0] sm:$0xff]
          %v1322 = vld [vmem:[#allocation12 + $0xf8] sm:$0xff]
          %v1355 = vunpack.c.l.b16 %v1291
          %v1356 = vunpack.c.h.b16 %v1291
          %v1357 = vunpack.c.l.b16 %v1292
          %v1358 = vunpack.c.h.b16 %v1292
          %v1359 = vunpack.c.l.b16 %v1293
          %v1360 = vunpack.c.h.b16 %v1293
          %v1361 = vunpack.c.l.b16 %v1294
          %v1362 = vunpack.c.h.b16 %v1294
          %v1363 = vunpack.c.l.b16 %v1295
          %v1364 = vunpack.c.h.b16 %v1295
          %v1365 = vunpack.c.l.b16 %v1296
          %v1366 = vunpack.c.h.b16 %v1296
          %v1367 = vunpack.c.l.b16 %v1297
          %v1368 = vunpack.c.h.b16 %v1297
          %v1369 = vunpack.c.l.b16 %v1298
          %v1370 = vunpack.c.h.b16 %v1298
          %v1371 = vunpack.c.l.b16 %v1299
          %v1372 = vunpack.c.h.b16 %v1299
          %v1373 = vunpack.c.l.b16 %v1300
          %v1374 = vunpack.c.h.b16 %v1300
          %v1375 = vunpack.c.l.b16 %v1301
          %v1376 = vunpack.c.h.b16 %v1301
          %v1377 = vunpack.c.l.b16 %v1302
          %v1378 = vunpack.c.h.b16 %v1302
          %v1379 = vunpack.c.l.b16 %v1303
          %v1380 = vunpack.c.h.b16 %v1303
          %v1381 = vunpack.c.l.b16 %v1304
          %v1382 = vunpack.c.h.b16 %v1304
          %v1383 = vunpack.c.l.b16 %v1305
          %v1384 = vunpack.c.h.b16 %v1305
          %v1385 = vunpack.c.l.b16 %v1306
          %v1386 = vunpack.c.h.b16 %v1306
          %v1387 = vunpack.c.l.b16 %v1307
          %v1388 = vunpack.c.h.b16 %v1307
          %v1389 = vunpack.c.l.b16 %v1308
          %v1390 = vunpack.c.h.b16 %v1308
          %v1391 = vunpack.c.l.b16 %v1309
          %v1392 = vunpack.c.h.b16 %v1309
          %v1393 = vunpack.c.l.b16 %v1310
          %v1394 = vunpack.c.h.b16 %v1310
          %v1395 = vunpack.c.l.b16 %v1311
          %v1396 = vunpack.c.h.b16 %v1311
          %v1397 = vunpack.c.l.b16 %v1312
          %v1398 = vunpack.c.h.b16 %v1312
          %v1399 = vunpack.c.l.b16 %v1313
          %v1400 = vunpack.c.h.b16 %v1313
          %v1401 = vunpack.c.l.b16 %v1314
          %v1402 = vunpack.c.h.b16 %v1314
          %v1403 = vunpack.c.l.b16 %v1315
          %v1404 = vunpack.c.h.b16 %v1315
          %v1405 = vunpack.c.l.b16 %v1316
          %v1406 = vunpack.c.h.b16 %v1316
          %v1407 = vunpack.c.l.b16 %v1317
          %v1408 = vunpack.c.h.b16 %v1317
          %v1409 = vunpack.c.l.b16 %v1318
          %v1410 = vunpack.c.h.b16 %v1318
          %v1411 = vunpack.c.l.b16 %v1319
          %v1412 = vunpack.c.h.b16 %v1319
          %v1413 = vunpack.c.l.b16 %v1320
          %v1414 = vunpack.c.h.b16 %v1320
          %v1415 = vunpack.c.l.b16 %v1321
          %v1416 = vunpack.c.h.b16 %v1321
          %v1417 = vunpack.c.l.b16 %v1322
          %v1418 = vunpack.c.h.b16 %v1322
          %v1419 = vpack.c.b16 %v1359, %v1355
          %v1420 = vpack.c.b16 %v1360, %v1356
          %v1421 = vpack.c.b16 %v1361, %v1357
          %v1422 = vpack.c.b16 %v1362, %v1358
          %v1423 = vpack.c.b16 %v1367, %v1363
          %v1424 = vpack.c.b16 %v1368, %v1364
          %v1425 = vpack.c.b16 %v1369, %v1365
          %v1426 = vpack.c.b16 %v1370, %v1366
          %v1427 = vpack.c.b16 %v1375, %v1371
          %v1428 = vpack.c.b16 %v1376, %v1372
          %v1429 = vpack.c.b16 %v1377, %v1373
          %v1430 = vpack.c.b16 %v1378, %v1374
          %v1431 = vpack.c.b16 %v1383, %v1379
          %v1432 = vpack.c.b16 %v1384, %v1380
          %v1433 = vpack.c.b16 %v1385, %v1381
          %v1434 = vpack.c.b16 %v1386, %v1382
          %v1435 = vpack.c.b16 %v1391, %v1387
          %v1436 = vpack.c.b16 %v1392, %v1388
          %v1437 = vpack.c.b16 %v1393, %v1389
          %v1438 = vpack.c.b16 %v1394, %v1390
          %v1439 = vpack.c.b16 %v1399, %v1395
          %v1440 = vpack.c.b16 %v1400, %v1396
          %v1441 = vpack.c.b16 %v1401, %v1397
          %v1442 = vpack.c.b16 %v1402, %v1398
          %v1443 = vpack.c.b16 %v1407, %v1403
          %v1444 = vpack.c.b16 %v1408, %v1404
          %v1445 = vpack.c.b16 %v1409, %v1405
          %v1446 = vpack.c.b16 %v1410, %v1406
          %v1447 = vpack.c.b16 %v1415, %v1411
          %v1448 = vpack.c.b16 %v1416, %v1412
          %v1449 = vpack.c.b16 %v1417, %v1413
          %v1450 = vpack.c.b16 %v1418, %v1414
          %1483 = vmatpush.bf16.msra.mxu0 %v1447
          %1484 = vmatpush.bf16.msra.mxu0 %v1443
          %1485 = vmatpush.bf16.msra.mxu0 %v1439
          %1486 = vmatpush.bf16.msra.mxu0 %v1435
          %1487 = vmatpush.bf16.msra.mxu0 %v1431
          %1488 = vmatpush.bf16.msra.mxu0 %v1427
          %1489 = vmatpush.bf16.msra.mxu0 %v1423
          %1490 = vmatpush.bf16.msra.mxu0 %v1419
          %1491 = vmatmul.bf16.gmra.mxu0 %v1290
          %v1492 = vpop.f32.mrf.mxu0
          %v1493 = vadd.f32 0.0, %v1492
          %v1494 = vpop.f32.mrf.mxu0
          %1495 = vdwg.mxu0
          %1496 = vmatpush.bf16.msra.mxu0 %v1448
          %1497 = vmatpush.bf16.msra.mxu0 %v1444
          %1498 = vmatpush.bf16.msra.mxu0 %v1440
          %1499 = vmatpush.bf16.msra.mxu0 %v1436
          %1500 = vmatpush.bf16.msra.mxu0 %v1432
          %1501 = vmatpush.bf16.msra.mxu0 %v1428
          %1502 = vmatpush.bf16.msra.mxu0 %v1424
          %1503 = vmatpush.bf16.msra.mxu0 %v1420
          %1504 = vmatmul.bf16.gmra.mxu0 %v1290
          %v1505 = vpop.f32.mrf.mxu0
          %v1506 = vadd.f32 0.0, %v1505
          %v1507 = vpop.f32.mrf.mxu0
          %1508 = vdwg.mxu0
          %1509 = vmatpush.bf16.msra.mxu0 %v1449
          %1510 = vmatpush.bf16.msra.mxu0 %v1445
          %1511 = vmatpush.bf16.msra.mxu0 %v1441
          %1512 = vmatpush.bf16.msra.mxu0 %v1437
          %1513 = vmatpush.bf16.msra.mxu0 %v1433
          %1514 = vmatpush.bf16.msra.mxu0 %v1429
          %1515 = vmatpush.bf16.msra.mxu0 %v1425
          %1516 = vmatpush.bf16.msra.mxu0 %v1421
          %1517 = vmatmul.bf16.gmra.mxu0 %v1290
          %v1518 = vpop.f32.mrf.mxu0
          %v1519 = vadd.f32 0.0, %v1518
          %v1520 = vpop.f32.mrf.mxu0
          %1521 = vdwg.mxu0
          %1522 = vmatpush.bf16.msra.mxu0 %v1450
          %1523 = vmatpush.bf16.msra.mxu0 %v1446
          %1524 = vmatpush.bf16.msra.mxu0 %v1442
          %1525 = vmatpush.bf16.msra.mxu0 %v1438
          %1526 = vmatpush.bf16.msra.mxu0 %v1434
          %1527 = vmatpush.bf16.msra.mxu0 %v1430
          %1528 = vmatpush.bf16.msra.mxu0 %v1426
          %1529 = vmatpush.bf16.msra.mxu0 %v1422
          %1530 = vmatmul.bf16.gmra.mxu0 %v1290
          %v1531 = vpop.f32.mrf.mxu0
          %v1532 = vadd.f32 0.0, %v1531
          %v1533 = vpop.f32.mrf.mxu0
          %1534 = vdwg.mxu0
          %v1535 = vadd.f32 %v1286, %v1493
          %v1536 = vadd.f32 %v1287, %v1506
          %v1537 = vadd.f32 %v1288, %v1519
          %v1538 = vadd.f32 %v1289, %v1532
          %v1539 = vmul.f32 %v1535, 0.5
          %v1540 = vtanh.pop %v1539
          %v1541 = vmul.f32 %v1540, 0.5
          %v1542 = vadd.f32 %v1541, 0.5
          %v1543 = vmul.f32 %v1536, 0.5
          %v1544 = vtanh.pop %v1543
          %v1545 = vmul.f32 %v1544, 0.5
          %v1546 = vadd.f32 %v1545, 0.5
          %v1547 = vtanh.pop %v1537
          %v1548 = vmul.f32 %v1538, 0.5
          %v1549 = vtanh.pop %v1548
          %v1550 = vmul.f32 %v1549, 0.5
          %v1551 = vadd.f32 %v1550, 0.5
          %v1552 = vmul.f32 %v1546, %v1280
          %v1553 = vmul.f32 %v1542, %v1547
          %v1554 = vadd.f32 %v1552, %v1553
          %v1555 = vtanh.pop %v1554
          %v1556 = vmul.f32 %v1551, %v1555
          %s1557 = sadd.s32 %s378, 2
          %v1558 = vstv %s1557
          %vm1559 = vcmp.lt.s32.totalorder %v1558, %v700
          %v1560 = vsel %vm1559, 1, 0
          %1561 = vset.pattern.permute.xlu0 0
          %1562 = vperm.xlu0 %1561, %v1560
          %v1563 = vpop.permute.xlu0 %1562
          %vm1564 = vcmp.eq.s32.totalorder %v1563, 1
          %v1565 = vsel %vm1564, %v1556, 0.0
          %v1566 = vpack.c.bf16 %v1565, %v1565
          %s1567 = scalar_lea.vmem %s366, 8 [#allocation13]
          %1568 = vst [vmem:[%s1567] sm:$0xf] %v1566
          %v1569 = vsel %vm1564, %v1556, %v1279
          %v1570 = vsel %vm1564, %v1554, %v1280
          %s1571 = smul.u32 3, 4
          %s1572 = smul.addr %s1571, 4
          %s1573 = scalar_lea.vmem [#allocation2], %s1572
          %v1574 = vld [vmem:[%s1573] sm:$0xff]
          %v1575 = vld [vmem:[%s1573 + $0x8] sm:$0xff]
          %v1576 = vunpack.c.l.bf16 %v1574
          %v1577 = vunpack.c.h.bf16 %v1574
          %v1578 = vunpack.c.l.bf16 %v1575
          %v1579 = vunpack.c.h.bf16 %v1575
          %v1580 = vpack.c.bf16 %v1569, %v1569
          %v1581 = vld [vmem:[#allocation12] sm:$0xff]
          %v1582 = vld [vmem:[#allocation12 + $0x8] sm:$0xff]
          %v1583 = vld [vmem:[#allocation12 + $0x10] sm:$0xff]
          %v1584 = vld [vmem:[#allocation12 + $0x18] sm:$0xff]
          %v1585 = vld [vmem:[#allocation12 + $0x20] sm:$0xff]
          %v1586 = vld [vmem:[#allocation12 + $0x28] sm:$0xff]
          %v1587 = vld [vmem:[#allocation12 + $0x30] sm:$0xff]
          %v1588 = vld [vmem:[#allocation12 + $0x38] sm:$0xff]
          %v1589 = vld [vmem:[#allocation12 + $0x40] sm:$0xff]
          %v1590 = vld [vmem:[#allocation12 + $0x48] sm:$0xff]
          %v1591 = vld [vmem:[#allocation12 + $0x50] sm:$0xff]
          %v1592 = vld [vmem:[#allocation12 + $0x58] sm:$0xff]
          %v1593 = vld [vmem:[#allocation12 + $0x60] sm:$0xff]
          %v1594 = vld [vmem:[#allocation12 + $0x68] sm:$0xff]
          %v1595 = vld [vmem:[#allocation12 + $0x70] sm:$0xff]
          %v1596 = vld [vmem:[#allocation12 + $0x78] sm:$0xff]
          %v1597 = vld [vmem:[#allocation12 + $0x80] sm:$0xff]
          %v1598 = vld [vmem:[#allocation12 + $0x88] sm:$0xff]
          %v1599 = vld [vmem:[#allocation12 + $0x90] sm:$0xff]
          %v1600 = vld [vmem:[#allocation12 + $0x98] sm:$0xff]
          %v1601 = vld [vmem:[#allocation12 + $0xa0] sm:$0xff]
          %v1602 = vld [vmem:[#allocation12 + $0xa8] sm:$0xff]
          %v1603 = vld [vmem:[#allocation12 + $0xb0] sm:$0xff]
          %v1604 = vld [vmem:[#allocation12 + $0xb8] sm:$0xff]
          %v1605 = vld [vmem:[#allocation12 + $0xc0] sm:$0xff]
          %v1606 = vld [vmem:[#allocation12 + $0xc8] sm:$0xff]
          %v1607 = vld [vmem:[#allocation12 + $0xd0] sm:$0xff]
          %v1608 = vld [vmem:[#allocation12 + $0xd8] sm:$0xff]
          %v1609 = vld [vmem:[#allocation12 + $0xe0] sm:$0xff]
          %v1610 = vld [vmem:[#allocation12 + $0xe8] sm:$0xff]
          %v1611 = vld [vmem:[#allocation12 + $0xf0] sm:$0xff]
          %v1612 = vld [vmem:[#allocation12 + $0xf8] sm:$0xff]
          %v1645 = vunpack.c.l.b16 %v1581
          %v1646 = vunpack.c.h.b16 %v1581
          %v1647 = vunpack.c.l.b16 %v1582
          %v1648 = vunpack.c.h.b16 %v1582
          %v1649 = vunpack.c.l.b16 %v1583
          %v1650 = vunpack.c.h.b16 %v1583
          %v1651 = vunpack.c.l.b16 %v1584
          %v1652 = vunpack.c.h.b16 %v1584
          %v1653 = vunpack.c.l.b16 %v1585
          %v1654 = vunpack.c.h.b16 %v1585
          %v1655 = vunpack.c.l.b16 %v1586
          %v1656 = vunpack.c.h.b16 %v1586
          %v1657 = vunpack.c.l.b16 %v1587
          %v1658 = vunpack.c.h.b16 %v1587
          %v1659 = vunpack.c.l.b16 %v1588
          %v1660 = vunpack.c.h.b16 %v1588
          %v1661 = vunpack.c.l.b16 %v1589
          %v1662 = vunpack.c.h.b16 %v1589
          %v1663 = vunpack.c.l.b16 %v1590
          %v1664 = vunpack.c.h.b16 %v1590
          %v1665 = vunpack.c.l.b16 %v1591
          %v1666 = vunpack.c.h.b16 %v1591
          %v1667 = vunpack.c.l.b16 %v1592
          %v1668 = vunpack.c.h.b16 %v1592
          %v1669 = vunpack.c.l.b16 %v1593
          %v1670 = vunpack.c.h.b16 %v1593
          %v1671 = vunpack.c.l.b16 %v1594
          %v1672 = vunpack.c.h.b16 %v1594
          %v1673 = vunpack.c.l.b16 %v1595
          %v1674 = vunpack.c.h.b16 %v1595
          %v1675 = vunpack.c.l.b16 %v1596
          %v1676 = vunpack.c.h.b16 %v1596
          %v1677 = vunpack.c.l.b16 %v1597
          %v1678 = vunpack.c.h.b16 %v1597
          %v1679 = vunpack.c.l.b16 %v1598
          %v1680 = vunpack.c.h.b16 %v1598
          %v1681 = vunpack.c.l.b16 %v1599
          %v1682 = vunpack.c.h.b16 %v1599
          %v1683 = vunpack.c.l.b16 %v1600
          %v1684 = vunpack.c.h.b16 %v1600
          %v1685 = vunpack.c.l.b16 %v1601
          %v1686 = vunpack.c.h.b16 %v1601
          %v1687 = vunpack.c.l.b16 %v1602
          %v1688 = vunpack.c.h.b16 %v1602
          %v1689 = vunpack.c.l.b16 %v1603
          %v1690 = vunpack.c.h.b16 %v1603
          %v1691 = vunpack.c.l.b16 %v1604
          %v1692 = vunpack.c.h.b16 %v1604
          %v1693 = vunpack.c.l.b16 %v1605
          %v1694 = vunpack.c.h.b16 %v1605
          %v1695 = vunpack.c.l.b16 %v1606
          %v1696 = vunpack.c.h.b16 %v1606
          %v1697 = vunpack.c.l.b16 %v1607
          %v1698 = vunpack.c.h.b16 %v1607
          %v1699 = vunpack.c.l.b16 %v1608
          %v1700 = vunpack.c.h.b16 %v1608
          %v1701 = vunpack.c.l.b16 %v1609
          %v1702 = vunpack.c.h.b16 %v1609
          %v1703 = vunpack.c.l.b16 %v1610
          %v1704 = vunpack.c.h.b16 %v1610
          %v1705 = vunpack.c.l.b16 %v1611
          %v1706 = vunpack.c.h.b16 %v1611
          %v1707 = vunpack.c.l.b16 %v1612
          %v1708 = vunpack.c.h.b16 %v1612
          %v1709 = vpack.c.b16 %v1649, %v1645
          %v1710 = vpack.c.b16 %v1650, %v1646
          %v1711 = vpack.c.b16 %v1651, %v1647
          %v1712 = vpack.c.b16 %v1652, %v1648
          %v1713 = vpack.c.b16 %v1657, %v1653
          %v1714 = vpack.c.b16 %v1658, %v1654
          %v1715 = vpack.c.b16 %v1659, %v1655
          %v1716 = vpack.c.b16 %v1660, %v1656
          %v1717 = vpack.c.b16 %v1665, %v1661
          %v1718 = vpack.c.b16 %v1666, %v1662
          %v1719 = vpack.c.b16 %v1667, %v1663
          %v1720 = vpack.c.b16 %v1668, %v1664
          %v1721 = vpack.c.b16 %v1673, %v1669
          %v1722 = vpack.c.b16 %v1674, %v1670
          %v1723 = vpack.c.b16 %v1675, %v1671
          %v1724 = vpack.c.b16 %v1676, %v1672
          %v1725 = vpack.c.b16 %v1681, %v1677
          %v1726 = vpack.c.b16 %v1682, %v1678
          %v1727 = vpack.c.b16 %v1683, %v1679
          %v1728 = vpack.c.b16 %v1684, %v1680
          %v1729 = vpack.c.b16 %v1689, %v1685
          %v1730 = vpack.c.b16 %v1690, %v1686
          %v1731 = vpack.c.b16 %v1691, %v1687
          %v1732 = vpack.c.b16 %v1692, %v1688
          %v1733 = vpack.c.b16 %v1697, %v1693
          %v1734 = vpack.c.b16 %v1698, %v1694
          %v1735 = vpack.c.b16 %v1699, %v1695
          %v1736 = vpack.c.b16 %v1700, %v1696
          %v1737 = vpack.c.b16 %v1705, %v1701
          %v1738 = vpack.c.b16 %v1706, %v1702
          %v1739 = vpack.c.b16 %v1707, %v1703
          %v1740 = vpack.c.b16 %v1708, %v1704
          %1773 = vmatpush.bf16.msra.mxu0 %v1737
          %1774 = vmatpush.bf16.msra.mxu0 %v1733
          %1775 = vmatpush.bf16.msra.mxu0 %v1729
          %1776 = vmatpush.bf16.msra.mxu0 %v1725
          %1777 = vmatpush.bf16.msra.mxu0 %v1721
          %1778 = vmatpush.bf16.msra.mxu0 %v1717
          %1779 = vmatpush.bf16.msra.mxu0 %v1713
          %1780 = vmatpush.bf16.msra.mxu0 %v1709
          %1781 = vmatmul.bf16.gmra.mxu0 %v1580
          %v1782 = vpop.f32.mrf.mxu0
          %v1783 = vadd.f32 0.0, %v1782
          %v1784 = vpop.f32.mrf.mxu0
          %1785 = vdwg.mxu0
          %1786 = vmatpush.bf16.msra.mxu0 %v1738
          %1787 = vmatpush.bf16.msra.mxu0 %v1734
          %1788 = vmatpush.bf16.msra.mxu0 %v1730
          %1789 = vmatpush.bf16.msra.mxu0 %v1726
          %1790 = vmatpush.bf16.msra.mxu0 %v1722
          %1791 = vmatpush.bf16.msra.mxu0 %v1718
          %1792 = vmatpush.bf16.msra.mxu0 %v1714
          %1793 = vmatpush.bf16.msra.mxu0 %v1710
          %1794 = vmatmul.bf16.gmra.mxu0 %v1580
          %v1795 = vpop.f32.mrf.mxu0
          %v1796 = vadd.f32 0.0, %v1795
          %v1797 = vpop.f32.mrf.mxu0
          %1798 = vdwg.mxu0
          %1799 = vmatpush.bf16.msra.mxu0 %v1739
          %1800 = vmatpush.bf16.msra.mxu0 %v1735
          %1801 = vmatpush.bf16.msra.mxu0 %v1731
          %1802 = vmatpush.bf16.msra.mxu0 %v1727
          %1803 = vmatpush.bf16.msra.mxu0 %v1723
          %1804 = vmatpush.bf16.msra.mxu0 %v1719
          %1805 = vmatpush.bf16.msra.mxu0 %v1715
          %1806 = vmatpush.bf16.msra.mxu0 %v1711
          %1807 = vmatmul.bf16.gmra.mxu0 %v1580
          %v1808 = vpop.f32.mrf.mxu0
          %v1809 = vadd.f32 0.0, %v1808
          %v1810 = vpop.f32.mrf.mxu0
          %1811 = vdwg.mxu0
          %1812 = vmatpush.bf16.msra.mxu0 %v1740
          %1813 = vmatpush.bf16.msra.mxu0 %v1736
          %1814 = vmatpush.bf16.msra.mxu0 %v1732
          %1815 = vmatpush.bf16.msra.mxu0 %v1728
          %1816 = vmatpush.bf16.msra.mxu0 %v1724
          %1817 = vmatpush.bf16.msra.mxu0 %v1720
          %1818 = vmatpush.bf16.msra.mxu0 %v1716
          %1819 = vmatpush.bf16.msra.mxu0 %v1712
          %1820 = vmatmul.bf16.gmra.mxu0 %v1580
          %v1821 = vpop.f32.mrf.mxu0
          %v1822 = vadd.f32 0.0, %v1821
          %v1823 = vpop.f32.mrf.mxu0
          %1824 = vdwg.mxu0
          %v1825 = vadd.f32 %v1576, %v1783
          %v1826 = vadd.f32 %v1577, %v1796
          %v1827 = vadd.f32 %v1578, %v1809
          %v1828 = vadd.f32 %v1579, %v1822
          %v1829 = vmul.f32 %v1825, 0.5
          %v1830 = vtanh.pop %v1829
          %v1831 = vmul.f32 %v1830, 0.5
          %v1832 = vadd.f32 %v1831, 0.5
          %v1833 = vmul.f32 %v1826, 0.5
          %v1834 = vtanh.pop %v1833
          %v1835 = vmul.f32 %v1834, 0.5
          %v1836 = vadd.f32 %v1835, 0.5
          %v1837 = vtanh.pop %v1827
          %v1838 = vmul.f32 %v1828, 0.5
          %v1839 = vtanh.pop %v1838
          %v1840 = vmul.f32 %v1839, 0.5
          %v1841 = vadd.f32 %v1840, 0.5
          %v1842 = vmul.f32 %v1836, %v1570
          %v1843 = vmul.f32 %v1832, %v1837
          %v1844 = vadd.f32 %v1842, %v1843
          %v1845 = vtanh.pop %v1844
          %v1846 = vmul.f32 %v1841, %v1845
          %s1847 = sadd.s32 %s378, 3
          %v1848 = vstv %s1847
          %vm1849 = vcmp.lt.s32.totalorder %v1848, %v700
          %v1850 = vsel %vm1849, 1, 0
          %1851 = vset.pattern.permute.xlu0 0
          %1852 = vperm.xlu0 %1851, %v1850
          %v1853 = vpop.permute.xlu0 %1852
          %vm1854 = vcmp.eq.s32.totalorder %v1853, 1
          %v1855 = vsel %vm1854, %v1846, 0.0
          %v1856 = vpack.c.bf16 %v1855, %v1855
          %s1857 = scalar_lea.vmem %s366, 12 [#allocation13]
          %1858 = vst [vmem:[%s1857] sm:$0xf] %v1856
          %v1859 = vsel %vm1854, %v1846, %v1569
          %v1860 = vsel %vm1854, %v1844, %v1570
          %1861 = vst [vmem:[#allocation3] sm:$0xff] %v1859
          %1862 = vst [vmem:[#allocation4] sm:$0xff] %v1860
        $region60: #{tpu_custom_call.1} parent=39 // pred_fallthru
          _
        %p1863 = scmp.ge.s32.totalorder %s378, %s379
        // Predicated region
        $region61: #{tpu_custom_call.1} parent=39 // pred_check
          %p1864 = pneg %p1863
        $region62: #{tpu_custom_call.1} parent=39 // pred_check_branch
          %1866 = sbr.rel (%p1864) target = $region64
        $region63: #{tpu_custom_call.1} parent=39 // pred_region
          %1867 = vst [vmem:[%s366] sm:$0xf] 0
          %1868 = vst [vmem:[%s366 + $0x4] sm:$0xf] 0
          %1869 = vst [vmem:[%s366 + $0x8] sm:$0xf] 0
          %1870 = vst [vmem:[%s366 + $0xc] sm:$0xf] 0
        $region64: #{tpu_custom_call.1} parent=39 // pred_fallthru
          _
        %p1871 = scmp.eq.s32.totalorder %s34, 2
        // Predicated region
        $region65: #{tpu_custom_call.1} parent=39 // pred_check
          %p1872 = pneg %p1871
        $region66: #{tpu_custom_call.1} parent=39 // pred_check_branch
          %1874 = sbr.rel (%p1872) target = $region68
        $region67: #{tpu_custom_call.1} parent=39 // pred_region
          %v1875 = vld [vmem:[#allocation3] sm:$0xff]
          %1876 = vst [vmem:[#allocation14] sm:$0xff] %v1875
          %v1877 = vld [vmem:[#allocation4] sm:$0xff]
          %1878 = vst [vmem:[#allocation16] sm:$0xff] %v1877
        $region68: #{tpu_custom_call.1} parent=39 // pred_fallthru
          _
        %s1879 = sand.u32 %s168, 1
        %s1880 = scalar_lea.sflag [#allocation9], %s1879
        %s1881 = sand.u32 %s168, 1
        %s1882 = smul.addr %s1881, 16
        %s1883 = scalar_lea.vmem [#allocation13], %s1882
        // Predicated region
        $region69: #{tpu_custom_call.1} parent=39 // pred_check
          %p1884 = pneg %p178
        $region70: #{tpu_custom_call.1} parent=39 // pred_check_branch
          %1886 = sbr.rel (%p1884) target = $region72
        $region71: #{tpu_custom_call.1} parent=39 // pred_region
          %s1887 = smul.u32 4, %s34
          %1889 = vsyncadd %s1880, 0
          %s1890 = sadd.s32 %s33, %s1887
          %s1891 = smul.addr %s1890, 4
          %s1892 = scalar_lea.hbm %s6, %s1891
          %s1893 = sshll.u32 %s1883, 4
          %s1894 = int_to_ptr.vmem [resolvable:$true] %s1893
          %s1895 = sshll.u32 %s1892, 4
          %s1896 = int_to_ptr.hbm [resolvable:$true] %s1895
          %1901 = dma.vmem_to_hbm [thread:$0]  %s1894, 256, %s1896, %s1880, 64, 64, 4
        $region72: #{tpu_custom_call.1} parent=39 // pred_fallthru
          _
        // Predicated region
        $region73: #{tpu_custom_call.1} parent=39 // pred_check
          %p1902 = pneg %p204
        $region74: #{tpu_custom_call.1} parent=39 // pred_check_branch
          %1904 = sbr.rel (%p1902) target = $region76
        $region75: #{tpu_custom_call.1} parent=39 // pred_region
          %1906 = vsyncadd [#allocation15], 0
          %s1907 = smul.addr %s33, 8
          %s1908 = scalar_lea.hbm %s7, %s1907
          %s1910 = sshll.u32 [#allocation14], 4
          %s1911 = int_to_ptr.vmem [resolvable:$true] %s1910
          %s1912 = sshll.u32 %s1908, 4
          %s1913 = int_to_ptr.hbm [resolvable:$true] %s1912
          %1915 = dma.vmem_to_hbm [thread:$0]  %s1911, 128, %s1913, [#allocation15]
        $region76: #{tpu_custom_call.1} parent=39 // pred_fallthru
          _
        // Predicated region
        $region77: #{tpu_custom_call.1} parent=39 // pred_check
          %p1916 = pneg %p230
        $region78: #{tpu_custom_call.1} parent=39 // pred_check_branch
          %1918 = sbr.rel (%p1916) target = $region80
        $region79: #{tpu_custom_call.1} parent=39 // pred_region
          %1920 = vsyncadd [#allocation15], 0
          %s1921 = smul.addr %s33, 8
          %s1922 = scalar_lea.hbm %s8, %s1921
          %s1924 = sshll.u32 [#allocation16], 4
          %s1925 = int_to_ptr.vmem [resolvable:$true] %s1924
          %s1926 = sshll.u32 %s1922, 4
          %s1927 = int_to_ptr.hbm [resolvable:$true] %s1926
          %1929 = dma.vmem_to_hbm [thread:$0]  %s1925, 128, %s1927, [#allocation15]
        $region80: #{tpu_custom_call.1} parent=39 // pred_fallthru
          _
        // Predicated region
        $region81: #{tpu_custom_call.1} parent=39 // pred_check
          %p1930 = pneg %p204
        $region82: #{tpu_custom_call.1} parent=39 // pred_check_branch
          %1932 = sbr.rel (%p1930) target = $region84
        $region83: #{tpu_custom_call.1} parent=39 // pred_region
          %1934 = dma.done [#allocation15], 128
        $region84: #{tpu_custom_call.1} parent=39 // pred_fallthru
          _
        // Predicated region
        $region85: #{tpu_custom_call.1} parent=39 // pred_check
          %p1935 = pneg %p230
        $region86: #{tpu_custom_call.1} parent=39 // pred_check_branch
          %1937 = sbr.rel (%p1935) target = $region88
        $region87: #{tpu_custom_call.1} parent=39 // pred_region
          %1939 = dma.done [#allocation15], 128
        $region88: #{tpu_custom_call.1} parent=39 // pred_fallthru
          _
      $region40: #{tpu_custom_call.1} parent=5 // pred_fallthru
        _
      %p1940 = scmp.le.s32.totalorder 2, %s24
      // Predicated region
      $region89: #{tpu_custom_call.1} parent=5 // pred_check
        %p1941 = pneg %p1940
      $region90: #{tpu_custom_call.1} parent=5 // pred_check_branch
        %1943 = sbr.rel (%p1941) target = $region92
      $region91: #{tpu_custom_call.1} parent=5 // pred_region
        %s1944 = ssub.s32 %s24, 2
        // Predicated region
        $region93: #{tpu_custom_call.1} parent=91 // pred_check
          %p1945 = pneg %p184
        $region94: #{tpu_custom_call.1} parent=91 // pred_check_branch
          %1947 = sbr.rel (%p1945) target = $region96
        $region95: #{tpu_custom_call.1} parent=91 // pred_region
          %s1948 = sand.u32 %s169, 1
          %s1949 = scalar_lea.sflag [#allocation9], %s1948
          %s1950 = sand.u32 %s169, 1
          %s1951 = smul.addr %s1950, 16
          %s1952 = scalar_lea.vmem [#allocation13], %s1951
          %1954 = dma.done %s1949, 256
        $region96: #{tpu_custom_call.1} parent=91 // pred_fallthru
          _
      $region92: #{tpu_custom_call.1} parent=5 // pred_fallthru
        _
    $region6: #{tpu_custom_call.1} parent=1 // loop_footer
      %s28 = sadd.s32 1, %s24
    $region7: #{tpu_custom_call.1} parent=1 // loop_footer_branch
      %23 = sbr.rel target = $region3
    $region8: #{tpu_custom_call.1} parent=1 // loop_exit
      _
    %1955 = vsyncpa [#allocation8], 1
    %s1956 = scalar_lea.sflag [#allocation8], 1
    %1957 = vsyncpa %s1956, 1
    %1958 = vsyncpa [#allocation11], 1
    %1959 = vsyncpa [#allocation9], 1
    %s1960 = scalar_lea.sflag [#allocation9], 1
    %1961 = vsyncpa %s1960, 1
    %1962 = vsyncpa [#allocation15], 1

</llo_original>
